<compile_context>
chip_gen: v5e
topology: v5e:2x2
jax: 0.10.0
libtpu: 0.0.40
codegen_flags: <defaults>
</compile_context>

<pallas_src>
import functools

import jax
import jax.numpy as jnp
from jax.experimental import pallas as pl
from jax.experimental.pallas import tpu as pltpu

# ----------------------------------------------------------------------------
# Model config
# ----------------------------------------------------------------------------

CFG = dict(
    image_size=16, in_ch=1,
    cnn_ch=8, cnn_out=16,                 # TFCNNLayer: conv channels, fc out
    num_caps=4, cap_dim=8, cap_out=16,    # TFCAPLayer
    pretrain_size=32,
    lstm_hidden=32,                       # 4*H = 128 -> lane-dense gate matmul
)

SEG_BLOCK = 8   # segments per frontend grid block (2 parallel blocks at n_seg=16)


def init_params(key):
    c = CFG
    ks = list(jax.random.split(key, 12))
    w = lambda k, shape, s=0.1: s * jax.random.normal(k, shape, jnp.float32)
    hw = c["image_size"] ** 2
    cap_ch = c["num_caps"] * c["cap_dim"]          # 32
    conv_ch = c["cnn_ch"] + cap_ch                 # 40  (fused cnn|cap conv)
    out_dim = c["cnn_out"] + c["cap_out"]          # 32
    D = out_dim + c["pretrain_size"]               # 64
    H = c["lstm_hidden"]

    # fused 3x3 conv, channel-major: (out_ch, in_ch*9)
    conv_w_t = w(ks[0], (conv_ch, c["in_ch"] * 9))
    conv_b = w(ks[1], (conv_ch,), 0.01)
    fc_cnn_w = w(ks[2], (c["cnn_ch"], c["cnn_out"]))
    fc_cnn_b = w(ks[3], (c["cnn_out"],), 0.01)
    fc_cap_w = w(ks[4], (cap_ch, c["cap_out"]))
    fc_cap_b = w(ks[5], (c["cap_out"],), 0.01)

    # Fused block-diagonal FC head (review: one MXU call instead of two tiny ones).
    fc_fused = jnp.zeros((out_dim, conv_ch), jnp.float32)
    fc_fused = fc_fused.at[:c["cnn_out"], :c["cnn_ch"]].set(fc_cnn_w.T)
    fc_fused = fc_fused.at[c["cnn_out"]:, c["cnn_ch"]:].set(fc_cap_w.T)
    fc_b_col = jnp.concatenate([fc_cnn_b, fc_cap_b])[:, None]

    # Precomputed kernel-1 constants (review: no in-kernel iota/div/where pool).
    relu_mask_col = (jnp.arange(conv_ch) < c["cnn_ch"]).astype(jnp.float32)[:, None]
    pool = jnp.repeat(jnp.eye(SEG_BLOCK, dtype=jnp.float32), hw, axis=0) / hw
    ch = jnp.arange(conv_ch)
    gid = jnp.where(ch >= c["cnn_ch"], (ch - c["cnn_ch"]) // c["cap_dim"], -1)
    cap_ssum = ((gid[:, None] == gid[None, :]) & (gid[:, None] >= 0)).astype(jnp.float32)

    # MXU operands stored in bf16 once (no per-call casts); biases stay f32.
    return {
        "conv_w_t": conv_w_t.astype(jnp.bfloat16),          # (40, 9)
        "conv_b_col": conv_b[:, None],                       # (40, 1)
        "relu_mask_col": relu_mask_col,                      # (40, 1) 1.0 for cnn rows
        "pool": pool.astype(jnp.bfloat16),                   # (SEG_BLOCK*hw, SEG_BLOCK)
        "cap_ssum": cap_ssum.astype(jnp.bfloat16),           # (40, 40) block-diag ones
        "fc_w_fused": fc_fused.astype(jnp.bfloat16),         # (32, 40)
        "fc_b_col": fc_b_col,                                 # (32, 1)
        # gate fusion: elementwise sigmoid gate over the concatenated features
        # TODO(synk): gate_fusion module is not defined in the reference source;
        # reconstructed as gate_out = sigmoid(W_g x + b_g) * x.
        "gate_w": w(ks[6], (D, D)).astype(jnp.bfloat16),
        "gate_b": w(ks[7], (1, D), 0.01),
        # single-layer LSTM (PyTorch gate order i,f,g,o); b = b_ih + b_hh
        "lstm_wih": w(ks[8], (D, 4 * H)).astype(jnp.bfloat16),
        "lstm_whh": w(ks[9], (H, 4 * H)).astype(jnp.bfloat16),
        "lstm_b": w(ks[10], (1, 4 * H), 0.01),
    }


# ----------------------------------------------------------------------------
# Kernel 1: fused TFCNN + TFCAP frontend (conv + pool + squash + fused FC heads)
# Layout: rows = channels/taps (sublanes), lanes = (segment, pixel) -> lane-dense.
# ----------------------------------------------------------------------------

def _frontend_kernel(patches_ref, wconv_ref, bconv_ref, mask_ref, pool_ref,
                     ssum_ref, wfc_ref, bfc_ref, o_ref):
    # conv: (40, SB*HW) f32, lane-dense.  bf16 x bf16 -> f32 accumulation.
    conv = jnp.dot(wconv_ref[...], patches_ref[...],
                   preferred_element_type=jnp.float32) + bconv_ref[...]

    # ReLU only on the cnn-channel rows: single row-mask select (no slice+concat).
    mixed = jnp.where(mask_ref[...] > 0.5, jnp.maximum(conv, 0.0), conv)

    # Per-segment spatial mean as ONE bf16 MXU matmul against the precomputed
    # block-diagonal 1/hw pool matrix (constant index_map -> DMA'd once).
    pooled = jnp.dot(mixed.astype(jnp.bfloat16), pool_ref[...],
                     preferred_element_type=jnp.float32)          # (40, SB)

    # Capsule squash: per-capsule-group squared norm via one block-diag-ones
    # matmul (MXU), instead of per-group XLU reductions + broadcasts.
    c2 = pooled * pooled
    sq = jnp.dot(ssum_ref[...], c2.astype(jnp.bfloat16),
                 preferred_element_type=jnp.float32)              # (40, SB)
    squashed = (sq / (1.0 + sq)) * pooled * jax.lax.rsqrt(sq + 1e-8)
    # cnn rows keep the (ReLU'd) pooled value, capsule rows take the squash.
    head_in = jnp.where(mask_ref[...] > 0.5, pooled, squashed)

    # Fused cnn|cap FC heads: one block-diagonal bf16 matmul + bias + ReLU.
    out = jnp.maximum(
        jnp.dot(wfc_ref[...], head_in.astype(jnp.bfloat16),
                preferred_element_type=jnp.float32) + bfc_ref[...], 0.0)
    o_ref[0] = out                                                # (32, SB)


def frontend_forward(p, patches_t):
    """patches_t: (in_ch*9, n_seg*HW) f32 -> (n_seg, cnn_out+cap_out) f32."""
    c = CFG
    hw = c["image_size"] ** 2
    k = c["in_ch"] * 9
    conv_ch = c["cnn_ch"] + c["num_caps"] * c["cap_dim"]
    out_dim = c["cnn_out"] + c["cap_out"]
    n_seg = patches_t.shape[1] // hw
    pad = (-n_seg) % SEG_BLOCK
    n_pad = n_seg + pad
    if pad:
        patches_t = jnp.pad(patches_t, ((0, 0), (0, pad * hw)))
    patches_t = patches_t.astype(jnp.bfloat16)       # halve DMA bytes, MXU bf16
    n_blocks = n_pad // SEG_BLOCK

    out = pl.pallas_call(
        _frontend_kernel,
        out_shape=jax.ShapeDtypeStruct((n_blocks, out_dim, SEG_BLOCK), jnp.float32),
        grid=(n_blocks,),
        in_specs=[
            pl.BlockSpec((k, SEG_BLOCK * hw), lambda i: (0, i)),      # patches (lane-dense)
            pl.BlockSpec((conv_ch, k), lambda i: (0, 0)),             # conv weight
            pl.BlockSpec((conv_ch, 1), lambda i: (0, 0)),             # conv bias column
            pl.BlockSpec((conv_ch, 1), lambda i: (0, 0)),             # cnn-row mask
            pl.BlockSpec((SEG_BLOCK * hw, SEG_BLOCK), lambda i: (0, 0)),  # pool matrix
            pl.BlockSpec((conv_ch, conv_ch), lambda i: (0, 0)),       # capsule group-sum
            pl.BlockSpec((out_dim, conv_ch), lambda i: (0, 0)),       # fused FC weight
            pl.BlockSpec((out_dim, 1), lambda i: (0, 0)),             # fused FC bias
        ],
        out_specs=pl.BlockSpec((1, out_dim, SEG_BLOCK), lambda i: (i, 0, 0)),
        compiler_params=pltpu.CompilerParams(dimension_semantics=("parallel",)),
    )(patches_t, p["conv_w_t"], p["conv_b_col"], p["relu_mask_col"],
      p["pool"], p["cap_ssum"], p["fc_w_fused"], p["fc_b_col"])

    # (n_blocks, 32, SB) -> (n_pad, 32) -> (n_seg, 32)   (tiny XLA transpose)
    return out.transpose(0, 2, 1).reshape(n_pad, out_dim)[:n_seg]


# ----------------------------------------------------------------------------
# Kernel 2: gate fusion + LSTM.  grid=(1,); gate fusion and the input projection
# are batched over all timesteps up front; the recurrence is an unrolled
# fori_loop with h/c carried as loop values (only h@Whh on the serial path).
# ----------------------------------------------------------------------------

def _fusion_lstm_kernel(x_ref, wg_ref, bg_ref, wih_ref, whh_ref, b_ref,
                        o_ref, pg_sc, *, T, U, H):
    x = x_ref[...]                                               # (T*U, D) f32
    # gate fusion (applied before split/pad in torch; padded rows stay zero
    # because sigmoid(b_g) * 0 == 0).
    g_lin = jnp.dot(x.astype(jnp.bfloat16), wg_ref[...],
                    preferred_element_type=jnp.float32) + bg_ref[...]
    xg = jax.nn.sigmoid(g_lin) * x                               # (T*U, D)
    # input projection for ALL timesteps in one batched matmul (off the
    # sequential critical path); result parked in VMEM scratch.
    pg_sc[...] = (jnp.dot(xg.astype(jnp.bfloat16), wih_ref[...],
                          preferred_element_type=jnp.float32) + b_ref[...])
    whh = whh_ref[...]                                           # (H, 4H) bf16, hoisted

    def step(t, carry):
        h, c = carry
        row = pl.multiple_of(t * U, U)                           # sublane-aligned (U=8)
        gates = pg_sc[pl.ds(row, U), :] + jnp.dot(
            h.astype(jnp.bfloat16), whh, preferred_element_type=jnp.float32)
        i_g = jax.nn.sigmoid(gates[:, 0:H])
        f_g = jax.nn.sigmoid(gates[:, H:2 * H])
        g_g = jnp.tanh(gates[:, 2 * H:3 * H])
        o_g = jax.nn.sigmoid(gates[:, 3 * H:4 * H])
        c_new = f_g * c + i_g * g_g
        h_new = o_g * jnp.tanh(c_new)
        return (h_new, c_new)

    init = (jnp.zeros((U, H), jnp.float32), jnp.zeros((U, H), jnp.float32))
    h_last, _ = jax.lax.fori_loop(0, T, step, init, unroll=True)
    # rnn_out = h_n[:, -1, :]  (last timestep of the padded output sequence)
    o_ref[...] = h_last


def gate_fusion_lstm_forward(p, xseq):
    """xseq: (T, U_pad, D) f32 time-major padded -> final hidden (U_pad, H) f32."""
    T, U, D = xseq.shape
    H = CFG["lstm_hidden"]
    xflat = xseq.reshape(T * U, D)
    kern = functools.partial(_fusion_lstm_kernel, T=T, U=U, H=H)
    return pl.pallas_call(
        kern,
        out_shape=jax.ShapeDtypeStruct((U, H), jnp.float32),
        grid=(1,),
        in_specs=[
            pl.BlockSpec((T * U, D), lambda i: (0, 0)),
            pl.BlockSpec((D, D), lambda i: (0, 0)),
            pl.BlockSpec((1, D), lambda i: (0, 0)),
            pl.BlockSpec((D, 4 * H), lambda i: (0, 0)),
            pl.BlockSpec((H, 4 * H), lambda i: (0, 0)),
            pl.BlockSpec((1, 4 * H), lambda i: (0, 0)),
        ],
        out_specs=pl.BlockSpec((U, H), lambda i: (0, 0)),
        scratch_shapes=[pltpu.VMEM((T * U, 4 * H), jnp.float32)],  # pre-gates
        compiler_params=pltpu.CompilerParams(dimension_semantics=("arbitrary",)),
    )(xflat, p["gate_w"], p["gate_b"], p["lstm_wih"], p["lstm_whh"], p["lstm_b"])


# ----------------------------------------------------------------------------
# JAX glue: tap-major im2col, global layernorm, split + pad_sequence
# ----------------------------------------------------------------------------

def im2col_tap_major(x, k=3, pad=1):
    """x: (N, C, H, W) NCHW -> (C*k*k, N*H*W); rows = conv tap, lanes = (seg, pixel)."""
    N, C, H, W = x.shape
    xp = jnp.pad(x, ((0, 0), (0, 0), (pad, pad), (pad, pad)))
    taps = [xp[:, :, dy:dy + H, dx:dx + W] for dy in range(k) for dx in range(k)]
    t = jnp.stack(taps, axis=0)            # (k*k, N, C, H, W)
    t = t.transpose(2, 0, 1, 3, 4)         # (C, k*k, N, H, W)
    return t.reshape(C * k * k, N * H * W)


def global_layer_norm(x, eps=1e-5):
    # F.layer_norm(x, x.shape): normalize over ALL elements, no affine params.
    mu = jnp.mean(x)
    var = jnp.mean(jnp.square(x - mu))
    return (x - mu) * jax.lax.rsqrt(var + eps)


def pad_and_stack_time_major(feats, lengths, u_align=8):
    # torch.split(feats, lengths) + pad_sequence(batch_first=True), time-major;
    # U padded to a sublane multiple so kernel-2 stores/slices are unmasked.
    T = max(lengths)
    seqs, off = [], 0
    for L in lengths:
        seqs.append(jnp.pad(feats[off:off + L], ((0, T - L), (0, 0))))
        off += L
    x = jnp.stack(seqs, axis=1)            # (T, U, D)
    upad = (-len(lengths)) % u_align
    if upad:
        x = jnp.pad(x, ((0, 0), (0, upad), (0, 0)))
    return x


# ----------------------------------------------------------------------------
# Forward pass (TFCNCAP_BUTTLE_LSTM_Layer)
# ----------------------------------------------------------------------------

@functools.partial(jax.jit, static_argnames=("lengths",))
def tfcncap_buttle_lstm_forward(p, spectrograms, pretrain_embedding, *, lengths):
    log = {}
    # shared im2col patches feed both the TFCNN and TFCAP conv branches
    patches_t = im2col_tap_major(spectrograms)               # (9, n_seg*HW) lane-dense
    front = frontend_forward(p, patches_t)                   # (n_seg, 32) [cnn16|cap16]
    pre = global_layer_norm(pretrain_embedding)              # (n_seg, 32)
    concat = jnp.concatenate([front, pre], axis=-1)          # (n_seg, 64)
    xseq = pad_and_stack_time_major(concat, lengths)         # (T, U_pad, 64)
    # TODO(synk): h_n[:, -1, :] takes the padded last timestep (literal torch
    # semantics); masking by per-sequence lengths is not applied here either.
    rnn_out = gate_fusion_lstm_forward(p, xseq)              # (U_pad, H)
    rnn_out = rnn_out[:len(lengths)]                         # drop U padding
    return rnn_out.reshape(rnn_out.shape[0], -1), log


# ----------------------------------------------------------------------------

if __name__ == "__main__":
    key = jax.random.PRNGKey(0)
    pkey, k1, k2 = jax.random.split(key, 3)
    params = init_params(pkey)

    lengths = (3, 2, 4, 3, 2, 2)          # segments per utterance (6 utterances)
    n_seg = sum(lengths)                  # 16 segments total
    n_utt = len(lengths)

    spectrograms = jax.random.normal(
        k1, (n_seg, CFG["in_ch"], CFG["image_size"], CFG["image_size"]), jnp.float32)
    pretrain_embedding = jax.random.normal(
        k2, (n_seg, CFG["pretrain_size"]), jnp.float32)

    out, _ = tfcncap_buttle_lstm_forward(params, spectrograms, pretrain_embedding,
                                         lengths=lengths)
    out = jax.block_until_ready(out)
    assert out.shape == (n_utt, CFG["lstm_hidden"]), out.shape
    assert bool(jnp.all(jnp.isfinite(out)))
    print("KERNEL_OK")
</pallas_src>

<mosaic_0001>
module attributes {stable_mosaic.version = 11 : i64} {
  func.func @_frontend_kernel(%arg0: i32, %arg1: memref<9x2048xbf16, #tpu.memory_space<vmem>>, %arg2: memref<40x9xbf16, #tpu.memory_space<vmem>>, %arg3: memref<40x1xf32, #tpu.memory_space<vmem>>, %arg4: memref<40x1xf32, #tpu.memory_space<vmem>>, %arg5: memref<2048x8xbf16, #tpu.memory_space<vmem>>, %arg6: memref<40x40xbf16, #tpu.memory_space<vmem>>, %arg7: memref<32x40xbf16, #tpu.memory_space<vmem>>, %arg8: memref<32x1xf32, #tpu.memory_space<vmem>>, %arg9: memref<1x32x8xf32, #tpu.memory_space<vmem>>) attributes {dimension_semantics = [#tpu.dimension_semantics<parallel>], iteration_bounds = array<i64: 2>, scalar_prefetch = 0 : i64, scratch_operands = 0 : i64, tpu.core_type = #tpu.core_type<tc>, window_params = [{transform_indices = @transform_0, window_bounds = array<i64: 9, 2048>}, {pipeline_mode = #tpu.pipeline_mode<synchronous>, transform_indices = @transform_1, window_bounds = array<i64: 40, 9>}, {pipeline_mode = #tpu.pipeline_mode<synchronous>, transform_indices = @transform_2, window_bounds = array<i64: 40, 1>}, {pipeline_mode = #tpu.pipeline_mode<synchronous>, transform_indices = @transform_3, window_bounds = array<i64: 40, 1>}, {pipeline_mode = #tpu.pipeline_mode<synchronous>, transform_indices = @transform_4, window_bounds = array<i64: 2048, 8>}, {pipeline_mode = #tpu.pipeline_mode<synchronous>, transform_indices = @transform_5, window_bounds = array<i64: 40, 40>}, {pipeline_mode = #tpu.pipeline_mode<synchronous>, transform_indices = @transform_6, window_bounds = array<i64: 32, 40>}, {pipeline_mode = #tpu.pipeline_mode<synchronous>, transform_indices = @transform_7, window_bounds = array<i64: 32, 1>}, {transform_indices = @transform_8, window_bounds = array<i64: 1, 32, 8>}]} {
    %c0 = arith.constant 0 : index
    %c0_0 = arith.constant 0 : index
    %0 = vector.load %arg2[%c0, %c0_0] : memref<40x9xbf16, #tpu.memory_space<vmem>>, vector<40x9xbf16>
    %c0_1 = arith.constant 0 : index
    %c0_2 = arith.constant 0 : index
    %1 = vector.load %arg1[%c0_1, %c0_2] : memref<9x2048xbf16, #tpu.memory_space<vmem>>, vector<9x2048xbf16>
    %cst = arith.constant dense<0.000000e+00> : vector<40x2048xf32>
    %2 = tpu.matmul %0, %1, %cst {dimension_numbers = #tpu.dot_dimension_numbers<[1], [0], [0], [1], [0, 0, 1, 1], [], []>} : vector<40x9xbf16>, vector<9x2048xbf16>, vector<40x2048xf32> -> vector<40x2048xf32>
    %c0_3 = arith.constant 0 : index
    %c0_4 = arith.constant 0 : index
    %3 = vector.load %arg3[%c0_3, %c0_4] : memref<40x1xf32, #tpu.memory_space<vmem>>, vector<40x1xf32>
    %4 = vector.broadcast %3 : vector<40x1xf32> to vector<40x2048xf32>
    %5 = arith.addf %2, %4 : vector<40x2048xf32>
    %c0_5 = arith.constant 0 : index
    %c0_6 = arith.constant 0 : index
    %6 = vector.load %arg4[%c0_5, %c0_6] : memref<40x1xf32, #tpu.memory_space<vmem>>, vector<40x1xf32>
    %cst_7 = arith.constant 5.000000e-01 : f32
    %7 = vector.broadcast %cst_7 : f32 to vector<40x1xf32>
    %8 = arith.cmpf ogt, %6, %7 : vector<40x1xf32>
    %cst_8 = arith.constant 0.000000e+00 : f32
    %9 = vector.broadcast %cst_8 : f32 to vector<40x2048xf32>
    %10 = arith.maximumf %5, %9 : vector<40x2048xf32>
    %11 = vector.shape_cast %8 : vector<40x1xi1> to vector<40x1xi1>
    %12 = vector.broadcast %11 : vector<40x1xi1> to vector<40x2048xi1>
    %13 = arith.select %12, %10, %5 : vector<40x2048xi1>, vector<40x2048xf32>
    %14 = arith.truncf %13 : vector<40x2048xf32> to vector<40x2048xbf16>
    %c0_9 = arith.constant 0 : index
    %c0_10 = arith.constant 0 : index
    %15 = vector.load %arg5[%c0_9, %c0_10] : memref<2048x8xbf16, #tpu.memory_space<vmem>>, vector<2048x8xbf16>
    %cst_11 = arith.constant dense<0.000000e+00> : vector<40x8xf32>
    %16 = tpu.matmul %14, %15, %cst_11 {dimension_numbers = #tpu.dot_dimension_numbers<[1], [0], [0], [1], [0, 0, 1, 1], [], []>} : vector<40x2048xbf16>, vector<2048x8xbf16>, vector<40x8xf32> -> vector<40x8xf32>
    %17 = arith.mulf %16, %16 : vector<40x8xf32>
    %c0_12 = arith.constant 0 : index
    %c0_13 = arith.constant 0 : index
    %18 = vector.load %arg6[%c0_12, %c0_13] : memref<40x40xbf16, #tpu.memory_space<vmem>>, vector<40x40xbf16>
    %19 = arith.truncf %17 : vector<40x8xf32> to vector<40x8xbf16>
    %cst_14 = arith.constant dense<0.000000e+00> : vector<40x8xf32>
    %20 = tpu.matmul %18, %19, %cst_14 {dimension_numbers = #tpu.dot_dimension_numbers<[1], [0], [0], [1], [0, 0, 1, 1], [], []>} : vector<40x40xbf16>, vector<40x8xbf16>, vector<40x8xf32> -> vector<40x8xf32>
    %cst_15 = arith.constant 1.000000e+00 : f32
    %21 = vector.broadcast %cst_15 : f32 to vector<40x8xf32>
    %22 = arith.addf %21, %20 : vector<40x8xf32>
    %23 = arith.divf %20, %22 : vector<40x8xf32>
    %24 = arith.mulf %23, %16 : vector<40x8xf32>
    %cst_16 = arith.constant 9.99999993E-9 : f32
    %25 = vector.broadcast %cst_16 : f32 to vector<40x8xf32>
    %26 = arith.addf %20, %25 : vector<40x8xf32>
    %27 = math.rsqrt %26 : vector<40x8xf32>
    %28 = arith.mulf %24, %27 : vector<40x8xf32>
    %c0_17 = arith.constant 0 : index
    %c0_18 = arith.constant 0 : index
    %29 = vector.load %arg4[%c0_17, %c0_18] : memref<40x1xf32, #tpu.memory_space<vmem>>, vector<40x1xf32>
    %cst_19 = arith.constant 5.000000e-01 : f32
    %30 = vector.broadcast %cst_19 : f32 to vector<40x1xf32>
    %31 = arith.cmpf ogt, %29, %30 : vector<40x1xf32>
    %32 = vector.shape_cast %31 : vector<40x1xi1> to vector<40x1xi1>
    %33 = vector.broadcast %32 : vector<40x1xi1> to vector<40x8xi1>
    %34 = arith.select %33, %16, %28 : vector<40x8xi1>, vector<40x8xf32>
    %c0_20 = arith.constant 0 : index
    %c0_21 = arith.constant 0 : index
    %35 = vector.load %arg7[%c0_20, %c0_21] : memref<32x40xbf16, #tpu.memory_space<vmem>>, vector<32x40xbf16>
    %36 = arith.truncf %34 : vector<40x8xf32> to vector<40x8xbf16>
    %cst_22 = arith.constant dense<0.000000e+00> : vector<32x8xf32>
    %37 = tpu.matmul %35, %36, %cst_22 {dimension_numbers = #tpu.dot_dimension_numbers<[1], [0], [0], [1], [0, 0, 1, 1], [], []>} : vector<32x40xbf16>, vector<40x8xbf16>, vector<32x8xf32> -> vector<32x8xf32>
    %c0_23 = arith.constant 0 : index
    %c0_24 = arith.constant 0 : index
    %38 = vector.load %arg8[%c0_23, %c0_24] : memref<32x1xf32, #tpu.memory_space<vmem>>, vector<32x1xf32>
    %39 = vector.broadcast %38 : vector<32x1xf32> to vector<32x8xf32>
    %40 = arith.addf %37, %39 : vector<32x8xf32>
    %cst_25 = arith.constant 0.000000e+00 : f32
    %41 = vector.broadcast %cst_25 : f32 to vector<32x8xf32>
    %42 = arith.maximumf %40, %41 : vector<32x8xf32>
    %c0_26 = arith.constant 0 : index
    %c0_27 = arith.constant 0 : index
    %c0_28 = arith.constant 0 : index
    %43 = vector.load %arg9[%c0_26, %c0_27, %c0_28] : memref<1x32x8xf32, #tpu.memory_space<vmem>>, vector<1x32x8xf32>
    %44 = vector.shape_cast %43 : vector<1x32x8xf32> to vector<32x8xf32>
    %45 = vector.shape_cast %42 : vector<32x8xf32> to vector<1x32x8xf32>
    tpu.vector_store %arg9[%c0_26, %c0_27, %c0_28], %45 {strides = array<i32>} : memref<1x32x8xf32, #tpu.memory_space<vmem>>, vector<1x32x8xf32>,
    return
  }
  func.func @transform_0(%arg0: i32) -> (i32, i32) {
    %c0_i32 = arith.constant 0 : i32
    %c0_i32_0 = arith.constant 0 : i32
    return %c0_i32, %arg0 : i32, i32
  }
  func.func @transform_1(%arg0: i32) -> (i32, i32) {
    %c0_i32 = arith.constant 0 : i32
    %c0_i32_0 = arith.constant 0 : i32
    %c0_i32_1 = arith.constant 0 : i32
    return %c0_i32, %c0_i32_0 : i32, i32
  }
  func.func @transform_2(%arg0: i32) -> (i32, i32) {
    %c0_i32 = arith.constant 0 : i32
    %c0_i32_0 = arith.constant 0 : i32
    %c0_i32_1 = arith.constant 0 : i32
    return %c0_i32, %c0_i32_0 : i32, i32
  }
  func.func @transform_3(%arg0: i32) -> (i32, i32) {
    %c0_i32 = arith.constant 0 : i32
    %c0_i32_0 = arith.constant 0 : i32
    %c0_i32_1 = arith.constant 0 : i32
    return %c0_i32, %c0_i32_0 : i32, i32
  }
  func.func @transform_4(%arg0: i32) -> (i32, i32) {
    %c0_i32 = arith.constant 0 : i32
    %c0_i32_0 = arith.constant 0 : i32
    %c0_i32_1 = arith.constant 0 : i32
    return %c0_i32, %c0_i32_0 : i32, i32
  }
  func.func @transform_5(%arg0: i32) -> (i32, i32) {
    %c0_i32 = arith.constant 0 : i32
    %c0_i32_0 = arith.constant 0 : i32
    %c0_i32_1 = arith.constant 0 : i32
    return %c0_i32, %c0_i32_0 : i32, i32
  }
  func.func @transform_6(%arg0: i32) -> (i32, i32) {
    %c0_i32 = arith.constant 0 : i32
    %c0_i32_0 = arith.constant 0 : i32
    %c0_i32_1 = arith.constant 0 : i32
    return %c0_i32, %c0_i32_0 : i32, i32
  }
  func.func @transform_7(%arg0: i32) -> (i32, i32) {
    %c0_i32 = arith.constant 0 : i32
    %c0_i32_0 = arith.constant 0 : i32
    %c0_i32_1 = arith.constant 0 : i32
    return %c0_i32, %c0_i32_0 : i32, i32
  }
  func.func @transform_8(%arg0: i32) -> (i32, i32, i32) {
    %c0_i32 = arith.constant 0 : i32
    %c0_i32_0 = arith.constant 0 : i32
    %c0_i32_1 = arith.constant 0 : i32
    return %arg0, %c0_i32, %c0_i32_0 : i32, i32, i32
  }
}

module attributes {stable_mosaic.version = 11 : i64} {
  func.func @_fusion_lstm_kernel(%arg0: i32, %arg1: memref<32x64xf32, #tpu.memory_space<vmem>>, %arg2: memref<64x64xbf16, #tpu.memory_space<vmem>>, %arg3: memref<1x64xf32, #tpu.memory_space<vmem>>, %arg4: memref<64x128xbf16, #tpu.memory_space<vmem>>, %arg5: memref<32x128xbf16, #tpu.memory_space<vmem>>, %arg6: memref<1x128xf32, #tpu.memory_space<vmem>>, %arg7: memref<8x32xf32, #tpu.memory_space<vmem>>, %arg8: memref<32x128xf32, #tpu.memory_space<vmem>>) attributes {dimension_semantics = [#tpu.dimension_semantics<arbitrary>], iteration_bounds = array<i64: 1>, scalar_prefetch = 0 : i64, scratch_operands = 1 : i64, tpu.core_type = #tpu.core_type<tc>, window_params = [{pipeline_mode = #tpu.pipeline_mode<synchronous>, transform_indices = @transform_0, window_bounds = array<i64: 32, 64>}, {pipeline_mode = #tpu.pipeline_mode<synchronous>, transform_indices = @transform_1, window_bounds = array<i64: 64, 64>}, {pipeline_mode = #tpu.pipeline_mode<synchronous>, transform_indices = @transform_2, window_bounds = array<i64: 1, 64>}, {pipeline_mode = #tpu.pipeline_mode<synchronous>, transform_indices = @transform_3, window_bounds = array<i64: 64, 128>}, {pipeline_mode = #tpu.pipeline_mode<synchronous>, transform_indices = @transform_4, window_bounds = array<i64: 32, 128>}, {pipeline_mode = #tpu.pipeline_mode<synchronous>, transform_indices = @transform_5, window_bounds = array<i64: 1, 128>}, {pipeline_mode = #tpu.pipeline_mode<synchronous>, transform_indices = @transform_6, window_bounds = array<i64: 8, 32>}]} {
    %c0 = arith.constant 0 : index
    %c0_0 = arith.constant 0 : index
    %0 = vector.load %arg1[%c0, %c0_0] : memref<32x64xf32, #tpu.memory_space<vmem>>, vector<32x64xf32>
    %1 = arith.truncf %0 : vector<32x64xf32> to vector<32x64xbf16>
    %c0_1 = arith.constant 0 : index
    %c0_2 = arith.constant 0 : index
    %2 = vector.load %arg2[%c0_1, %c0_2] : memref<64x64xbf16, #tpu.memory_space<vmem>>, vector<64x64xbf16>
    %cst = arith.constant dense<0.000000e+00> : vector<32x64xf32>
    %3 = tpu.matmul %1, %2, %cst {dimension_numbers = #tpu.dot_dimension_numbers<[1], [0], [0], [1], [0, 0, 1, 1], [], []>} : vector<32x64xbf16>, vector<64x64xbf16>, vector<32x64xf32> -> vector<32x64xf32>
    %c0_3 = arith.constant 0 : index
    %c0_4 = arith.constant 0 : index
    %4 = vector.load %arg3[%c0_3, %c0_4] : memref<1x64xf32, #tpu.memory_space<vmem>>, vector<1x64xf32>
    %5 = vector.broadcast %4 : vector<1x64xf32> to vector<32x64xf32>
    %6 = arith.addf %3, %5 : vector<32x64xf32>
    %7 = arith.negf %6 : vector<32x64xf32>
    %8 = math.exp %7 : vector<32x64xf32>
    %cst_5 = arith.constant 1.000000e+00 : f32
    %9 = vector.broadcast %cst_5 : f32 to vector<32x64xf32>
    %10 = arith.addf %9, %8 : vector<32x64xf32>
    %11 = arith.divf %9, %10 : vector<32x64xf32>
    %12 = arith.mulf %11, %0 : vector<32x64xf32>
    %13 = arith.truncf %12 : vector<32x64xf32> to vector<32x64xbf16>
    %c0_6 = arith.constant 0 : index
    %c0_7 = arith.constant 0 : index
    %14 = vector.load %arg4[%c0_6, %c0_7] : memref<64x128xbf16, #tpu.memory_space<vmem>>, vector<64x128xbf16>
    %cst_8 = arith.constant dense<0.000000e+00> : vector<32x128xf32>
    %15 = tpu.matmul %13, %14, %cst_8 {dimension_numbers = #tpu.dot_dimension_numbers<[1], [0], [0], [1], [0, 0, 1, 1], [], []>} : vector<32x64xbf16>, vector<64x128xbf16>, vector<32x128xf32> -> vector<32x128xf32>
    %c0_9 = arith.constant 0 : index
    %c0_10 = arith.constant 0 : index
    %16 = vector.load %arg6[%c0_9, %c0_10] : memref<1x128xf32, #tpu.memory_space<vmem>>, vector<1x128xf32>
    %17 = vector.broadcast %16 : vector<1x128xf32> to vector<32x128xf32>
    %18 = arith.addf %15, %17 : vector<32x128xf32>
    %c0_11 = arith.constant 0 : index
    %c0_12 = arith.constant 0 : index
    %19 = vector.load %arg8[%c0_11, %c0_12] : memref<32x128xf32, #tpu.memory_space<vmem>>, vector<32x128xf32>
    tpu.vector_store %arg8[%c0_11, %c0_12], %18 {strides = array<i32>} : memref<32x128xf32, #tpu.memory_space<vmem>>, vector<32x128xf32>,
    %c0_13 = arith.constant 0 : index
    %c0_14 = arith.constant 0 : index
    %20 = vector.load %arg5[%c0_13, %c0_14] : memref<32x128xbf16, #tpu.memory_space<vmem>>, vector<32x128xbf16>
    %cst_15 = arith.constant 0.000000e+00 : f32
    %21 = vector.broadcast %cst_15 : f32 to vector<8x32xf32>
    %cst_16 = arith.constant 0.000000e+00 : f32
    %22 = vector.broadcast %cst_16 : f32 to vector<8x32xf32>
    %c0_i32 = arith.constant 0 : i32
    %c8_i32 = arith.constant 8 : i32
    %23 = arith.muli %c0_i32, %c8_i32 : i32
    %24 = tpu.assume_multiple %23, 8 : i32
    %25 = arith.index_cast %24 : i32 to index
    %c0_17 = arith.constant 0 : index
    %26 = vector.load %arg8[%25, %c0_17] : memref<32x128xf32, #tpu.memory_space<vmem>>, vector<8x128xf32>
    %27 = arith.truncf %21 : vector<8x32xf32> to vector<8x32xbf16>
    %cst_18 = arith.constant dense<0.000000e+00> : vector<8x128xf32>
    %28 = tpu.matmul %27, %20, %cst_18 {dimension_numbers = #tpu.dot_dimension_numbers<[1], [0], [0], [1], [0, 0, 1, 1], [], []>} : vector<8x32xbf16>, vector<32x128xbf16>, vector<8x128xf32> -> vector<8x128xf32>
    %29 = arith.addf %26, %28 : vector<8x128xf32>
    %30 = vector.extract_strided_slice %29 {offsets = [0, 0], sizes = [8, 32], strides = [1, 1]} : vector<8x128xf32> to vector<8x32xf32>
    %31 = arith.negf %30 : vector<8x32xf32>
    %32 = math.exp %31 : vector<8x32xf32>
    %cst_19 = arith.constant 1.000000e+00 : f32
    %33 = vector.broadcast %cst_19 : f32 to vector<8x32xf32>
    %34 = arith.addf %33, %32 : vector<8x32xf32>
    %35 = arith.divf %33, %34 : vector<8x32xf32>
    %36 = vector.extract_strided_slice %29 {offsets = [0, 32], sizes = [8, 32], strides = [1, 1]} : vector<8x128xf32> to vector<8x32xf32>
    %37 = arith.negf %36 : vector<8x32xf32>
    %38 = math.exp %37 : vector<8x32xf32>
    %cst_20 = arith.constant 1.000000e+00 : f32
    %39 = vector.broadcast %cst_20 : f32 to vector<8x32xf32>
    %40 = arith.addf %39, %38 : vector<8x32xf32>
    %41 = arith.divf %39, %40 : vector<8x32xf32>
    %42 = vector.extract_strided_slice %29 {offsets = [0, 64], sizes = [8, 32], strides = [1, 1]} : vector<8x128xf32> to vector<8x32xf32>
    %43 = math.tanh %42 : vector<8x32xf32>
    %44 = vector.extract_strided_slice %29 {offsets = [0, 96], sizes = [8, 32], strides = [1, 1]} : vector<8x128xf32> to vector<8x32xf32>
    %45 = arith.negf %44 : vector<8x32xf32>
    %46 = math.exp %45 : vector<8x32xf32>
    %cst_21 = arith.constant 1.000000e+00 : f32
    %47 = vector.broadcast %cst_21 : f32 to vector<8x32xf32>
    %48 = arith.addf %47, %46 : vector<8x32xf32>
    %49 = arith.divf %47, %48 : vector<8x32xf32>
    %50 = arith.mulf %41, %22 : vector<8x32xf32>
    %51 = arith.mulf %35, %43 : vector<8x32xf32>
    %52 = arith.addf %50, %51 : vector<8x32xf32>
    %53 = math.tanh %52 : vector<8x32xf32>
    %54 = arith.mulf %49, %53 : vector<8x32xf32>
    %c1_i32 = arith.constant 1 : i32
    %c8_i32_22 = arith.constant 8 : i32
    %55 = arith.muli %c1_i32, %c8_i32_22 : i32
    %56 = tpu.assume_multiple %55, 8 : i32
    %57 = arith.index_cast %56 : i32 to index
    %c0_23 = arith.constant 0 : index
    %58 = vector.load %arg8[%57, %c0_23] : memref<32x128xf32, #tpu.memory_space<vmem>>, vector<8x128xf32>
    %59 = arith.truncf %54 : vector<8x32xf32> to vector<8x32xbf16>
    %cst_24 = arith.constant dense<0.000000e+00> : vector<8x128xf32>
    %60 = tpu.matmul %59, %20, %cst_24 {dimension_numbers = #tpu.dot_dimension_numbers<[1], [0], [0], [1], [0, 0, 1, 1], [], []>} : vector<8x32xbf16>, vector<32x128xbf16>, vector<8x128xf32> -> vector<8x128xf32>
    %61 = arith.addf %58, %60 : vector<8x128xf32>
    %62 = vector.extract_strided_slice %61 {offsets = [0, 0], sizes = [8, 32], strides = [1, 1]} : vector<8x128xf32> to vector<8x32xf32>
    %63 = arith.negf %62 : vector<8x32xf32>
    %64 = math.exp %63 : vector<8x32xf32>
    %cst_25 = arith.constant 1.000000e+00 : f32
    %65 = vector.broadcast %cst_25 : f32 to vector<8x32xf32>
    %66 = arith.addf %65, %64 : vector<8x32xf32>
    %67 = arith.divf %65, %66 : vector<8x32xf32>
    %68 = vector.extract_strided_slice %61 {offsets = [0, 32], sizes = [8, 32], strides = [1, 1]} : vector<8x128xf32> to vector<8x32xf32>
    %69 = arith.negf %68 : vector<8x32xf32>
    %70 = math.exp %69 : vector<8x32xf32>
    %cst_26 = arith.constant 1.000000e+00 : f32
    %71 = vector.broadcast %cst_26 : f32 to vector<8x32xf32>
    %72 = arith.addf %71, %70 : vector<8x32xf32>
    %73 = arith.divf %71, %72 : vector<8x32xf32>
    %74 = vector.extract_strided_slice %61 {offsets = [0, 64], sizes = [8, 32], strides = [1, 1]} : vector<8x128xf32> to vector<8x32xf32>
    %75 = math.tanh %74 : vector<8x32xf32>
    %76 = vector.extract_strided_slice %61 {offsets = [0, 96], sizes = [8, 32], strides = [1, 1]} : vector<8x128xf32> to vector<8x32xf32>
    %77 = arith.negf %76 : vector<8x32xf32>
    %78 = math.exp %77 : vector<8x32xf32>
    %cst_27 = arith.constant 1.000000e+00 : f32
    %79 = vector.broadcast %cst_27 : f32 to vector<8x32xf32>
    %80 = arith.addf %79, %78 : vector<8x32xf32>
    %81 = arith.divf %79, %80 : vector<8x32xf32>
    %82 = arith.mulf %73, %52 : vector<8x32xf32>
    %83 = arith.mulf %67, %75 : vector<8x32xf32>
    %84 = arith.addf %82, %83 : vector<8x32xf32>
    %85 = math.tanh %84 : vector<8x32xf32>
    %86 = arith.mulf %81, %85 : vector<8x32xf32>
    %c2_i32 = arith.constant 2 : i32
    %c8_i32_28 = arith.constant 8 : i32
    %87 = arith.muli %c2_i32, %c8_i32_28 : i32
    %88 = tpu.assume_multiple %87, 8 : i32
    %89 = arith.index_cast %88 : i32 to index
    %c0_29 = arith.constant 0 : index
    %90 = vector.load %arg8[%89, %c0_29] : memref<32x128xf32, #tpu.memory_space<vmem>>, vector<8x128xf32>
    %91 = arith.truncf %86 : vector<8x32xf32> to vector<8x32xbf16>
    %cst_30 = arith.constant dense<0.000000e+00> : vector<8x128xf32>
    %92 = tpu.matmul %91, %20, %cst_30 {dimension_numbers = #tpu.dot_dimension_numbers<[1], [0], [0], [1], [0, 0, 1, 1], [], []>} : vector<8x32xbf16>, vector<32x128xbf16>, vector<8x128xf32> -> vector<8x128xf32>
    %93 = arith.addf %90, %92 : vector<8x128xf32>
    %94 = vector.extract_strided_slice %93 {offsets = [0, 0], sizes = [8, 32], strides = [1, 1]} : vector<8x128xf32> to vector<8x32xf32>
    %95 = arith.negf %94 : vector<8x32xf32>
    %96 = math.exp %95 : vector<8x32xf32>
    %cst_31 = arith.constant 1.000000e+00 : f32
    %97 = vector.broadcast %cst_31 : f32 to vector<8x32xf32>
    %98 = arith.addf %97, %96 : vector<8x32xf32>
    %99 = arith.divf %97, %98 : vector<8x32xf32>
    %100 = vector.extract_strided_slice %93 {offsets = [0, 32], sizes = [8, 32], strides = [1, 1]} : vector<8x128xf32> to vector<8x32xf32>
    %101 = arith.negf %100 : vector<8x32xf32>
    %102 = math.exp %101 : vector<8x32xf32>
    %cst_32 = arith.constant 1.000000e+00 : f32
    %103 = vector.broadcast %cst_32 : f32 to vector<8x32xf32>
    %104 = arith.addf %103, %102 : vector<8x32xf32>
    %105 = arith.divf %103, %104 : vector<8x32xf32>
    %106 = vector.extract_strided_slice %93 {offsets = [0, 64], sizes = [8, 32], strides = [1, 1]} : vector<8x128xf32> to vector<8x32xf32>
    %107 = math.tanh %106 : vector<8x32xf32>
    %108 = vector.extract_strided_slice %93 {offsets = [0, 96], sizes = [8, 32], strides = [1, 1]} : vector<8x128xf32> to vector<8x32xf32>
    %109 = arith.negf %108 : vector<8x32xf32>
    %110 = math.exp %109 : vector<8x32xf32>
    %cst_33 = arith.constant 1.000000e+00 : f32
    %111 = vector.broadcast %cst_33 : f32 to vector<8x32xf32>
    %112 = arith.addf %111, %110 : vector<8x32xf32>
    %113 = arith.divf %111, %112 : vector<8x32xf32>
    %114 = arith.mulf %105, %84 : vector<8x32xf32>
    %115 = arith.mulf %99, %107 : vector<8x32xf32>
    %116 = arith.addf %114, %115 : vector<8x32xf32>
    %117 = math.tanh %116 : vector<8x32xf32>
    %118 = arith.mulf %113, %117 : vector<8x32xf32>
    %c3_i32 = arith.constant 3 : i32
    %c8_i32_34 = arith.constant 8 : i32
    %119 = arith.muli %c3_i32, %c8_i32_34 : i32
    %120 = tpu.assume_multiple %119, 8 : i32
    %121 = arith.index_cast %120 : i32 to index
    %c0_35 = arith.constant 0 : index
    %122 = vector.load %arg8[%121, %c0_35] : memref<32x128xf32, #tpu.memory_space<vmem>>, vector<8x128xf32>
    %123 = arith.truncf %118 : vector<8x32xf32> to vector<8x32xbf16>
    %cst_36 = arith.constant dense<0.000000e+00> : vector<8x128xf32>
    %124 = tpu.matmul %123, %20, %cst_36 {dimension_numbers = #tpu.dot_dimension_numbers<[1], [0], [0], [1], [0, 0, 1, 1], [], []>} : vector<8x32xbf16>, vector<32x128xbf16>, vector<8x128xf32> -> vector<8x128xf32>
    %125 = arith.addf %122, %124 : vector<8x128xf32>
    %126 = vector.extract_strided_slice %125 {offsets = [0, 0], sizes = [8, 32], strides = [1, 1]} : vector<8x128xf32> to vector<8x32xf32>
    %127 = arith.negf %126 : vector<8x32xf32>
    %128 = math.exp %127 : vector<8x32xf32>
    %cst_37 = arith.constant 1.000000e+00 : f32
    %129 = vector.broadcast %cst_37 : f32 to vector<8x32xf32>
    %130 = arith.addf %129, %128 : vector<8x32xf32>
    %131 = arith.divf %129, %130 : vector<8x32xf32>
    %132 = vector.extract_strided_slice %125 {offsets = [0, 32], sizes = [8, 32], strides = [1, 1]} : vector<8x128xf32> to vector<8x32xf32>
    %133 = arith.negf %132 : vector<8x32xf32>
    %134 = math.exp %133 : vector<8x32xf32>
    %cst_38 = arith.constant 1.000000e+00 : f32
    %135 = vector.broadcast %cst_38 : f32 to vector<8x32xf32>
    %136 = arith.addf %135, %134 : vector<8x32xf32>
    %137 = arith.divf %135, %136 : vector<8x32xf32>
    %138 = vector.extract_strided_slice %125 {offsets = [0, 64], sizes = [8, 32], strides = [1, 1]} : vector<8x128xf32> to vector<8x32xf32>
    %139 = math.tanh %138 : vector<8x32xf32>
    %140 = vector.extract_strided_slice %125 {offsets = [0, 96], sizes = [8, 32], strides = [1, 1]} : vector<8x128xf32> to vector<8x32xf32>
    %141 = arith.negf %140 : vector<8x32xf32>
    %142 = math.exp %141 : vector<8x32xf32>
    %cst_39 = arith.constant 1.000000e+00 : f32
    %143 = vector.broadcast %cst_39 : f32 to vector<8x32xf32>
    %144 = arith.addf %143, %142 : vector<8x32xf32>
    %145 = arith.divf %143, %144 : vector<8x32xf32>
    %146 = arith.mulf %137, %116 : vector<8x32xf32>
    %147 = arith.mulf %131, %139 : vector<8x32xf32>
    %148 = arith.addf %146, %147 : vector<8x32xf32>
    %149 = math.tanh %148 : vector<8x32xf32>
    %150 = arith.mulf %145, %149 : vector<8x32xf32>
    %c4_i32 = arith.constant 4 : i32
    %c0_40 = arith.constant 0 : index
    %c0_41 = arith.constant 0 : index
    %151 = vector.load %arg7[%c0_40, %c0_41] : memref<8x32xf32, #tpu.memory_space<vmem>>, vector<8x32xf32>
    tpu.vector_store %arg7[%c0_40, %c0_41], %150 {strides = array<i32>} : memref<8x32xf32, #tpu.memory_space<vmem>>, vector<8x32xf32>,
    return
  }
  func.func @transform_0(%arg0: i32) -> (i32, i32) {
    %c0_i32 = arith.constant 0 : i32
    %c0_i32_0 = arith.constant 0 : i32
    %c0_i32_1 = arith.constant 0 : i32
    return %c0_i32, %c0_i32_0 : i32, i32
  }
  func.func @transform_1(%arg0: i32) -> (i32, i32) {
    %c0_i32 = arith.constant 0 : i32
    %c0_i32_0 = arith.constant 0 : i32
    %c0_i32_1 = arith.constant 0 : i32
    return %c0_i32, %c0_i32_0 : i32, i32
  }
  func.func @transform_2(%arg0: i32) -> (i32, i32) {
    %c0_i32 = arith.constant 0 : i32
    %c0_i32_0 = arith.constant 0 : i32
    %c0_i32_1 = arith.constant 0 : i32
    return %c0_i32, %c0_i32_0 : i32, i32
  }
  func.func @transform_3(%arg0: i32) -> (i32, i32) {
    %c0_i32 = arith.constant 0 : i32
    %c0_i32_0 = arith.constant 0 : i32
    %c0_i32_1 = arith.constant 0 : i32
    return %c0_i32, %c0_i32_0 : i32, i32
  }
  func.func @transform_4(%arg0: i32) -> (i32, i32) {
    %c0_i32 = arith.constant 0 : i32
    %c0_i32_0 = arith.constant 0 : i32
    %c0_i32_1 = arith.constant 0 : i32
    return %c0_i32, %c0_i32_0 : i32, i32
  }
  func.func @transform_5(%arg0: i32) -> (i32, i32) {
    %c0_i32 = arith.constant 0 : i32
    %c0_i32_0 = arith.constant 0 : i32
    %c0_i32_1 = arith.constant 0 : i32
    return %c0_i32, %c0_i32_0 : i32, i32
  }
  func.func @transform_6(%arg0: i32) -> (i32, i32) {
    %c0_i32 = arith.constant 0 : i32
    %c0_i32_0 = arith.constant 0 : i32
    %c0_i32_1 = arith.constant 0 : i32
    return %c0_i32, %c0_i32_0 : i32, i32
  }
}

</mosaic_0001>

<llo_original>
// kernel: tfcncap_buttle_lstm_forward.3
$region0: #{tfcncap_buttle_lstm_forward.3}
  #allocation0 [shape = 'u32[]', space=smem, size = 0x4, offset = 0x4, fixed_abs, tag = 'smem constant byte address 0x4 - core index']
  #allocation1 [shape = 'u32[72,128]{1,0:T(1,128)}', space=vmem, size = 0x9000, scoped, tag = 'internal scratch']
  #allocation2 [shape = 'f32[32,128]{1,0:T(8,128)}', space=vmem, size = 0x4000, scoped, tag = 'scratch operand']
  %s0 = inlined_call_operand.vmem [shape: f32[32,64], index: 0, kind: input, shape index: {}]
  %s1 = inlined_call_operand.vmem [shape: bf16[64,64], index: 1, kind: input, shape index: {}]
  %s2 = inlined_call_operand.vmem [shape: f32[1,64], index: 2, kind: input, shape index: {}]
  %s3 = inlined_call_operand.vmem [shape: bf16[64,128], index: 3, kind: input, shape index: {}]
  %s4 = inlined_call_operand.vmem [shape: bf16[32,128], index: 4, kind: input, shape index: {}]
  %s5 = inlined_call_operand.vmem [shape: f32[1,128], index: 5, kind: input, shape index: {}]
  %s6 = inlined_call_operand.hbm [shape: f32[8,32], index: 6, kind: output, shape index: {}]
  %s7 = sld [smem:[#allocation0]]
  $region34: #{tfcncap_buttle_lstm_forward.3} parent=0
    _
  %s9 = ssub.s32 1, %s7
  %s10 = scalar_select 0, %s9, %s7
  $region1: #{tfcncap_buttle_lstm_forward.3} parent=0
    #allocation3 [shape = 'u8[4096]{0}', space=vmem, size = 0x1000, scoped, tag = 'output window, operand 0, single buffered']
    #allocation4 [shape = 's32[1]{0}', space=sflag, size = 0x4, scoped, tag = 'scoped memory for tfcncap_buttle_lstm_forward.3']
    %11 = vsyncpa [#allocation4], 0
    // Predicated region
    $region2: #{tfcncap_buttle_lstm_forward.3} parent=1 // pred_check
      _
    $region3: #{tfcncap_buttle_lstm_forward.3} parent=1 // pred_check_branch
      %13 = sbr.rel (0) target = $region5
    $region4: #{tfcncap_buttle_lstm_forward.3} parent=1 // pred_region
      _
    $region5: #{tfcncap_buttle_lstm_forward.3} parent=1 // pred_fallthru
      _
    // Predicated region
    $region6: #{tfcncap_buttle_lstm_forward.3} parent=1 // pred_check
      _
    $region7: #{tfcncap_buttle_lstm_forward.3} parent=1 // pred_check_branch
      %15 = sbr.rel (0) target = $region9
    $region8: #{tfcncap_buttle_lstm_forward.3} parent=1 // pred_region
      _
    $region9: #{tfcncap_buttle_lstm_forward.3} parent=1 // pred_fallthru
      _
    // Predicated region
    $region10: #{tfcncap_buttle_lstm_forward.3} parent=1 // pred_check
      _
    $region11: #{tfcncap_buttle_lstm_forward.3} parent=1 // pred_check_branch
      %17 = sbr.rel (0) target = $region13
    $region12: #{tfcncap_buttle_lstm_forward.3} parent=1 // pred_region
      _
    $region13: #{tfcncap_buttle_lstm_forward.3} parent=1 // pred_fallthru
      _
    // Predicated region
    $region14: #{tfcncap_buttle_lstm_forward.3} parent=1 // pred_check
      _
    $region15: #{tfcncap_buttle_lstm_forward.3} parent=1 // pred_check_branch
      %19 = sbr.rel (0) target = $region17
    $region16: #{tfcncap_buttle_lstm_forward.3} parent=1 // pred_region
      _
    $region17: #{tfcncap_buttle_lstm_forward.3} parent=1 // pred_fallthru
      _
    // Predicated region
    $region18: #{tfcncap_buttle_lstm_forward.3} parent=1 // pred_check
      _
    $region19: #{tfcncap_buttle_lstm_forward.3} parent=1 // pred_check_branch
      %21 = sbr.rel (0) target = $region21
    $region20: #{tfcncap_buttle_lstm_forward.3} parent=1 // pred_region
      _
    $region21: #{tfcncap_buttle_lstm_forward.3} parent=1 // pred_fallthru
      _
    // Predicated region
    $region22: #{tfcncap_buttle_lstm_forward.3} parent=1 // pred_check
      _
    $region23: #{tfcncap_buttle_lstm_forward.3} parent=1 // pred_check_branch
      %23 = sbr.rel (0) target = $region25
    $region24: #{tfcncap_buttle_lstm_forward.3} parent=1 // pred_region
      _
    $region25: #{tfcncap_buttle_lstm_forward.3} parent=1 // pred_fallthru
      _
    %v25 = vld [vmem:[%s0] sm:$0xff]
    %v26 = vld [vmem:[%s0 + $0x8] sm:$0xff]
    %v27 = vld [vmem:[%s0 + $0x10] sm:$0xff]
    %v28 = vld [vmem:[%s0 + $0x18] sm:$0xff]
    %v29 = vpack.c.bf16 %v26, %v25
    %v30 = vpack.c.bf16 %v28, %v27
    %v31 = vld [vmem:[%s1] sm:$0xf]
    %v32 = vld [vmem:[%s1 + $0x4] sm:$0xf]
    %v33 = vld [vmem:[%s1 + $0x8] sm:$0xf]
    %v34 = vld [vmem:[%s1 + $0xc] sm:$0xf]
    %v35 = vld [vmem:[%s1 + $0x10] sm:$0xf]
    %v36 = vld [vmem:[%s1 + $0x14] sm:$0xf]
    %v37 = vld [vmem:[%s1 + $0x18] sm:$0xf]
    %v38 = vld [vmem:[%s1 + $0x1c] sm:$0xf]
    %v39 = vld [vmem:[%s2] sm:$0x1]
    %v41 = vperm.slane %v39, 0
    %v51 = vunpack.c.l.b16 %v31
    %v52 = vunpack.c.l.b16 %v32
    %v53 = vunpack.c.l.b16 %v33
    %v54 = vunpack.c.l.b16 %v34
    %v55 = vunpack.c.l.b16 %v35
    %v56 = vunpack.c.l.b16 %v36
    %v57 = vunpack.c.l.b16 %v37
    %v58 = vunpack.c.l.b16 %v38
    %v59 = vpack.c.b16 %v52, %v51
    %v60 = vpack.c.b16 %v54, %v53
    %v61 = vpack.c.b16 %v56, %v55
    %v62 = vpack.c.b16 %v58, %v57
    %vm67 = vcmask 523264
    %v69 = vsel %vm67, %v29, 0
    %v72 = vsel %vm67, %v30, 0
    %74 = vmatpush.bf16.msra.mxu0 0
    %75 = vmatpush.bf16.msra.mxu0 0
    %76 = vmatpush.bf16.msra.mxu0 0
    %77 = vmatpush.bf16.msra.mxu0 0
    %78 = vmatpush.bf16.msra.mxu0 %v62
    %79 = vmatpush.bf16.msra.mxu0 %v61
    %80 = vmatpush.bf16.msra.mxu0 %v60
    %81 = vmatpush.bf16.msra.mxu0 %v59
    %82 = vmatmul.bf16.gmra.mxu0 %v69
    %v83 = vpop.f32.mrf.mxu0
    %v84 = vadd.f32 %v41, %v83
    %v85 = vpop.f32.mrf.mxu0
    %v86 = vadd.f32 %v41, %v85
    %87 = vmatmul.bf16.gmra.mxu0 %v72
    %v88 = vpop.f32.mrf.mxu0
    %v89 = vadd.f32 %v41, %v88
    %v90 = vpop.f32.mrf.mxu0
    %v91 = vadd.f32 %v41, %v90
    %92 = vdwg.mxu0
    %v93 = vxor.u32 %v84, 2147483648
    %v94 = vxor.u32 %v86, 2147483648
    %v95 = vxor.u32 %v89, 2147483648
    %v96 = vxor.u32 %v91, 2147483648
    %v97 = vmul.f32 %v93, 1.442695
    %v98 = vpow.pop %v97
    %v99 = vmul.f32 %v94, 1.442695
    %v100 = vpow.pop %v99
    %v101 = vmul.f32 %v95, 1.442695
    %v102 = vpow.pop %v101
    %v103 = vmul.f32 %v96, 1.442695
    %v104 = vpow.pop %v103
    %v105 = vadd.f32 %v98, 1.0
    %v106 = vadd.f32 %v100, 1.0
    %v107 = vadd.f32 %v102, 1.0
    %v108 = vadd.f32 %v104, 1.0
    %v109 = vrcp.pop %v105
    %v110 = vmul.f32 %v105, %v109
    %v111 = vsub.f32 1.0, %v110
    %v112 = vmul.f32 %v109, %v111
    %v113 = vadd.f32 %v109, %v112
    %vm114 = vweird.f32 %v105
    %vm115 = vweird.f32 %v109
    %vm116 = vmor %vm114, %vm115
    %v117 = vsel %vm116, %v109, %v113
    %v118 = vand.u32 2147483647, %v105
    %vm119 = vcmp.eq.f32.partialorder %v118, 8.507059e+37
    %v120 = vand.u32 %v105, 2147483648
    %v121 = vor.u32 1.1754944e-38, %v120
    %v122 = vsel %vm119, %v121, %v117
    %v123 = vmul.f32 1.0, %v122
    %v124 = vrcp.pop %v106
    %v125 = vmul.f32 %v106, %v124
    %v126 = vsub.f32 1.0, %v125
    %v127 = vmul.f32 %v124, %v126
    %v128 = vadd.f32 %v124, %v127
    %vm129 = vweird.f32 %v106
    %vm130 = vweird.f32 %v124
    %vm131 = vmor %vm129, %vm130
    %v132 = vsel %vm131, %v124, %v128
    %v133 = vand.u32 2147483647, %v106
    %vm134 = vcmp.eq.f32.partialorder %v133, 8.507059e+37
    %v135 = vand.u32 %v106, 2147483648
    %v136 = vor.u32 1.1754944e-38, %v135
    %v137 = vsel %vm134, %v136, %v132
    %v138 = vmul.f32 1.0, %v137
    %v139 = vrcp.pop %v107
    %v140 = vmul.f32 %v107, %v139
    %v141 = vsub.f32 1.0, %v140
    %v142 = vmul.f32 %v139, %v141
    %v143 = vadd.f32 %v139, %v142
    %vm144 = vweird.f32 %v107
    %vm145 = vweird.f32 %v139
    %vm146 = vmor %vm144, %vm145
    %v147 = vsel %vm146, %v139, %v143
    %v148 = vand.u32 2147483647, %v107
    %vm149 = vcmp.eq.f32.partialorder %v148, 8.507059e+37
    %v150 = vand.u32 %v107, 2147483648
    %v151 = vor.u32 1.1754944e-38, %v150
    %v152 = vsel %vm149, %v151, %v147
    %v153 = vmul.f32 1.0, %v152
    %v154 = vrcp.pop %v108
    %v155 = vmul.f32 %v108, %v154
    %v156 = vsub.f32 1.0, %v155
    %v157 = vmul.f32 %v154, %v156
    %v158 = vadd.f32 %v154, %v157
    %vm159 = vweird.f32 %v108
    %vm160 = vweird.f32 %v154
    %vm161 = vmor %vm159, %vm160
    %v162 = vsel %vm161, %v154, %v158
    %v163 = vand.u32 2147483647, %v108
    %vm164 = vcmp.eq.f32.partialorder %v163, 8.507059e+37
    %v165 = vand.u32 %v108, 2147483648
    %v166 = vor.u32 1.1754944e-38, %v165
    %v167 = vsel %vm164, %v166, %v162
    %v168 = vmul.f32 1.0, %v167
    %v169 = vmul.f32 %v123, %v25
    %v170 = vmul.f32 %v138, %v26
    %v171 = vmul.f32 %v153, %v27
    %v172 = vmul.f32 %v168, %v28
    %v173 = vpack.c.bf16 %v170, %v169
    %v174 = vpack.c.bf16 %v172, %v171
    %v175 = vld [vmem:[%s3] sm:$0xf]
    %v176 = vld [vmem:[%s3 + $0x4] sm:$0xf]
    %v177 = vld [vmem:[%s3 + $0x8] sm:$0xf]
    %v178 = vld [vmem:[%s3 + $0xc] sm:$0xf]
    %v179 = vld [vmem:[%s3 + $0x10] sm:$0xf]
    %v180 = vld [vmem:[%s3 + $0x14] sm:$0xf]
    %v181 = vld [vmem:[%s3 + $0x18] sm:$0xf]
    %v182 = vld [vmem:[%s3 + $0x1c] sm:$0xf]
    %v183 = vld [vmem:[%s5] sm:$0x1]
    %v185 = vperm.slane %v183, 0
    %v195 = vunpack.c.l.b16 %v175
    %v196 = vunpack.c.l.b16 %v176
    %v197 = vunpack.c.l.b16 %v177
    %v198 = vunpack.c.l.b16 %v178
    %v199 = vunpack.c.l.b16 %v179
    %v200 = vunpack.c.l.b16 %v180
    %v201 = vunpack.c.l.b16 %v181
    %v202 = vunpack.c.l.b16 %v182
    %v203 = vpack.c.b16 %v196, %v195
    %v204 = vpack.c.b16 %v198, %v197
    %v205 = vpack.c.b16 %v200, %v199
    %v206 = vpack.c.b16 %v202, %v201
    %v212 = vsel %vm67, %v173, 0
    %v215 = vsel %vm67, %v174, 0
    %217 = vmatpush.bf16.msra.mxu0 0
    %218 = vmatpush.bf16.msra.mxu0 0
    %219 = vmatpush.bf16.msra.mxu0 0
    %220 = vmatpush.bf16.msra.mxu0 0
    %221 = vmatpush.bf16.msra.mxu0 %v206
    %222 = vmatpush.bf16.msra.mxu0 %v205
    %223 = vmatpush.bf16.msra.mxu0 %v204
    %224 = vmatpush.bf16.msra.mxu0 %v203
    %225 = vmatmul.bf16.gmra.mxu0 %v212
    %v226 = vpop.f32.mrf.mxu0
    %v227 = vadd.f32 %v185, %v226
    %v228 = vpop.f32.mrf.mxu0
    %v229 = vadd.f32 %v185, %v228
    %230 = vmatmul.bf16.gmra.mxu0 %v215
    %v231 = vpop.f32.mrf.mxu0
    %v232 = vadd.f32 %v185, %v231
    %v233 = vpop.f32.mrf.mxu0
    %v234 = vadd.f32 %v185, %v233
    %235 = vdwg.mxu0
    %236 = vst [vmem:[#allocation2] sm:$0xff] %v227
    %237 = vst [vmem:[#allocation2 + $0x8] sm:$0xff] %v229
    %238 = vst [vmem:[#allocation2 + $0x10] sm:$0xff] %v232
    %239 = vst [vmem:[#allocation2 + $0x18] sm:$0xff] %v234
    %v240 = vld [vmem:[%s4] sm:$0xf]
    %v241 = vld [vmem:[%s4 + $0x4] sm:$0xf]
    %v242 = vld [vmem:[%s4 + $0x8] sm:$0xf]
    %v243 = vld [vmem:[%s4 + $0xc] sm:$0xf]
    %v244 = vld [vmem:[#allocation2] sm:$0xff]
    %v249 = vunpack.c.l.b16 %v240
    %v250 = vunpack.c.l.b16 %v241
    %v251 = vunpack.c.l.b16 %v242
    %v252 = vunpack.c.l.b16 %v243
    %v253 = vpack.c.b16 %v250, %v249
    %v254 = vpack.c.b16 %v252, %v251
    %vm257 = vcmask 261120
    %v259 = vsel %vm257, 0, 0
    %261 = vmatpush.bf16.msra.mxu0 0
    %262 = vmatpush.bf16.msra.mxu0 0
    %263 = vmatpush.bf16.msra.mxu0 0
    %264 = vmatpush.bf16.msra.mxu0 0
    %265 = vmatpush.bf16.msra.mxu0 0
    %266 = vmatpush.bf16.msra.mxu0 0
    %267 = vmatpush.bf16.msra.mxu0 %v254
    %268 = vmatpush.bf16.msra.mxu0 %v253
    %269 = vmatmul.bf16.gmra.mxu0 %v259
    %v270 = vpop.f32.mrf.mxu0
    %v271 = vadd.f32 0.0, %v270
    %v272 = vpop.f32.mrf.mxu0
    %273 = vdwg.mxu0
    %v274 = vadd.f32 %v244, %v271
    %v275 = vxor.u32 %v274, 2147483648
    %v276 = vmul.f32 %v275, 1.442695
    %v277 = vpow.pop %v276
    %v278 = vadd.f32 %v277, 1.0
    %v279 = vrcp.pop %v278
    %v280 = vmul.f32 %v278, %v279
    %v281 = vsub.f32 1.0, %v280
    %v282 = vmul.f32 %v279, %v281
    %v283 = vadd.f32 %v279, %v282
    %vm284 = vweird.f32 %v278
    %vm285 = vweird.f32 %v279
    %vm286 = vmor %vm284, %vm285
    %v287 = vsel %vm286, %v279, %v283
    %v288 = vand.u32 2147483647, %v278
    %vm289 = vcmp.eq.f32.partialorder %v288, 8.507059e+37
    %v290 = vand.u32 %v278, 2147483648
    %v291 = vor.u32 1.1754944e-38, %v290
    %v292 = vsel %vm289, %v291, %v287
    %v293 = vmul.f32 1.0, %v292
    %v294 = vtanh.pop %v274
    %v295 = vmul.f32 %v293, 0.0
    %297 = vrot.lane.b32.xlu0 %v294, 64
    %v298 = vpop.permute.xlu0 %297
    %v300 = vmul.f32 %v293, %v298
    %302 = vrot.lane.b32.xlu0 %v300, 32
    %v303 = vpop.permute.xlu0 %302
    %v305 = vadd.f32 %v295, %v303
    %v306 = vtanh.pop %v305
    %308 = vrot.lane.b32.xlu0 %v306, 64
    %v309 = vpop.permute.xlu0 %308
    %v311 = vmul.f32 %v293, %v309
    %s312 = scalar_lea.vmem [#allocation2], 8
    %v313 = vld [vmem:[%s312] sm:$0xff]
    %v314 = vpack.c.bf16 %v311, %v311
    %316 = vrot.lane.b32.xlu0 %v314, 32
    %v317 = vpop.permute.xlu0 %316
    %v319 = vsel %vm257, %v317, 0
    %321 = vmatpush.bf16.msra.mxu0 0
    %322 = vmatpush.bf16.msra.mxu0 0
    %323 = vmatpush.bf16.msra.mxu0 0
    %324 = vmatpush.bf16.msra.mxu0 0
    %325 = vmatpush.bf16.msra.mxu0 0
    %326 = vmatpush.bf16.msra.mxu0 0
    %327 = vmatpush.bf16.msra.mxu0 %v254
    %328 = vmatpush.bf16.msra.mxu0 %v253
    %329 = vmatmul.bf16.gmra.mxu0 %v319
    %v330 = vpop.f32.mrf.mxu0
    %v331 = vadd.f32 0.0, %v330
    %v332 = vpop.f32.mrf.mxu0
    %333 = vdwg.mxu0
    %v334 = vadd.f32 %v313, %v331
    %v335 = vxor.u32 %v334, 2147483648
    %v336 = vmul.f32 %v335, 1.442695
    %v337 = vpow.pop %v336
    %v338 = vadd.f32 %v337, 1.0
    %v339 = vrcp.pop %v338
    %v340 = vmul.f32 %v338, %v339
    %v341 = vsub.f32 1.0, %v340
    %v342 = vmul.f32 %v339, %v341
    %v343 = vadd.f32 %v339, %v342
    %vm344 = vweird.f32 %v338
    %vm345 = vweird.f32 %v339
    %vm346 = vmor %vm344, %vm345
    %v347 = vsel %vm346, %v339, %v343
    %v348 = vand.u32 2147483647, %v338
    %vm349 = vcmp.eq.f32.partialorder %v348, 8.507059e+37
    %v350 = vand.u32 %v338, 2147483648
    %v351 = vor.u32 1.1754944e-38, %v350
    %v352 = vsel %vm349, %v351, %v347
    %v353 = vmul.f32 1.0, %v352
    %v354 = vtanh.pop %v334
    %v355 = vmul.f32 %v353, %v305
    %357 = vrot.lane.b32.xlu0 %v354, 64
    %v358 = vpop.permute.xlu0 %357
    %v360 = vmul.f32 %v353, %v358
    %362 = vrot.lane.b32.xlu0 %v360, 32
    %v363 = vpop.permute.xlu0 %362
    %v365 = vadd.f32 %v355, %v363
    %v366 = vtanh.pop %v365
    %368 = vrot.lane.b32.xlu0 %v366, 64
    %v369 = vpop.permute.xlu0 %368
    %v371 = vmul.f32 %v353, %v369
    %s372 = scalar_lea.vmem [#allocation2], 16
    %v373 = vld [vmem:[%s372] sm:$0xff]
    %v374 = vpack.c.bf16 %v371, %v371
    %376 = vrot.lane.b32.xlu0 %v374, 32
    %v377 = vpop.permute.xlu0 %376
    %v379 = vsel %vm257, %v377, 0
    %381 = vmatpush.bf16.msra.mxu0 0
    %382 = vmatpush.bf16.msra.mxu0 0
    %383 = vmatpush.bf16.msra.mxu0 0
    %384 = vmatpush.bf16.msra.mxu0 0
    %385 = vmatpush.bf16.msra.mxu0 0
    %386 = vmatpush.bf16.msra.mxu0 0
    %387 = vmatpush.bf16.msra.mxu0 %v254
    %388 = vmatpush.bf16.msra.mxu0 %v253
    %389 = vmatmul.bf16.gmra.mxu0 %v379
    %v390 = vpop.f32.mrf.mxu0
    %v391 = vadd.f32 0.0, %v390
    %v392 = vpop.f32.mrf.mxu0
    %393 = vdwg.mxu0
    %v394 = vadd.f32 %v373, %v391
    %v395 = vxor.u32 %v394, 2147483648
    %v396 = vmul.f32 %v395, 1.442695
    %v397 = vpow.pop %v396
    %v398 = vadd.f32 %v397, 1.0
    %v399 = vrcp.pop %v398
    %v400 = vmul.f32 %v398, %v399
    %v401 = vsub.f32 1.0, %v400
    %v402 = vmul.f32 %v399, %v401
    %v403 = vadd.f32 %v399, %v402
    %vm404 = vweird.f32 %v398
    %vm405 = vweird.f32 %v399
    %vm406 = vmor %vm404, %vm405
    %v407 = vsel %vm406, %v399, %v403
    %v408 = vand.u32 2147483647, %v398
    %vm409 = vcmp.eq.f32.partialorder %v408, 8.507059e+37
    %v410 = vand.u32 %v398, 2147483648
    %v411 = vor.u32 1.1754944e-38, %v410
    %v412 = vsel %vm409, %v411, %v407
    %v413 = vmul.f32 1.0, %v412
    %v414 = vtanh.pop %v394
    %v415 = vmul.f32 %v413, %v365
    %417 = vrot.lane.b32.xlu0 %v414, 64
    %v418 = vpop.permute.xlu0 %417
    %v420 = vmul.f32 %v413, %v418
    %422 = vrot.lane.b32.xlu0 %v420, 32
    %v423 = vpop.permute.xlu0 %422
    %v425 = vadd.f32 %v415, %v423
    %v426 = vtanh.pop %v425
    %428 = vrot.lane.b32.xlu0 %v426, 64
    %v429 = vpop.permute.xlu0 %428
    %v431 = vmul.f32 %v413, %v429
    %s432 = scalar_lea.vmem [#allocation2], 24
    %v433 = vld [vmem:[%s432] sm:$0xff]
    %v434 = vpack.c.bf16 %v431, %v431
    %436 = vrot.lane.b32.xlu0 %v434, 32
    %v437 = vpop.permute.xlu0 %436
    %v439 = vsel %vm257, %v437, 0
    %441 = vmatpush.bf16.msra.mxu0 0
    %442 = vmatpush.bf16.msra.mxu0 0
    %443 = vmatpush.bf16.msra.mxu0 0
    %444 = vmatpush.bf16.msra.mxu0 0
    %445 = vmatpush.bf16.msra.mxu0 0
    %446 = vmatpush.bf16.msra.mxu0 0
    %447 = vmatpush.bf16.msra.mxu0 %v254
    %448 = vmatpush.bf16.msra.mxu0 %v253
    %449 = vmatmul.bf16.gmra.mxu0 %v439
    %v450 = vpop.f32.mrf.mxu0
    %v451 = vadd.f32 0.0, %v450
    %v452 = vpop.f32.mrf.mxu0
    %453 = vdwg.mxu0
    %v454 = vadd.f32 %v433, %v451
    %v455 = vxor.u32 %v454, 2147483648
    %v456 = vmul.f32 %v455, 1.442695
    %v457 = vpow.pop %v456
    %v458 = vadd.f32 %v457, 1.0
    %v459 = vrcp.pop %v458
    %v460 = vmul.f32 %v458, %v459
    %v461 = vsub.f32 1.0, %v460
    %v462 = vmul.f32 %v459, %v461
    %v463 = vadd.f32 %v459, %v462
    %vm464 = vweird.f32 %v458
    %vm465 = vweird.f32 %v459
    %vm466 = vmor %vm464, %vm465
    %v467 = vsel %vm466, %v459, %v463
    %v468 = vand.u32 2147483647, %v458
    %vm469 = vcmp.eq.f32.partialorder %v468, 8.507059e+37
    %v470 = vand.u32 %v458, 2147483648
    %v471 = vor.u32 1.1754944e-38, %v470
    %v472 = vsel %vm469, %v471, %v467
    %v473 = vmul.f32 1.0, %v472
    %v474 = vtanh.pop %v454
    %v475 = vmul.f32 %v473, %v425
    %477 = vrot.lane.b32.xlu0 %v474, 64
    %v478 = vpop.permute.xlu0 %477
    %v480 = vmul.f32 %v473, %v478
    %482 = vrot.lane.b32.xlu0 %v480, 32
    %v483 = vpop.permute.xlu0 %482
    %v485 = vadd.f32 %v475, %v483
    %v486 = vtanh.pop %v485
    %488 = vrot.lane.b32.xlu0 %v486, 64
    %v489 = vpop.permute.xlu0 %488
    %v491 = vmul.f32 %v473, %v489
    %493 = vrot.lane.b32.xlu0 %v491, 32
    %v494 = vpop.permute.xlu0 %493
    %496 = vst.msk [vmem:[#allocation3] sm:$0xff] %vm257, %v494
    // Predicated region
    $region26: #{tfcncap_buttle_lstm_forward.3} parent=1 // pred_check
      _
    $region27: #{tfcncap_buttle_lstm_forward.3} parent=1 // pred_check_branch
      %498 = sbr.rel (0) target = $region29
    $region28: #{tfcncap_buttle_lstm_forward.3} parent=1 // pred_region
      %500 = vsyncadd [#allocation4], 0
      %s502 = sshll.u32 [#allocation3], 4
      %s503 = int_to_ptr.vmem [resolvable:$true] %s502
      %s504 = sshll.u32 %s6, 4
      %s505 = int_to_ptr.hbm [resolvable:$true] %s504
      %507 = dma.vmem_to_hbm [thread:$0]  %s503, 128, %s505, [#allocation4]
    $region29: #{tfcncap_buttle_lstm_forward.3} parent=1 // pred_fallthru
      _
    // Predicated region
    $region30: #{tfcncap_buttle_lstm_forward.3} parent=1 // pred_check
      _
    $region31: #{tfcncap_buttle_lstm_forward.3} parent=1 // pred_check_branch
      %509 = sbr.rel (0) target = $region33
    $region32: #{tfcncap_buttle_lstm_forward.3} parent=1 // pred_region
      %511 = dma.done [#allocation4], 128
    $region33: #{tfcncap_buttle_lstm_forward.3} parent=1 // pred_fallthru
      _
    %512 = vsyncpa [#allocation4], 1

// kernel: tfcncap_buttle_lstm_forward.2
$region0: #{tfcncap_buttle_lstm_forward.2}
  #allocation0 [shape = 'u32[]', space=smem, size = 0x4, offset = 0x4, fixed_abs, tag = 'smem constant byte address 0x4 - core index']
  #allocation1 [shape = 'u32[72,128]{1,0:T(1,128)}', space=vmem, size = 0x9000, scoped, tag = 'internal scratch']
  %s0 = inlined_call_operand.vmem [shape: bf16[9,4096], index: 0, kind: input, shape index: {}]
  %s1 = inlined_call_operand.vmem [shape: bf16[40,9], index: 1, kind: input, shape index: {}]
  %s2 = inlined_call_operand.vmem [shape: f32[40,1], index: 2, kind: input, shape index: {}]
  %s3 = inlined_call_operand.vmem [shape: f32[40,1], index: 3, kind: input, shape index: {}]
  %s4 = inlined_call_operand.vmem [shape: bf16[2048,8], index: 4, kind: input, shape index: {}]
  %s5 = inlined_call_operand.vmem [shape: bf16[40,40], index: 5, kind: input, shape index: {}]
  %s6 = inlined_call_operand.vmem [shape: bf16[32,40], index: 6, kind: input, shape index: {}]
  %s7 = inlined_call_operand.vmem [shape: f32[32,1], index: 7, kind: input, shape index: {}]
  %s8 = inlined_call_operand.vmem [shape: f32[2,32,8], index: 8, kind: output, shape index: {}]
  %s9 = sld [smem:[#allocation0]]
  $region88: #{tfcncap_buttle_lstm_forward.2} parent=0
    _
  %s11 = ssub.s32 1, %s9
  %s12 = scalar_select 0, %s11, %s9
  $region1: #{tfcncap_buttle_lstm_forward.2} parent=0
    #allocation2 [shape = 'u8[131072]{0}', space=vmem, size = 0x20000, scoped, tag = 'input window, operand 0']
    loop: start=0, step=1, limit=4
    $region2: #{tfcncap_buttle_lstm_forward.2} parent=1 // loop_pre_header
      _
    $region3: #{tfcncap_buttle_lstm_forward.2} parent=1 // loop_header
      %s14 = sphi 0, %s18
      %p15 = scmp.ge.s32.totalorder %s14, 4
      %s24 = sphi 0, %s26
      %s27 = sphi 0, %s24
      %s28 = sphi 0, %s27
      %s44 = sphi 0, %s28
      %s48 = sphi 0, %s48
      %s50 = sphi 0, %s48
      %s51 = sphi 0, %s50
      %s65 = sphi 0, %s51
      %s69 = sphi 0, %s69
      %s71 = sphi 0, %s69
      %s72 = sphi 0, %s71
      %s86 = sphi 0, %s72
      %s90 = sphi 0, %s90
      %s92 = sphi 0, %s90
      %s93 = sphi 0, %s92
      %s107 = sphi 0, %s93
      %s111 = sphi 0, %s111
      %s113 = sphi 0, %s111
      %s114 = sphi 0, %s113
      %s128 = sphi 0, %s114
      %s132 = sphi 0, %s132
      %s134 = sphi 0, %s132
      %s135 = sphi 0, %s134
      %s149 = sphi 0, %s135
      %s153 = sphi 0, %s153
      %s155 = sphi 0, %s153
      %s156 = sphi 0, %s155
      %s170 = sphi 0, %s156
      %s174 = sphi 0, %s174
      %s176 = sphi 0, %s174
      %s177 = sphi 0, %s176
      %s191 = sphi 0, %s177
      %s197 = sphi 0, %s199
      %s200 = sphi 0, %s197
      %s201 = sphi 0, %s200
      %s217 = sphi 0, %s201
    $region4: #{tfcncap_buttle_lstm_forward.2} parent=1 // loop_header_branch
      %17 = sbr.rel (%p15) target = $region8
    $region5: #{tfcncap_buttle_lstm_forward.2} parent=1 // loop_body
      %s19 = ssub.s32 %s14, 1
      %s20 = ssub.s32 %s14, 2
      %s21 = sadd.s32 %s14, 1
      %s22 = ssub.s32 %s14, %s21
      %p23 = scmp.eq.s32.totalorder %s22, 0
      %s25 = sadd.s32 %s24, 1
      %s26 = scalar_select %p23, %s24, %s25
      %p29 = pneg %p23
      %p30 = scmp.eq.s32.totalorder %s14, 1
      %p31 = por %p29, %p30
      %p32 = scmp.ne.s32.totalorder %s24, %s27
      %p33 = scmp.eq.s32.totalorder %s14, 0
      %p34 = por %p32, %p33
      %p35 = scmp.ne.s32.totalorder %s24, %s27
      %p36 = scmp.eq.s32.totalorder %s19, 1
      %p37 = por %p35, %p36
      %p38 = scmp.ne.s32.totalorder %s27, %s28
      %p39 = scmp.eq.s32.totalorder %s19, 0
      %p40 = por %p38, %p39
      %p41 = scmp.ne.s32.totalorder %s27, %s28
      %p42 = scmp.eq.s32.totalorder %s20, 1
      %p43 = por %p41, %p42
      %p45 = scmp.ne.s32.totalorder %s28, %s44
      %p46 = scmp.eq.s32.totalorder %s20, 0
      %p47 = por %p45, %p46
      %s49 = sadd.s32 %s48, 1
      %p52 = scmp.eq.s32.totalorder %s14, 1
      %p53 = scmp.ne.s32.totalorder %s48, %s50
      %p54 = scmp.eq.s32.totalorder %s14, 0
      %p55 = por %p53, %p54
      %p56 = scmp.ne.s32.totalorder %s48, %s50
      %p57 = scmp.eq.s32.totalorder %s19, 1
      %p58 = por %p56, %p57
      %p59 = scmp.ne.s32.totalorder %s50, %s51
      %p60 = scmp.eq.s32.totalorder %s19, 0
      %p61 = por %p59, %p60
      %p62 = scmp.ne.s32.totalorder %s50, %s51
      %p63 = scmp.eq.s32.totalorder %s20, 1
      %p64 = por %p62, %p63
      %p66 = scmp.ne.s32.totalorder %s51, %s65
      %p67 = scmp.eq.s32.totalorder %s20, 0
      %p68 = por %p66, %p67
      %s70 = sadd.s32 %s69, 1
      %p73 = scmp.eq.s32.totalorder %s14, 1
      %p74 = scmp.ne.s32.totalorder %s69, %s71
      %p75 = scmp.eq.s32.totalorder %s14, 0
      %p76 = por %p74, %p75
      %p77 = scmp.ne.s32.totalorder %s69, %s71
      %p78 = scmp.eq.s32.totalorder %s19, 1
      %p79 = por %p77, %p78
      %p80 = scmp.ne.s32.totalorder %s71, %s72
      %p81 = scmp.eq.s32.totalorder %s19, 0
      %p82 = por %p80, %p81
      %p83 = scmp.ne.s32.totalorder %s71, %s72
      %p84 = scmp.eq.s32.totalorder %s20, 1
      %p85 = por %p83, %p84
      %p87 = scmp.ne.s32.totalorder %s72, %s86
      %p88 = scmp.eq.s32.totalorder %s20, 0
      %p89 = por %p87, %p88
      %s91 = sadd.s32 %s90, 1
      %p94 = scmp.eq.s32.totalorder %s14, 1
      %p95 = scmp.ne.s32.totalorder %s90, %s92
      %p96 = scmp.eq.s32.totalorder %s14, 0
      %p97 = por %p95, %p96
      %p98 = scmp.ne.s32.totalorder %s90, %s92
      %p99 = scmp.eq.s32.totalorder %s19, 1
      %p100 = por %p98, %p99
      %p101 = scmp.ne.s32.totalorder %s92, %s93
      %p102 = scmp.eq.s32.totalorder %s19, 0
      %p103 = por %p101, %p102
      %p104 = scmp.ne.s32.totalorder %s92, %s93
      %p105 = scmp.eq.s32.totalorder %s20, 1
      %p106 = por %p104, %p105
      %p108 = scmp.ne.s32.totalorder %s93, %s107
      %p109 = scmp.eq.s32.totalorder %s20, 0
      %p110 = por %p108, %p109
      %s112 = sadd.s32 %s111, 1
      %p115 = scmp.eq.s32.totalorder %s14, 1
      %p116 = scmp.ne.s32.totalorder %s111, %s113
      %p117 = scmp.eq.s32.totalorder %s14, 0
      %p118 = por %p116, %p117
      %p119 = scmp.ne.s32.totalorder %s111, %s113
      %p120 = scmp.eq.s32.totalorder %s19, 1
      %p121 = por %p119, %p120
      %p122 = scmp.ne.s32.totalorder %s113, %s114
      %p123 = scmp.eq.s32.totalorder %s19, 0
      %p124 = por %p122, %p123
      %p125 = scmp.ne.s32.totalorder %s113, %s114
      %p126 = scmp.eq.s32.totalorder %s20, 1
      %p127 = por %p125, %p126
      %p129 = scmp.ne.s32.totalorder %s114, %s128
      %p130 = scmp.eq.s32.totalorder %s20, 0
      %p131 = por %p129, %p130
      %s133 = sadd.s32 %s132, 1
      %p136 = scmp.eq.s32.totalorder %s14, 1
      %p137 = scmp.ne.s32.totalorder %s132, %s134
      %p138 = scmp.eq.s32.totalorder %s14, 0
      %p139 = por %p137, %p138
      %p140 = scmp.ne.s32.totalorder %s132, %s134
      %p141 = scmp.eq.s32.totalorder %s19, 1
      %p142 = por %p140, %p141
      %p143 = scmp.ne.s32.totalorder %s134, %s135
      %p144 = scmp.eq.s32.totalorder %s19, 0
      %p145 = por %p143, %p144
      %p146 = scmp.ne.s32.totalorder %s134, %s135
      %p147 = scmp.eq.s32.totalorder %s20, 1
      %p148 = por %p146, %p147
      %p150 = scmp.ne.s32.totalorder %s135, %s149
      %p151 = scmp.eq.s32.totalorder %s20, 0
      %p152 = por %p150, %p151
      %s154 = sadd.s32 %s153, 1
      %p157 = scmp.eq.s32.totalorder %s14, 1
      %p158 = scmp.ne.s32.totalorder %s153, %s155
      %p159 = scmp.eq.s32.totalorder %s14, 0
      %p160 = por %p158, %p159
      %p161 = scmp.ne.s32.totalorder %s153, %s155
      %p162 = scmp.eq.s32.totalorder %s19, 1
      %p163 = por %p161, %p162
      %p164 = scmp.ne.s32.totalorder %s155, %s156
      %p165 = scmp.eq.s32.totalorder %s19, 0
      %p166 = por %p164, %p165
      %p167 = scmp.ne.s32.totalorder %s155, %s156
      %p168 = scmp.eq.s32.totalorder %s20, 1
      %p169 = por %p167, %p168
      %p171 = scmp.ne.s32.totalorder %s156, %s170
      %p172 = scmp.eq.s32.totalorder %s20, 0
      %p173 = por %p171, %p172
      %s175 = sadd.s32 %s174, 1
      %p178 = scmp.eq.s32.totalorder %s14, 1
      %p179 = scmp.ne.s32.totalorder %s174, %s176
      %p180 = scmp.eq.s32.totalorder %s14, 0
      %p181 = por %p179, %p180
      %p182 = scmp.ne.s32.totalorder %s174, %s176
      %p183 = scmp.eq.s32.totalorder %s19, 1
      %p184 = por %p182, %p183
      %p185 = scmp.ne.s32.totalorder %s176, %s177
      %p186 = scmp.eq.s32.totalorder %s19, 0
      %p187 = por %p185, %p186
      %p188 = scmp.ne.s32.totalorder %s176, %s177
      %p189 = scmp.eq.s32.totalorder %s20, 1
      %p190 = por %p188, %p189
      %p192 = scmp.ne.s32.totalorder %s177, %s191
      %p193 = scmp.eq.s32.totalorder %s20, 0
      %p194 = por %p192, %p193
      %s195 = ssub.s32 %s14, %s21
      %p196 = scmp.eq.s32.totalorder %s195, 0
      %s198 = sadd.s32 %s197, 1
      %s199 = scalar_select %p196, %s197, %s198
      %p202 = pneg %p196
      %p203 = scmp.eq.s32.totalorder %s14, 1
      %p204 = por %p202, %p203
      %p205 = scmp.ne.s32.totalorder %s197, %s200
      %p206 = scmp.eq.s32.totalorder %s14, 0
      %p207 = por %p205, %p206
      %p208 = scmp.ne.s32.totalorder %s197, %s200
      %p209 = scmp.eq.s32.totalorder %s19, 1
      %p210 = por %p208, %p209
      %p211 = scmp.ne.s32.totalorder %s200, %s201
      %p212 = scmp.eq.s32.totalorder %s19, 0
      %p213 = por %p211, %p212
      %p214 = scmp.ne.s32.totalorder %s200, %s201
      %p215 = scmp.eq.s32.totalorder %s20, 1
      %p216 = por %p214, %p215
      %p218 = scmp.ne.s32.totalorder %s201, %s217
      %p219 = scmp.eq.s32.totalorder %s20, 0
      %p220 = por %p218, %p219
      %p221 = scmp.le.s32.totalorder 1, %s14
      %p222 = scmp.lt.s32.totalorder %s14, 3
      %p223 = pnand %p221, %p222
      %p224 = pneg %p223
      // Predicated region
      $region9: #{tfcncap_buttle_lstm_forward.2} parent=5 // pred_check
        _
      $region10: #{tfcncap_buttle_lstm_forward.2} parent=5 // pred_check_branch
        %226 = sbr.rel (%p223) target = $region12
      $region11: #{tfcncap_buttle_lstm_forward.2} parent=5 // pred_region
        %s227 = ssub.s32 %s14, 1
        // Predicated region
        $region13: #{tfcncap_buttle_lstm_forward.2} parent=11 // pred_check
          %p228 = pneg %p61
        $region14: #{tfcncap_buttle_lstm_forward.2} parent=11 // pred_check_branch
          %230 = sbr.rel (%p228) target = $region16
        $region15: #{tfcncap_buttle_lstm_forward.2} parent=11 // pred_region
          _
        $region16: #{tfcncap_buttle_lstm_forward.2} parent=11 // pred_fallthru
          _
        // Predicated region
        $region17: #{tfcncap_buttle_lstm_forward.2} parent=11 // pred_check
          %p231 = pneg %p82
        $region18: #{tfcncap_buttle_lstm_forward.2} parent=11 // pred_check_branch
          %233 = sbr.rel (%p231) target = $region20
        $region19: #{tfcncap_buttle_lstm_forward.2} parent=11 // pred_region
          _
        $region20: #{tfcncap_buttle_lstm_forward.2} parent=11 // pred_fallthru
          _
        // Predicated region
        $region21: #{tfcncap_buttle_lstm_forward.2} parent=11 // pred_check
          %p234 = pneg %p103
        $region22: #{tfcncap_buttle_lstm_forward.2} parent=11 // pred_check_branch
          %236 = sbr.rel (%p234) target = $region24
        $region23: #{tfcncap_buttle_lstm_forward.2} parent=11 // pred_region
          _
        $region24: #{tfcncap_buttle_lstm_forward.2} parent=11 // pred_fallthru
          _
        // Predicated region
        $region25: #{tfcncap_buttle_lstm_forward.2} parent=11 // pred_check
          %p237 = pneg %p124
        $region26: #{tfcncap_buttle_lstm_forward.2} parent=11 // pred_check_branch
          %239 = sbr.rel (%p237) target = $region28
        $region27: #{tfcncap_buttle_lstm_forward.2} parent=11 // pred_region
          _
        $region28: #{tfcncap_buttle_lstm_forward.2} parent=11 // pred_fallthru
          _
        // Predicated region
        $region29: #{tfcncap_buttle_lstm_forward.2} parent=11 // pred_check
          %p240 = pneg %p145
        $region30: #{tfcncap_buttle_lstm_forward.2} parent=11 // pred_check_branch
          %242 = sbr.rel (%p240) target = $region32
        $region31: #{tfcncap_buttle_lstm_forward.2} parent=11 // pred_region
          _
        $region32: #{tfcncap_buttle_lstm_forward.2} parent=11 // pred_fallthru
          _
        // Predicated region
        $region33: #{tfcncap_buttle_lstm_forward.2} parent=11 // pred_check
          %p243 = pneg %p166
        $region34: #{tfcncap_buttle_lstm_forward.2} parent=11 // pred_check_branch
          %245 = sbr.rel (%p243) target = $region36
        $region35: #{tfcncap_buttle_lstm_forward.2} parent=11 // pred_region
          _
        $region36: #{tfcncap_buttle_lstm_forward.2} parent=11 // pred_fallthru
          _
        // Predicated region
        $region37: #{tfcncap_buttle_lstm_forward.2} parent=11 // pred_check
          %p246 = pneg %p187
        $region38: #{tfcncap_buttle_lstm_forward.2} parent=11 // pred_check_branch
          %248 = sbr.rel (%p246) target = $region40
        $region39: #{tfcncap_buttle_lstm_forward.2} parent=11 // pred_region
          _
        $region40: #{tfcncap_buttle_lstm_forward.2} parent=11 // pred_fallthru
          _
      $region12: #{tfcncap_buttle_lstm_forward.2} parent=5 // pred_fallthru
        _
      %p249 = scmp.lt.s32.totalorder %s14, 2
      // Predicated region
      $region41: #{tfcncap_buttle_lstm_forward.2} parent=5 // pred_check
        %p250 = pneg %p249
      $region42: #{tfcncap_buttle_lstm_forward.2} parent=5 // pred_check_branch
        %252 = sbr.rel (%p250) target = $region44
      $region43: #{tfcncap_buttle_lstm_forward.2} parent=5 // pred_region
        // Predicated region
        $region45: #{tfcncap_buttle_lstm_forward.2} parent=43 // pred_check
          %p253 = pneg %p34
        $region46: #{tfcncap_buttle_lstm_forward.2} parent=43 // pred_check_branch
          %255 = sbr.rel (%p253) target = $region48
        $region47: #{tfcncap_buttle_lstm_forward.2} parent=43 // pred_region
          %s256 = sand.u32 %s24, 1
          %s257 = sand.u32 %s24, 1
          %s258 = smul.addr %s257, 128
          %s259 = scalar_lea.vmem [#allocation2], %s258
          %s260 = smul.u32 16, %s14
          %s261 = smul.addr %s260, 4
          %s262 = scalar_lea.vmem %s0, %s261
          // Predicated region
          $region49: #{tfcncap_buttle_lstm_forward.2} parent=47 // pred_check
            _
          $region50: #{tfcncap_buttle_lstm_forward.2} parent=47 // pred_check_branch
            %264 = sbr.rel (0) target = $region52
          $region51: #{tfcncap_buttle_lstm_forward.2} parent=47 // pred_region
            // Predicated region
            $region53: #{tfcncap_buttle_lstm_forward.2} parent=51 // pred_check
              _
            $region54: #{tfcncap_buttle_lstm_forward.2} parent=51 // pred_check_branch
              %266 = sbr.rel (0) target = $region56
            $region55: #{tfcncap_buttle_lstm_forward.2} parent=51 // pred_region
              loop: start=0, step=1, limit=1
              $region57: #{tfcncap_buttle_lstm_forward.2} parent=55 // loop_pre_header
                _
              $region58: #{tfcncap_buttle_lstm_forward.2} parent=55 // loop_header
                %s268 = sphi 0, %s272
                %p269 = scmp.ge.s32.totalorder %s268, 1
                %s273 = sphi %s262, %s262
                %s274 = sphi %s259, %s259
              $region59: #{tfcncap_buttle_lstm_forward.2} parent=55 // loop_header_branch
                %271 = sbr.rel (%p269) target = $region63
              $region60: #{tfcncap_buttle_lstm_forward.2} parent=55 // loop_body
                %v275 = vld [vmem:[%s273] sm:$0xff]
                %276 = vst [vmem:[%s274] sm:$0xff] %v275
                %v277 = vld [vmem:[%s273 + $0x8] sm:$0xff]
                %278 = vst [vmem:[%s274 + $0x8] sm:$0xff] %v277
                %v279 = vld [vmem:[%s273 + $0x10] sm:$0xff]
                %280 = vst [vmem:[%s274 + $0x10] sm:$0xff] %v279
                %v281 = vld [vmem:[%s273 + $0x18] sm:$0xff]
                %282 = vst [vmem:[%s274 + $0x18] sm:$0xff] %v281
                %v283 = vld [vmem:[%s273 + $0x20] sm:$0xff]
                %284 = vst [vmem:[%s274 + $0x20] sm:$0xff] %v283
                %v285 = vld [vmem:[%s273 + $0x28] sm:$0xff]
                %286 = vst [vmem:[%s274 + $0x28] sm:$0xff] %v285
                %v287 = vld [vmem:[%s273 + $0x30] sm:$0xff]
                %288 = vst [vmem:[%s274 + $0x30] sm:$0xff] %v287
                %v289 = vld [vmem:[%s273 + $0x38] sm:$0xff]
                %290 = vst [vmem:[%s274 + $0x38] sm:$0xff] %v289
                %v291 = vld [vmem:[%s273 + $0x80] sm:$0xff]
                %292 = vst [vmem:[%s274 + $0x40] sm:$0xff] %v291
                %v293 = vld [vmem:[%s273 + $0x88] sm:$0xff]
                %294 = vst [vmem:[%s274 + $0x48] sm:$0xff] %v293
                %v295 = vld [vmem:[%s273 + $0x90] sm:$0xff]
                %296 = vst [vmem:[%s274 + $0x50] sm:$0xff] %v295
                %v297 = vld [vmem:[%s273 + $0x98] sm:$0xff]
                %298 = vst [vmem:[%s274 + $0x58] sm:$0xff] %v297
                %v299 = vld [vmem:[%s273 + $0xa0] sm:$0xff]
                %300 = vst [vmem:[%s274 + $0x60] sm:$0xff] %v299
                %v301 = vld [vmem:[%s273 + $0xa8] sm:$0xff]
                %302 = vst [vmem:[%s274 + $0x68] sm:$0xff] %v301
                %v303 = vld [vmem:[%s273 + $0xb0] sm:$0xff]
                %304 = vst [vmem:[%s274 + $0x70] sm:$0xff] %v303
                %v305 = vld [vmem:[%s273 + $0xb8] sm:$0xff]
                %306 = vst [vmem:[%s274 + $0x78] sm:$0xff] %v305
              $region61: #{tfcncap_buttle_lstm_forward.2} parent=55 // loop_footer
                %s272 = sadd.s32 1, %s268
              $region62: #{tfcncap_buttle_lstm_forward.2} parent=55 // loop_footer_branch
                %267 = sbr.rel target = $region58
              $region63: #{tfcncap_buttle_lstm_forward.2} parent=55 // loop_exit
                _
            $region56: #{tfcncap_buttle_lstm_forward.2} parent=51 // pred_fallthru
              _
            // Predicated region
            $region64: #{tfcncap_buttle_lstm_forward.2} parent=51 // pred_check
              _
            $region65: #{tfcncap_buttle_lstm_forward.2} parent=51 // pred_check_branch
              %308 = sbr.rel target = $region67
            $region66: #{tfcncap_buttle_lstm_forward.2} parent=51 // pred_region
              _
            $region67: #{tfcncap_buttle_lstm_forward.2} parent=51 // pred_fallthru
              _
          $region52: #{tfcncap_buttle_lstm_forward.2} parent=47 // pred_fallthru
            _
          %309 = vnop
        $region48: #{tfcncap_buttle_lstm_forward.2} parent=43 // pred_fallthru
          _
      $region44: #{tfcncap_buttle_lstm_forward.2} parent=5 // pred_fallthru
        _
      %p310 = scmp.le.s32.totalorder 1, %s14
      %p311 = scmp.lt.s32.totalorder %s14, 3
      %p312 = pnand %p310, %p311
      %p313 = pneg %p312
      // Predicated region
      $region68: #{tfcncap_buttle_lstm_forward.2} parent=5 // pred_check
        _
      $region69: #{tfcncap_buttle_lstm_forward.2} parent=5 // pred_check_branch
        %315 = sbr.rel (%p312) target = $region71
      $region70: #{tfcncap_buttle_lstm_forward.2} parent=5 // pred_region
        %s316 = ssub.s32 %s14, 1
        %s317 = sand.u32 %s27, 1
        %s318 = sand.u32 %s27, 1
        %s319 = smul.addr %s318, 128
        %s320 = scalar_lea.vmem [#allocation2], %s319
        // Predicated region
        $region72: #{tfcncap_buttle_lstm_forward.2} parent=70 // pred_check
          %p321 = pneg %p40
        $region73: #{tfcncap_buttle_lstm_forward.2} parent=70 // pred_check_branch
          %323 = sbr.rel (%p321) target = $region75
        $region74: #{tfcncap_buttle_lstm_forward.2} parent=70 // pred_region
          _
        $region75: #{tfcncap_buttle_lstm_forward.2} parent=70 // pred_fallthru
          _
        %s324 = sand.u32 %s27, 1
        %s325 = sand.u32 %s27, 1
        %s326 = smul.addr %s325, 128
        %s327 = scalar_lea.vmem [#allocation2], %s326
        %p328 = pneg %p40
        %p329 = pneg %p37
        %p330 = pneg %p61
        %p331 = pneg %p58
        %p332 = pneg %p82
        %p333 = pneg %p79
        %p334 = pneg %p103
        %p335 = pneg %p100
        %p336 = pneg %p124
        %p337 = pneg %p121
        %p338 = pneg %p145
        %p339 = pneg %p142
        %p340 = pneg %p166
        %p341 = pneg %p163
        %p342 = pneg %p187
        %p343 = pneg %p184
        %p344 = pneg %p213
        %p345 = pneg %p210
        %p346 = scmp.lt.s32.totalorder %s19, 1
        %s347 = scalar_select %p346, %s19, 1
        %s348 = smul.addr %s347, 4
        %s349 = smul.addr %s348, 8
        %s350 = scalar_lea.vmem %s8, %s349
        %s351 = smul.u32 16, %s19
        %p352 = scmp.lt.s32.totalorder %s19, 1
        %s353 = scalar_select %p352, %s19, 1
        %s354 = smul.addr %s353, 4
        %s355 = smul.addr %s354, 8
        %s356 = scalar_lea.vmem %s8, %s355
        %v358 = vld [vmem:[%s1] sm:$0xf]
        %v359 = vld [vmem:[%s1 + $0x4] sm:$0xf]
        %v360 = vld [vmem:[%s1 + $0x8] sm:$0xf]
        %v361 = vld [vmem:[%s1 + $0xc] sm:$0xf]
        %v362 = vld [vmem:[%s1 + $0x10] sm:$0xf]
        %v363 = vld [vmem:[%s320] sm:$0xff]
        %v364 = vld [vmem:[%s320 + $0x8] sm:$0xff]
        %v365 = vld [vmem:[%s320 + $0x10] sm:$0xff]
        %v366 = vld [vmem:[%s320 + $0x18] sm:$0xff]
        %v367 = vld [vmem:[%s320 + $0x20] sm:$0xff]
        %v368 = vld [vmem:[%s320 + $0x28] sm:$0xff]
        %v369 = vld [vmem:[%s320 + $0x30] sm:$0xff]
        %v370 = vld [vmem:[%s320 + $0x38] sm:$0xff]
        %v371 = vld [vmem:[%s320 + $0x40] sm:$0x11]
        %v372 = vld [vmem:[%s320 + $0x48] sm:$0x11]
        %v373 = vld [vmem:[%s320 + $0x50] sm:$0x11]
        %v374 = vld [vmem:[%s320 + $0x58] sm:$0x11]
        %v375 = vld [vmem:[%s320 + $0x60] sm:$0x11]
        %v376 = vld [vmem:[%s320 + $0x68] sm:$0x11]
        %v377 = vld [vmem:[%s320 + $0x70] sm:$0x11]
        %v378 = vld [vmem:[%s320 + $0x78] sm:$0x11]
        %v379 = vld [vmem:[%s2] sm:$0xff]
        %v380 = vld [vmem:[%s2 + $0x8] sm:$0xff]
        %v381 = vld [vmem:[%s2 + $0x10] sm:$0xff]
        %v382 = vld [vmem:[%s2 + $0x18] sm:$0xff]
        %v383 = vld [vmem:[%s2 + $0x20] sm:$0xff]
        %385 = vset.pattern.permute.xlu0 0
        %386 = vperm.xlu0 %385, %v379
        %v387 = vpop.permute.xlu0 %386
        %390 = vset.pattern.permute.xlu0 0
        %391 = vperm.xlu0 %390, %v380
        %v392 = vpop.permute.xlu0 %391
        %395 = vset.pattern.permute.xlu0 0
        %396 = vperm.xlu0 %395, %v381
        %v397 = vpop.permute.xlu0 %396
        %400 = vset.pattern.permute.xlu0 0
        %401 = vperm.xlu0 %400, %v382
        %v402 = vpop.permute.xlu0 %401
        %405 = vset.pattern.permute.xlu0 0
        %406 = vperm.xlu0 %405, %v383
        %v407 = vpop.permute.xlu0 %406
        %v414 = vunpack.c.l.b16 %v358
        %v415 = vunpack.c.l.b16 %v359
        %v416 = vunpack.c.l.b16 %v360
        %v417 = vunpack.c.l.b16 %v361
        %v418 = vunpack.c.l.b16 %v362
        %v419 = vpack.c.b16 %v415, %v414
        %v420 = vpack.c.b16 %v417, %v416
        %v421 = vpack.c.b16 %v418, %v418
        %v438 = vunpack.c.l.b16 %v363
        %v439 = vunpack.c.h.b16 %v363
        %v440 = vunpack.c.l.b16 %v364
        %v441 = vunpack.c.h.b16 %v364
        %v442 = vunpack.c.l.b16 %v365
        %v443 = vunpack.c.h.b16 %v365
        %v444 = vunpack.c.l.b16 %v366
        %v445 = vunpack.c.h.b16 %v366
        %v446 = vunpack.c.l.b16 %v367
        %v447 = vunpack.c.h.b16 %v367
        %v448 = vunpack.c.l.b16 %v368
        %v449 = vunpack.c.h.b16 %v368
        %v450 = vunpack.c.l.b16 %v369
        %v451 = vunpack.c.h.b16 %v369
        %v452 = vunpack.c.l.b16 %v370
        %v453 = vunpack.c.h.b16 %v370
        %v454 = vunpack.c.l.b16 %v371
        %v455 = vunpack.c.h.b16 %v371
        %v456 = vunpack.c.l.b16 %v372
        %v457 = vunpack.c.h.b16 %v372
        %v458 = vunpack.c.l.b16 %v373
        %v459 = vunpack.c.h.b16 %v373
        %v460 = vunpack.c.l.b16 %v374
        %v461 = vunpack.c.h.b16 %v374
        %v462 = vunpack.c.l.b16 %v375
        %v463 = vunpack.c.h.b16 %v375
        %v464 = vunpack.c.l.b16 %v376
        %v465 = vunpack.c.h.b16 %v376
        %v466 = vunpack.c.l.b16 %v377
        %v467 = vunpack.c.h.b16 %v377
        %v468 = vunpack.c.l.b16 %v378
        %v469 = vunpack.c.h.b16 %v378
        %v470 = vpack.c.b16 %v454, %v438
        %v471 = vpack.c.b16 %v455, %v439
        %v472 = vpack.c.b16 %v456, %v440
        %v473 = vpack.c.b16 %v457, %v441
        %v474 = vpack.c.b16 %v458, %v442
        %v475 = vpack.c.b16 %v459, %v443
        %v476 = vpack.c.b16 %v460, %v444
        %v477 = vpack.c.b16 %v461, %v445
        %v478 = vpack.c.b16 %v462, %v446
        %v479 = vpack.c.b16 %v463, %v447
        %v480 = vpack.c.b16 %v464, %v448
        %v481 = vpack.c.b16 %v465, %v449
        %v482 = vpack.c.b16 %v466, %v450
        %v483 = vpack.c.b16 %v467, %v451
        %v484 = vpack.c.b16 %v468, %v452
        %v485 = vpack.c.b16 %v469, %v453
        %vm486 = vcmask 72704
        %v488 = vsel %vm486, %v419, 0
        %v491 = vsel %vm486, %v420, 0
        %v494 = vsel %vm486, %v421, 0
        %vm496 = vcmask 1043456
        %vm497 = vcmask 1044480
        %v498 = vsel %vm496, 4294967295, 65535
        %v499 = vsel %vm497, %v498, 0
        %v501 = vand.u32 %v470, %v499
        %v504 = vand.u32 %v471, %v499
        %v507 = vand.u32 %v472, %v499
        %v510 = vand.u32 %v473, %v499
        %v513 = vand.u32 %v474, %v499
        %v516 = vand.u32 %v475, %v499
        %v519 = vand.u32 %v476, %v499
        %v522 = vand.u32 %v477, %v499
        %v525 = vand.u32 %v478, %v499
        %v528 = vand.u32 %v479, %v499
        %v531 = vand.u32 %v480, %v499
        %v534 = vand.u32 %v481, %v499
        %v537 = vand.u32 %v482, %v499
        %v540 = vand.u32 %v483, %v499
        %v543 = vand.u32 %v484, %v499
        %v546 = vand.u32 %v485, %v499
        %548 = vmatpush.bf16.msra.mxu0 0
        %549 = vmatpush.bf16.msra.mxu0 0
        %550 = vmatpush.bf16.msra.mxu0 0
        %551 = vmatpush.bf16.msra.mxu0 0
        %552 = vmatpush.bf16.msra.mxu0 0
        %553 = vmatpush.bf16.msra.mxu0 0
        %554 = vmatpush.bf16.msra.mxu0 0
        %555 = vmatpush.bf16.msra.mxu0 %v501
        %556 = vmatmul.bf16.gmra.mxu0 %v488
        %v557 = vpop.f32.mrf.mxu0
        %v558 = vadd.f32 %v387, %v557
        %v559 = vpop.f32.mrf.mxu0
        %v560 = vadd.f32 %v392, %v559
        %561 = vmatmul.bf16.gmra.mxu0 %v491
        %v562 = vpop.f32.mrf.mxu0
        %v563 = vadd.f32 %v397, %v562
        %v564 = vpop.f32.mrf.mxu0
        %v565 = vadd.f32 %v402, %v564
        %566 = vmatmul.bf16.gmra.mxu0 %v494
        %v567 = vpop.f32.mrf.mxu0
        %v568 = vadd.f32 %v407, %v567
        %v569 = vpop.f32.mrf.mxu0
        %570 = vdwg.mxu0
        %571 = vmatpush.bf16.msra.mxu0 0
        %572 = vmatpush.bf16.msra.mxu0 0
        %573 = vmatpush.bf16.msra.mxu0 0
        %574 = vmatpush.bf16.msra.mxu0 0
        %575 = vmatpush.bf16.msra.mxu0 0
        %576 = vmatpush.bf16.msra.mxu0 0
        %577 = vmatpush.bf16.msra.mxu0 0
        %578 = vmatpush.bf16.msra.mxu0 %v504
        %579 = vmatmul.bf16.gmra.mxu0 %v488
        %v580 = vpop.f32.mrf.mxu0
        %v581 = vadd.f32 %v387, %v580
        %v582 = vpop.f32.mrf.mxu0
        %v583 = vadd.f32 %v392, %v582
        %584 = vmatmul.bf16.gmra.mxu0 %v491
        %v585 = vpop.f32.mrf.mxu0
        %v586 = vadd.f32 %v397, %v585
        %v587 = vpop.f32.mrf.mxu0
        %v588 = vadd.f32 %v402, %v587
        %589 = vmatmul.bf16.gmra.mxu0 %v494
        %v590 = vpop.f32.mrf.mxu0
        %v591 = vadd.f32 %v407, %v590
        %v592 = vpop.f32.mrf.mxu0
        %593 = vdwg.mxu0
        %594 = vmatpush.bf16.msra.mxu0 0
        %595 = vmatpush.bf16.msra.mxu0 0
        %596 = vmatpush.bf16.msra.mxu0 0
        %597 = vmatpush.bf16.msra.mxu0 0
        %598 = vmatpush.bf16.msra.mxu0 0
        %599 = vmatpush.bf16.msra.mxu0 0
        %600 = vmatpush.bf16.msra.mxu0 0
        %601 = vmatpush.bf16.msra.mxu0 %v507
        %602 = vmatmul.bf16.gmra.mxu0 %v488
        %v603 = vpop.f32.mrf.mxu0
        %v604 = vadd.f32 %v387, %v603
        %v605 = vpop.f32.mrf.mxu0
        %v606 = vadd.f32 %v392, %v605
        %607 = vmatmul.bf16.gmra.mxu0 %v491
        %v608 = vpop.f32.mrf.mxu0
        %v609 = vadd.f32 %v397, %v608
        %v610 = vpop.f32.mrf.mxu0
        %v611 = vadd.f32 %v402, %v610
        %612 = vmatmul.bf16.gmra.mxu0 %v494
        %v613 = vpop.f32.mrf.mxu0
        %v614 = vadd.f32 %v407, %v613
        %v615 = vpop.f32.mrf.mxu0
        %616 = vdwg.mxu0
        %617 = vmatpush.bf16.msra.mxu0 0
        %618 = vmatpush.bf16.msra.mxu0 0
        %619 = vmatpush.bf16.msra.mxu0 0
        %620 = vmatpush.bf16.msra.mxu0 0
        %621 = vmatpush.bf16.msra.mxu0 0
        %622 = vmatpush.bf16.msra.mxu0 0
        %623 = vmatpush.bf16.msra.mxu0 0
        %624 = vmatpush.bf16.msra.mxu0 %v510
        %625 = vmatmul.bf16.gmra.mxu0 %v488
        %v626 = vpop.f32.mrf.mxu0
        %v627 = vadd.f32 %v387, %v626
        %v628 = vpop.f32.mrf.mxu0
        %v629 = vadd.f32 %v392, %v628
        %630 = vmatmul.bf16.gmra.mxu0 %v491
        %v631 = vpop.f32.mrf.mxu0
        %v632 = vadd.f32 %v397, %v631
        %v633 = vpop.f32.mrf.mxu0
        %v634 = vadd.f32 %v402, %v633
        %635 = vmatmul.bf16.gmra.mxu0 %v494
        %v636 = vpop.f32.mrf.mxu0
        %v637 = vadd.f32 %v407, %v636
        %v638 = vpop.f32.mrf.mxu0
        %639 = vdwg.mxu0
        %640 = vmatpush.bf16.msra.mxu0 0
        %641 = vmatpush.bf16.msra.mxu0 0
        %642 = vmatpush.bf16.msra.mxu0 0
        %643 = vmatpush.bf16.msra.mxu0 0
        %644 = vmatpush.bf16.msra.mxu0 0
        %645 = vmatpush.bf16.msra.mxu0 0
        %646 = vmatpush.bf16.msra.mxu0 0
        %647 = vmatpush.bf16.msra.mxu0 %v513
        %648 = vmatmul.bf16.gmra.mxu0 %v488
        %v649 = vpop.f32.mrf.mxu0
        %v650 = vadd.f32 %v387, %v649
        %v651 = vpop.f32.mrf.mxu0
        %v652 = vadd.f32 %v392, %v651
        %653 = vmatmul.bf16.gmra.mxu0 %v491
        %v654 = vpop.f32.mrf.mxu0
        %v655 = vadd.f32 %v397, %v654
        %v656 = vpop.f32.mrf.mxu0
        %v657 = vadd.f32 %v402, %v656
        %658 = vmatmul.bf16.gmra.mxu0 %v494
        %v659 = vpop.f32.mrf.mxu0
        %v660 = vadd.f32 %v407, %v659
        %v661 = vpop.f32.mrf.mxu0
        %662 = vdwg.mxu0
        %663 = vmatpush.bf16.msra.mxu0 0
        %664 = vmatpush.bf16.msra.mxu0 0
        %665 = vmatpush.bf16.msra.mxu0 0
        %666 = vmatpush.bf16.msra.mxu0 0
        %667 = vmatpush.bf16.msra.mxu0 0
        %668 = vmatpush.bf16.msra.mxu0 0
        %669 = vmatpush.bf16.msra.mxu0 0
        %670 = vmatpush.bf16.msra.mxu0 %v516
        %671 = vmatmul.bf16.gmra.mxu0 %v488
        %v672 = vpop.f32.mrf.mxu0
        %v673 = vadd.f32 %v387, %v672
        %v674 = vpop.f32.mrf.mxu0
        %v675 = vadd.f32 %v392, %v674
        %676 = vmatmul.bf16.gmra.mxu0 %v491
        %v677 = vpop.f32.mrf.mxu0
        %v678 = vadd.f32 %v397, %v677
        %v679 = vpop.f32.mrf.mxu0
        %v680 = vadd.f32 %v402, %v679
        %681 = vmatmul.bf16.gmra.mxu0 %v494
        %v682 = vpop.f32.mrf.mxu0
        %v683 = vadd.f32 %v407, %v682
        %v684 = vpop.f32.mrf.mxu0
        %685 = vdwg.mxu0
        %686 = vmatpush.bf16.msra.mxu0 0
        %687 = vmatpush.bf16.msra.mxu0 0
        %688 = vmatpush.bf16.msra.mxu0 0
        %689 = vmatpush.bf16.msra.mxu0 0
        %690 = vmatpush.bf16.msra.mxu0 0
        %691 = vmatpush.bf16.msra.mxu0 0
        %692 = vmatpush.bf16.msra.mxu0 0
        %693 = vmatpush.bf16.msra.mxu0 %v519
        %694 = vmatmul.bf16.gmra.mxu0 %v488
        %v695 = vpop.f32.mrf.mxu0
        %v696 = vadd.f32 %v387, %v695
        %v697 = vpop.f32.mrf.mxu0
        %v698 = vadd.f32 %v392, %v697
        %699 = vmatmul.bf16.gmra.mxu0 %v491
        %v700 = vpop.f32.mrf.mxu0
        %v701 = vadd.f32 %v397, %v700
        %v702 = vpop.f32.mrf.mxu0
        %v703 = vadd.f32 %v402, %v702
        %704 = vmatmul.bf16.gmra.mxu0 %v494
        %v705 = vpop.f32.mrf.mxu0
        %v706 = vadd.f32 %v407, %v705
        %v707 = vpop.f32.mrf.mxu0
        %708 = vdwg.mxu0
        %709 = vmatpush.bf16.msra.mxu0 0
        %710 = vmatpush.bf16.msra.mxu0 0
        %711 = vmatpush.bf16.msra.mxu0 0
        %712 = vmatpush.bf16.msra.mxu0 0
        %713 = vmatpush.bf16.msra.mxu0 0
        %714 = vmatpush.bf16.msra.mxu0 0
        %715 = vmatpush.bf16.msra.mxu0 0
        %716 = vmatpush.bf16.msra.mxu0 %v522
        %717 = vmatmul.bf16.gmra.mxu0 %v488
        %v718 = vpop.f32.mrf.mxu0
        %v719 = vadd.f32 %v387, %v718
        %v720 = vpop.f32.mrf.mxu0
        %v721 = vadd.f32 %v392, %v720
        %722 = vmatmul.bf16.gmra.mxu0 %v491
        %v723 = vpop.f32.mrf.mxu0
        %v724 = vadd.f32 %v397, %v723
        %v725 = vpop.f32.mrf.mxu0
        %v726 = vadd.f32 %v402, %v725
        %727 = vmatmul.bf16.gmra.mxu0 %v494
        %v728 = vpop.f32.mrf.mxu0
        %v729 = vadd.f32 %v407, %v728
        %v730 = vpop.f32.mrf.mxu0
        %731 = vdwg.mxu0
        %732 = vmatpush.bf16.msra.mxu0 0
        %733 = vmatpush.bf16.msra.mxu0 0
        %734 = vmatpush.bf16.msra.mxu0 0
        %735 = vmatpush.bf16.msra.mxu0 0
        %736 = vmatpush.bf16.msra.mxu0 0
        %737 = vmatpush.bf16.msra.mxu0 0
        %738 = vmatpush.bf16.msra.mxu0 0
        %739 = vmatpush.bf16.msra.mxu0 %v525
        %740 = vmatmul.bf16.gmra.mxu0 %v488
        %v741 = vpop.f32.mrf.mxu0
        %v742 = vadd.f32 %v387, %v741
        %v743 = vpop.f32.mrf.mxu0
        %v744 = vadd.f32 %v392, %v743
        %745 = vmatmul.bf16.gmra.mxu0 %v491
        %v746 = vpop.f32.mrf.mxu0
        %v747 = vadd.f32 %v397, %v746
        %v748 = vpop.f32.mrf.mxu0
        %v749 = vadd.f32 %v402, %v748
        %750 = vmatmul.bf16.gmra.mxu0 %v494
        %v751 = vpop.f32.mrf.mxu0
        %v752 = vadd.f32 %v407, %v751
        %v753 = vpop.f32.mrf.mxu0
        %754 = vdwg.mxu0
        %755 = vmatpush.bf16.msra.mxu0 0
        %756 = vmatpush.bf16.msra.mxu0 0
        %757 = vmatpush.bf16.msra.mxu0 0
        %758 = vmatpush.bf16.msra.mxu0 0
        %759 = vmatpush.bf16.msra.mxu0 0
        %760 = vmatpush.bf16.msra.mxu0 0
        %761 = vmatpush.bf16.msra.mxu0 0
        %762 = vmatpush.bf16.msra.mxu0 %v528
        %763 = vmatmul.bf16.gmra.mxu0 %v488
        %v764 = vpop.f32.mrf.mxu0
        %v765 = vadd.f32 %v387, %v764
        %v766 = vpop.f32.mrf.mxu0
        %v767 = vadd.f32 %v392, %v766
        %768 = vmatmul.bf16.gmra.mxu0 %v491
        %v769 = vpop.f32.mrf.mxu0
        %v770 = vadd.f32 %v397, %v769
        %v771 = vpop.f32.mrf.mxu0
        %v772 = vadd.f32 %v402, %v771
        %773 = vmatmul.bf16.gmra.mxu0 %v494
        %v774 = vpop.f32.mrf.mxu0
        %v775 = vadd.f32 %v407, %v774
        %v776 = vpop.f32.mrf.mxu0
        %777 = vdwg.mxu0
        %778 = vmatpush.bf16.msra.mxu0 0
        %779 = vmatpush.bf16.msra.mxu0 0
        %780 = vmatpush.bf16.msra.mxu0 0
        %781 = vmatpush.bf16.msra.mxu0 0
        %782 = vmatpush.bf16.msra.mxu0 0
        %783 = vmatpush.bf16.msra.mxu0 0
        %784 = vmatpush.bf16.msra.mxu0 0
        %785 = vmatpush.bf16.msra.mxu0 %v531
        %786 = vmatmul.bf16.gmra.mxu0 %v488
        %v787 = vpop.f32.mrf.mxu0
        %v788 = vadd.f32 %v387, %v787
        %v789 = vpop.f32.mrf.mxu0
        %v790 = vadd.f32 %v392, %v789
        %791 = vmatmul.bf16.gmra.mxu0 %v491
        %v792 = vpop.f32.mrf.mxu0
        %v793 = vadd.f32 %v397, %v792
        %v794 = vpop.f32.mrf.mxu0
        %v795 = vadd.f32 %v402, %v794
        %796 = vmatmul.bf16.gmra.mxu0 %v494
        %v797 = vpop.f32.mrf.mxu0
        %v798 = vadd.f32 %v407, %v797
        %v799 = vpop.f32.mrf.mxu0
        %800 = vdwg.mxu0
        %801 = vmatpush.bf16.msra.mxu0 0
        %802 = vmatpush.bf16.msra.mxu0 0
        %803 = vmatpush.bf16.msra.mxu0 0
        %804 = vmatpush.bf16.msra.mxu0 0
        %805 = vmatpush.bf16.msra.mxu0 0
        %806 = vmatpush.bf16.msra.mxu0 0
        %807 = vmatpush.bf16.msra.mxu0 0
        %808 = vmatpush.bf16.msra.mxu0 %v534
        %809 = vmatmul.bf16.gmra.mxu0 %v488
        %v810 = vpop.f32.mrf.mxu0
        %v811 = vadd.f32 %v387, %v810
        %v812 = vpop.f32.mrf.mxu0
        %v813 = vadd.f32 %v392, %v812
        %814 = vmatmul.bf16.gmra.mxu0 %v491
        %v815 = vpop.f32.mrf.mxu0
        %v816 = vadd.f32 %v397, %v815
        %v817 = vpop.f32.mrf.mxu0
        %v818 = vadd.f32 %v402, %v817
        %819 = vmatmul.bf16.gmra.mxu0 %v494
        %v820 = vpop.f32.mrf.mxu0
        %v821 = vadd.f32 %v407, %v820
        %v822 = vpop.f32.mrf.mxu0
        %823 = vdwg.mxu0
        %824 = vmatpush.bf16.msra.mxu0 0
        %825 = vmatpush.bf16.msra.mxu0 0
        %826 = vmatpush.bf16.msra.mxu0 0
        %827 = vmatpush.bf16.msra.mxu0 0
        %828 = vmatpush.bf16.msra.mxu0 0
        %829 = vmatpush.bf16.msra.mxu0 0
        %830 = vmatpush.bf16.msra.mxu0 0
        %831 = vmatpush.bf16.msra.mxu0 %v537
        %832 = vmatmul.bf16.gmra.mxu0 %v488
        %v833 = vpop.f32.mrf.mxu0
        %v834 = vadd.f32 %v387, %v833
        %v835 = vpop.f32.mrf.mxu0
        %v836 = vadd.f32 %v392, %v835
        %837 = vmatmul.bf16.gmra.mxu0 %v491
        %v838 = vpop.f32.mrf.mxu0
        %v839 = vadd.f32 %v397, %v838
        %v840 = vpop.f32.mrf.mxu0
        %v841 = vadd.f32 %v402, %v840
        %842 = vmatmul.bf16.gmra.mxu0 %v494
        %v843 = vpop.f32.mrf.mxu0
        %v844 = vadd.f32 %v407, %v843
        %v845 = vpop.f32.mrf.mxu0
        %846 = vdwg.mxu0
        %847 = vmatpush.bf16.msra.mxu0 0
        %848 = vmatpush.bf16.msra.mxu0 0
        %849 = vmatpush.bf16.msra.mxu0 0
        %850 = vmatpush.bf16.msra.mxu0 0
        %851 = vmatpush.bf16.msra.mxu0 0
        %852 = vmatpush.bf16.msra.mxu0 0
        %853 = vmatpush.bf16.msra.mxu0 0
        %854 = vmatpush.bf16.msra.mxu0 %v540
        %855 = vmatmul.bf16.gmra.mxu0 %v488
        %v856 = vpop.f32.mrf.mxu0
        %v857 = vadd.f32 %v387, %v856
        %v858 = vpop.f32.mrf.mxu0
        %v859 = vadd.f32 %v392, %v858
        %860 = vmatmul.bf16.gmra.mxu0 %v491
        %v861 = vpop.f32.mrf.mxu0
        %v862 = vadd.f32 %v397, %v861
        %v863 = vpop.f32.mrf.mxu0
        %v864 = vadd.f32 %v402, %v863
        %865 = vmatmul.bf16.gmra.mxu0 %v494
        %v866 = vpop.f32.mrf.mxu0
        %v867 = vadd.f32 %v407, %v866
        %v868 = vpop.f32.mrf.mxu0
        %869 = vdwg.mxu0
        %870 = vmatpush.bf16.msra.mxu0 0
        %871 = vmatpush.bf16.msra.mxu0 0
        %872 = vmatpush.bf16.msra.mxu0 0
        %873 = vmatpush.bf16.msra.mxu0 0
        %874 = vmatpush.bf16.msra.mxu0 0
        %875 = vmatpush.bf16.msra.mxu0 0
        %876 = vmatpush.bf16.msra.mxu0 0
        %877 = vmatpush.bf16.msra.mxu0 %v543
        %878 = vmatmul.bf16.gmra.mxu0 %v488
        %v879 = vpop.f32.mrf.mxu0
        %v880 = vadd.f32 %v387, %v879
        %v881 = vpop.f32.mrf.mxu0
        %v882 = vadd.f32 %v392, %v881
        %883 = vmatmul.bf16.gmra.mxu0 %v491
        %v884 = vpop.f32.mrf.mxu0
        %v885 = vadd.f32 %v397, %v884
        %v886 = vpop.f32.mrf.mxu0
        %v887 = vadd.f32 %v402, %v886
        %888 = vmatmul.bf16.gmra.mxu0 %v494
        %v889 = vpop.f32.mrf.mxu0
        %v890 = vadd.f32 %v407, %v889
        %v891 = vpop.f32.mrf.mxu0
        %892 = vdwg.mxu0
        %893 = vmatpush.bf16.msra.mxu0 0
        %894 = vmatpush.bf16.msra.mxu0 0
        %895 = vmatpush.bf16.msra.mxu0 0
        %896 = vmatpush.bf16.msra.mxu0 0
        %897 = vmatpush.bf16.msra.mxu0 0
        %898 = vmatpush.bf16.msra.mxu0 0
        %899 = vmatpush.bf16.msra.mxu0 0
        %900 = vmatpush.bf16.msra.mxu0 %v546
        %901 = vmatmul.bf16.gmra.mxu0 %v488
        %v902 = vpop.f32.mrf.mxu0
        %v903 = vadd.f32 %v387, %v902
        %v904 = vpop.f32.mrf.mxu0
        %v905 = vadd.f32 %v392, %v904
        %906 = vmatmul.bf16.gmra.mxu0 %v491
        %v907 = vpop.f32.mrf.mxu0
        %v908 = vadd.f32 %v397, %v907
        %v909 = vpop.f32.mrf.mxu0
        %v910 = vadd.f32 %v402, %v909
        %911 = vmatmul.bf16.gmra.mxu0 %v494
        %v912 = vpop.f32.mrf.mxu0
        %v913 = vadd.f32 %v407, %v912
        %v914 = vpop.f32.mrf.mxu0
        %915 = vdwg.mxu0
        %v916 = vld [vmem:[%s3] sm:$0xff]
        %v917 = vld [vmem:[%s3 + $0x8] sm:$0xff]
        %v918 = vld [vmem:[%s3 + $0x10] sm:$0xff]
        %v919 = vld [vmem:[%s3 + $0x18] sm:$0xff]
        %v920 = vld [vmem:[%s3 + $0x20] sm:$0xff]
        %vm921 = vcmp.gt.f32.partialorder %v916, 0.5
        %vm922 = vcmp.gt.f32.partialorder %v917, 0.5
        %vm923 = vcmp.gt.f32.partialorder %v918, 0.5
        %vm924 = vcmp.gt.f32.partialorder %v919, 0.5
        %vm925 = vcmp.gt.f32.partialorder %v920, 0.5
        %v926 = vmax.f32 %v558, 0.0
        %v927 = vmax.f32 %v581, 0.0
        %v928 = vmax.f32 %v604, 0.0
        %v929 = vmax.f32 %v627, 0.0
        %v930 = vmax.f32 %v650, 0.0
        %v931 = vmax.f32 %v673, 0.0
        %v932 = vmax.f32 %v696, 0.0
        %v933 = vmax.f32 %v719, 0.0
        %v934 = vmax.f32 %v742, 0.0
        %v935 = vmax.f32 %v765, 0.0
        %v936 = vmax.f32 %v788, 0.0
        %v937 = vmax.f32 %v811, 0.0
        %v938 = vmax.f32 %v834, 0.0
        %v939 = vmax.f32 %v857, 0.0
        %v940 = vmax.f32 %v880, 0.0
        %v941 = vmax.f32 %v903, 0.0
        %v942 = vmax.f32 %v560, 0.0
        %v943 = vmax.f32 %v583, 0.0
        %v944 = vmax.f32 %v606, 0.0
        %v945 = vmax.f32 %v629, 0.0
        %v946 = vmax.f32 %v652, 0.0
        %v947 = vmax.f32 %v675, 0.0
        %v948 = vmax.f32 %v698, 0.0
        %v949 = vmax.f32 %v721, 0.0
        %v950 = vmax.f32 %v744, 0.0
        %v951 = vmax.f32 %v767, 0.0
        %v952 = vmax.f32 %v790, 0.0
        %v953 = vmax.f32 %v813, 0.0
        %v954 = vmax.f32 %v836, 0.0
        %v955 = vmax.f32 %v859, 0.0
        %v956 = vmax.f32 %v882, 0.0
        %v957 = vmax.f32 %v905, 0.0
        %v958 = vmax.f32 %v563, 0.0
        %v959 = vmax.f32 %v586, 0.0
        %v960 = vmax.f32 %v609, 0.0
        %v961 = vmax.f32 %v632, 0.0
        %v962 = vmax.f32 %v655, 0.0
        %v963 = vmax.f32 %v678, 0.0
        %v964 = vmax.f32 %v701, 0.0
        %v965 = vmax.f32 %v724, 0.0
        %v966 = vmax.f32 %v747, 0.0
        %v967 = vmax.f32 %v770, 0.0
        %v968 = vmax.f32 %v793, 0.0
        %v969 = vmax.f32 %v816, 0.0
        %v970 = vmax.f32 %v839, 0.0
        %v971 = vmax.f32 %v862, 0.0
        %v972 = vmax.f32 %v885, 0.0
        %v973 = vmax.f32 %v908, 0.0
        %v974 = vmax.f32 %v565, 0.0
        %v975 = vmax.f32 %v588, 0.0
        %v976 = vmax.f32 %v611, 0.0
        %v977 = vmax.f32 %v634, 0.0
        %v978 = vmax.f32 %v657, 0.0
        %v979 = vmax.f32 %v680, 0.0
        %v980 = vmax.f32 %v703, 0.0
        %v981 = vmax.f32 %v726, 0.0
        %v982 = vmax.f32 %v749, 0.0
        %v983 = vmax.f32 %v772, 0.0
        %v984 = vmax.f32 %v795, 0.0
        %v985 = vmax.f32 %v818, 0.0
        %v986 = vmax.f32 %v841, 0.0
        %v987 = vmax.f32 %v864, 0.0
        %v988 = vmax.f32 %v887, 0.0
        %v989 = vmax.f32 %v910, 0.0
        %v990 = vmax.f32 %v568, 0.0
        %v991 = vmax.f32 %v591, 0.0
        %v992 = vmax.f32 %v614, 0.0
        %v993 = vmax.f32 %v637, 0.0
        %v994 = vmax.f32 %v660, 0.0
        %v995 = vmax.f32 %v683, 0.0
        %v996 = vmax.f32 %v706, 0.0
        %v997 = vmax.f32 %v729, 0.0
        %v998 = vmax.f32 %v752, 0.0
        %v999 = vmax.f32 %v775, 0.0
        %v1000 = vmax.f32 %v798, 0.0
        %v1001 = vmax.f32 %v821, 0.0
        %v1002 = vmax.f32 %v844, 0.0
        %v1003 = vmax.f32 %v867, 0.0
        %v1004 = vmax.f32 %v890, 0.0
        %v1005 = vmax.f32 %v913, 0.0
        %v1006 = vsel %vm921, 1, 0
        %v1007 = vsel %vm922, 1, 0
        %v1008 = vsel %vm923, 1, 0
        %v1009 = vsel %vm924, 1, 0
        %v1010 = vsel %vm925, 1, 0
        %1011 = vset.pattern.permute.xlu0 0
        %1012 = vperm.xlu0 %1011, %v1006
        %v1013 = vpop.permute.xlu0 %1012
        %1014 = vset.pattern.permute.xlu0 0
        %1015 = vperm.xlu0 %1014, %v1007
        %v1016 = vpop.permute.xlu0 %1015
        %1017 = vset.pattern.permute.xlu0 0
        %1018 = vperm.xlu0 %1017, %v1008
        %v1019 = vpop.permute.xlu0 %1018
        %1020 = vset.pattern.permute.xlu0 0
        %1021 = vperm.xlu0 %1020, %v1009
        %v1022 = vpop.permute.xlu0 %1021
        %1023 = vset.pattern.permute.xlu0 0
        %1024 = vperm.xlu0 %1023, %v1010
        %v1025 = vpop.permute.xlu0 %1024
        %vm1026 = vcmp.eq.s32.totalorder %v1013, 1
        %vm1027 = vcmp.eq.s32.totalorder %v1016, 1
        %vm1028 = vcmp.eq.s32.totalorder %v1019, 1
        %vm1029 = vcmp.eq.s32.totalorder %v1022, 1
        %vm1030 = vcmp.eq.s32.totalorder %v1025, 1
        %v1031 = vsel %vm1026, %v926, %v558
        %v1032 = vsel %vm1026, %v927, %v581
        %v1033 = vsel %vm1026, %v928, %v604
        %v1034 = vsel %vm1026, %v929, %v627
        %v1035 = vsel %vm1026, %v930, %v650
        %v1036 = vsel %vm1026, %v931, %v673
        %v1037 = vsel %vm1026, %v932, %v696
        %v1038 = vsel %vm1026, %v933, %v719
        %v1039 = vsel %vm1026, %v934, %v742
        %v1040 = vsel %vm1026, %v935, %v765
        %v1041 = vsel %vm1026, %v936, %v788
        %v1042 = vsel %vm1026, %v937, %v811
        %v1043 = vsel %vm1026, %v938, %v834
        %v1044 = vsel %vm1026, %v939, %v857
        %v1045 = vsel %vm1026, %v940, %v880
        %v1046 = vsel %vm1026, %v941, %v903
        %v1047 = vsel %vm1027, %v942, %v560
        %v1048 = vsel %vm1027, %v943, %v583
        %v1049 = vsel %vm1027, %v944, %v606
        %v1050 = vsel %vm1027, %v945, %v629
        %v1051 = vsel %vm1027, %v946, %v652
        %v1052 = vsel %vm1027, %v947, %v675
        %v1053 = vsel %vm1027, %v948, %v698
        %v1054 = vsel %vm1027, %v949, %v721
        %v1055 = vsel %vm1027, %v950, %v744
        %v1056 = vsel %vm1027, %v951, %v767
        %v1057 = vsel %vm1027, %v952, %v790
        %v1058 = vsel %vm1027, %v953, %v813
        %v1059 = vsel %vm1027, %v954, %v836
        %v1060 = vsel %vm1027, %v955, %v859
        %v1061 = vsel %vm1027, %v956, %v882
        %v1062 = vsel %vm1027, %v957, %v905
        %v1063 = vsel %vm1028, %v958, %v563
        %v1064 = vsel %vm1028, %v959, %v586
        %v1065 = vsel %vm1028, %v960, %v609
        %v1066 = vsel %vm1028, %v961, %v632
        %v1067 = vsel %vm1028, %v962, %v655
        %v1068 = vsel %vm1028, %v963, %v678
        %v1069 = vsel %vm1028, %v964, %v701
        %v1070 = vsel %vm1028, %v965, %v724
        %v1071 = vsel %vm1028, %v966, %v747
        %v1072 = vsel %vm1028, %v967, %v770
        %v1073 = vsel %vm1028, %v968, %v793
        %v1074 = vsel %vm1028, %v969, %v816
        %v1075 = vsel %vm1028, %v970, %v839
        %v1076 = vsel %vm1028, %v971, %v862
        %v1077 = vsel %vm1028, %v972, %v885
        %v1078 = vsel %vm1028, %v973, %v908
        %v1079 = vsel %vm1029, %v974, %v565
        %v1080 = vsel %vm1029, %v975, %v588
        %v1081 = vsel %vm1029, %v976, %v611
        %v1082 = vsel %vm1029, %v977, %v634
        %v1083 = vsel %vm1029, %v978, %v657
        %v1084 = vsel %vm1029, %v979, %v680
        %v1085 = vsel %vm1029, %v980, %v703
        %v1086 = vsel %vm1029, %v981, %v726
        %v1087 = vsel %vm1029, %v982, %v749
        %v1088 = vsel %vm1029, %v983, %v772
        %v1089 = vsel %vm1029, %v984, %v795
        %v1090 = vsel %vm1029, %v985, %v818
        %v1091 = vsel %vm1029, %v986, %v841
        %v1092 = vsel %vm1029, %v987, %v864
        %v1093 = vsel %vm1029, %v988, %v887
        %v1094 = vsel %vm1029, %v989, %v910
        %v1095 = vsel %vm1030, %v990, %v568
        %v1096 = vsel %vm1030, %v991, %v591
        %v1097 = vsel %vm1030, %v992, %v614
        %v1098 = vsel %vm1030, %v993, %v637
        %v1099 = vsel %vm1030, %v994, %v660
        %v1100 = vsel %vm1030, %v995, %v683
        %v1101 = vsel %vm1030, %v996, %v706
        %v1102 = vsel %vm1030, %v997, %v729
        %v1103 = vsel %vm1030, %v998, %v752
        %v1104 = vsel %vm1030, %v999, %v775
        %v1105 = vsel %vm1030, %v1000, %v798
        %v1106 = vsel %vm1030, %v1001, %v821
        %v1107 = vsel %vm1030, %v1002, %v844
        %v1108 = vsel %vm1030, %v1003, %v867
        %v1109 = vsel %vm1030, %v1004, %v890
        %v1110 = vsel %vm1030, %v1005, %v913
        %v1111 = vpack.c.bf16 %v1047, %v1031
        %v1112 = vpack.c.bf16 %v1048, %v1032
        %v1113 = vpack.c.bf16 %v1049, %v1033
        %v1114 = vpack.c.bf16 %v1050, %v1034
        %v1115 = vpack.c.bf16 %v1051, %v1035
        %v1116 = vpack.c.bf16 %v1052, %v1036
        %v1117 = vpack.c.bf16 %v1053, %v1037
        %v1118 = vpack.c.bf16 %v1054, %v1038
        %v1119 = vpack.c.bf16 %v1055, %v1039
        %v1120 = vpack.c.bf16 %v1056, %v1040
        %v1121 = vpack.c.bf16 %v1057, %v1041
        %v1122 = vpack.c.bf16 %v1058, %v1042
        %v1123 = vpack.c.bf16 %v1059, %v1043
        %v1124 = vpack.c.bf16 %v1060, %v1044
        %v1125 = vpack.c.bf16 %v1061, %v1045
        %v1126 = vpack.c.bf16 %v1062, %v1046
        %v1127 = vpack.c.bf16 %v1079, %v1063
        %v1128 = vpack.c.bf16 %v1080, %v1064
        %v1129 = vpack.c.bf16 %v1081, %v1065
        %v1130 = vpack.c.bf16 %v1082, %v1066
        %v1131 = vpack.c.bf16 %v1083, %v1067
        %v1132 = vpack.c.bf16 %v1084, %v1068
        %v1133 = vpack.c.bf16 %v1085, %v1069
        %v1134 = vpack.c.bf16 %v1086, %v1070
        %v1135 = vpack.c.bf16 %v1087, %v1071
        %v1136 = vpack.c.bf16 %v1088, %v1072
        %v1137 = vpack.c.bf16 %v1089, %v1073
        %v1138 = vpack.c.bf16 %v1090, %v1074
        %v1139 = vpack.c.bf16 %v1091, %v1075
        %v1140 = vpack.c.bf16 %v1092, %v1076
        %v1141 = vpack.c.bf16 %v1093, %v1077
        %v1142 = vpack.c.bf16 %v1094, %v1078
        %v1143 = vpack.c.bf16 %v1095, %v1095
        %v1144 = vpack.c.bf16 %v1096, %v1096
        %v1145 = vpack.c.bf16 %v1097, %v1097
        %v1146 = vpack.c.bf16 %v1098, %v1098
        %v1147 = vpack.c.bf16 %v1099, %v1099
        %v1148 = vpack.c.bf16 %v1100, %v1100
        %v1149 = vpack.c.bf16 %v1101, %v1101
        %v1150 = vpack.c.bf16 %v1102, %v1102
        %v1151 = vpack.c.bf16 %v1103, %v1103
        %v1152 = vpack.c.bf16 %v1104, %v1104
        %v1153 = vpack.c.bf16 %v1105, %v1105
        %v1154 = vpack.c.bf16 %v1106, %v1106
        %v1155 = vpack.c.bf16 %v1107, %v1107
        %v1156 = vpack.c.bf16 %v1108, %v1108
        %v1157 = vpack.c.bf16 %v1109, %v1109
        %v1158 = vpack.c.bf16 %v1110, %v1110
        %v1159 = vld [vmem:[%s4] sm:$0xf]
        %v1160 = vld [vmem:[%s4 + $0x4] sm:$0xf]
        %v1161 = vld [vmem:[%s4 + $0x8] sm:$0xf]
        %v1162 = vld [vmem:[%s4 + $0xc] sm:$0xf]
        %v1163 = vld [vmem:[%s4 + $0x10] sm:$0xf]
        %v1164 = vld [vmem:[%s4 + $0x14] sm:$0xf]
        %v1165 = vld [vmem:[%s4 + $0x18] sm:$0xf]
        %v1166 = vld [vmem:[%s4 + $0x1c] sm:$0xf]
        %v1167 = vld [vmem:[%s4 + $0x20] sm:$0xf]
        %v1168 = vld [vmem:[%s4 + $0x24] sm:$0xf]
        %v1169 = vld [vmem:[%s4 + $0x28] sm:$0xf]
        %v1170 = vld [vmem:[%s4 + $0x2c] sm:$0xf]
        %v1171 = vld [vmem:[%s4 + $0x30] sm:$0xf]
        %v1172 = vld [vmem:[%s4 + $0x34] sm:$0xf]
        %v1173 = vld [vmem:[%s4 + $0x38] sm:$0xf]
        %v1174 = vld [vmem:[%s4 + $0x3c] sm:$0xf]
        %v1175 = vld [vmem:[%s4 + $0x40] sm:$0xf]
        %v1176 = vld [vmem:[%s4 + $0x44] sm:$0xf]
        %v1177 = vld [vmem:[%s4 + $0x48] sm:$0xf]
        %v1178 = vld [vmem:[%s4 + $0x4c] sm:$0xf]
        %v1179 = vld [vmem:[%s4 + $0x50] sm:$0xf]
        %v1180 = vld [vmem:[%s4 + $0x54] sm:$0xf]
        %v1181 = vld [vmem:[%s4 + $0x58] sm:$0xf]
        %v1182 = vld [vmem:[%s4 + $0x5c] sm:$0xf]
        %v1183 = vld [vmem:[%s4 + $0x60] sm:$0xf]
        %v1184 = vld [vmem:[%s4 + $0x64] sm:$0xf]
        %v1185 = vld [vmem:[%s4 + $0x68] sm:$0xf]
        %v1186 = vld [vmem:[%s4 + $0x6c] sm:$0xf]
        %v1187 = vld [vmem:[%s4 + $0x70] sm:$0xf]
        %v1188 = vld [vmem:[%s4 + $0x74] sm:$0xf]
        %v1189 = vld [vmem:[%s4 + $0x78] sm:$0xf]
        %v1190 = vld [vmem:[%s4 + $0x7c] sm:$0xf]
        %v1191 = vld [vmem:[%s4 + $0x80] sm:$0xf]
        %v1192 = vld [vmem:[%s4 + $0x84] sm:$0xf]
        %v1193 = vld [vmem:[%s4 + $0x88] sm:$0xf]
        %v1194 = vld [vmem:[%s4 + $0x8c] sm:$0xf]
        %v1195 = vld [vmem:[%s4 + $0x90] sm:$0xf]
        %v1196 = vld [vmem:[%s4 + $0x94] sm:$0xf]
        %v1197 = vld [vmem:[%s4 + $0x98] sm:$0xf]
        %v1198 = vld [vmem:[%s4 + $0x9c] sm:$0xf]
        %v1199 = vld [vmem:[%s4 + $0xa0] sm:$0xf]
        %v1200 = vld [vmem:[%s4 + $0xa4] sm:$0xf]
        %v1201 = vld [vmem:[%s4 + $0xa8] sm:$0xf]
        %v1202 = vld [vmem:[%s4 + $0xac] sm:$0xf]
        %v1203 = vld [vmem:[%s4 + $0xb0] sm:$0xf]
        %v1204 = vld [vmem:[%s4 + $0xb4] sm:$0xf]
        %v1205 = vld [vmem:[%s4 + $0xb8] sm:$0xf]
        %v1206 = vld [vmem:[%s4 + $0xbc] sm:$0xf]
        %v1207 = vld [vmem:[%s4 + $0xc0] sm:$0xf]
        %v1208 = vld [vmem:[%s4 + $0xc4] sm:$0xf]
        %v1209 = vld [vmem:[%s4 + $0xc8] sm:$0xf]
        %v1210 = vld [vmem:[%s4 + $0xcc] sm:$0xf]
        %v1211 = vld [vmem:[%s4 + $0xd0] sm:$0xf]
        %v1212 = vld [vmem:[%s4 + $0xd4] sm:$0xf]
        %v1213 = vld [vmem:[%s4 + $0xd8] sm:$0xf]
        %v1214 = vld [vmem:[%s4 + $0xdc] sm:$0xf]
        %v1215 = vld [vmem:[%s4 + $0xe0] sm:$0xf]
        %v1216 = vld [vmem:[%s4 + $0xe4] sm:$0xf]
        %v1217 = vld [vmem:[%s4 + $0xe8] sm:$0xf]
        %v1218 = vld [vmem:[%s4 + $0xec] sm:$0xf]
        %v1219 = vld [vmem:[%s4 + $0xf0] sm:$0xf]
        %v1220 = vld [vmem:[%s4 + $0xf4] sm:$0xf]
        %v1221 = vld [vmem:[%s4 + $0xf8] sm:$0xf]
        %v1222 = vld [vmem:[%s4 + $0xfc] sm:$0xf]
        %v1223 = vld [vmem:[%s4 + $0x100] sm:$0xf]
        %v1224 = vld [vmem:[%s4 + $0x104] sm:$0xf]
        %v1225 = vld [vmem:[%s4 + $0x108] sm:$0xf]
        %v1226 = vld [vmem:[%s4 + $0x10c] sm:$0xf]
        %v1227 = vld [vmem:[%s4 + $0x110] sm:$0xf]
        %v1228 = vld [vmem:[%s4 + $0x114] sm:$0xf]
        %v1229 = vld [vmem:[%s4 + $0x118] sm:$0xf]
        %v1230 = vld [vmem:[%s4 + $0x11c] sm:$0xf]
        %v1231 = vld [vmem:[%s4 + $0x120] sm:$0xf]
        %v1232 = vld [vmem:[%s4 + $0x124] sm:$0xf]
        %v1233 = vld [vmem:[%s4 + $0x128] sm:$0xf]
        %v1234 = vld [vmem:[%s4 + $0x12c] sm:$0xf]
        %v1235 = vld [vmem:[%s4 + $0x130] sm:$0xf]
        %v1236 = vld [vmem:[%s4 + $0x134] sm:$0xf]
        %v1237 = vld [vmem:[%s4 + $0x138] sm:$0xf]
        %v1238 = vld [vmem:[%s4 + $0x13c] sm:$0xf]
        %v1239 = vld [vmem:[%s4 + $0x140] sm:$0xf]
        %v1240 = vld [vmem:[%s4 + $0x144] sm:$0xf]
        %v1241 = vld [vmem:[%s4 + $0x148] sm:$0xf]
        %v1242 = vld [vmem:[%s4 + $0x14c] sm:$0xf]
        %v1243 = vld [vmem:[%s4 + $0x150] sm:$0xf]
        %v1244 = vld [vmem:[%s4 + $0x154] sm:$0xf]
        %v1245 = vld [vmem:[%s4 + $0x158] sm:$0xf]
        %v1246 = vld [vmem:[%s4 + $0x15c] sm:$0xf]
        %v1247 = vld [vmem:[%s4 + $0x160] sm:$0xf]
        %v1248 = vld [vmem:[%s4 + $0x164] sm:$0xf]
        %v1249 = vld [vmem:[%s4 + $0x168] sm:$0xf]
        %v1250 = vld [vmem:[%s4 + $0x16c] sm:$0xf]
        %v1251 = vld [vmem:[%s4 + $0x170] sm:$0xf]
        %v1252 = vld [vmem:[%s4 + $0x174] sm:$0xf]
        %v1253 = vld [vmem:[%s4 + $0x178] sm:$0xf]
        %v1254 = vld [vmem:[%s4 + $0x17c] sm:$0xf]
        %v1255 = vld [vmem:[%s4 + $0x180] sm:$0xf]
        %v1256 = vld [vmem:[%s4 + $0x184] sm:$0xf]
        %v1257 = vld [vmem:[%s4 + $0x188] sm:$0xf]
        %v1258 = vld [vmem:[%s4 + $0x18c] sm:$0xf]
        %v1259 = vld [vmem:[%s4 + $0x190] sm:$0xf]
        %v1260 = vld [vmem:[%s4 + $0x194] sm:$0xf]
        %v1261 = vld [vmem:[%s4 + $0x198] sm:$0xf]
        %v1262 = vld [vmem:[%s4 + $0x19c] sm:$0xf]
        %v1263 = vld [vmem:[%s4 + $0x1a0] sm:$0xf]
        %v1264 = vld [vmem:[%s4 + $0x1a4] sm:$0xf]
        %v1265 = vld [vmem:[%s4 + $0x1a8] sm:$0xf]
        %v1266 = vld [vmem:[%s4 + $0x1ac] sm:$0xf]
        %v1267 = vld [vmem:[%s4 + $0x1b0] sm:$0xf]
        %v1268 = vld [vmem:[%s4 + $0x1b4] sm:$0xf]
        %v1269 = vld [vmem:[%s4 + $0x1b8] sm:$0xf]
        %v1270 = vld [vmem:[%s4 + $0x1bc] sm:$0xf]
        %v1271 = vld [vmem:[%s4 + $0x1c0] sm:$0xf]
        %v1272 = vld [vmem:[%s4 + $0x1c4] sm:$0xf]
        %v1273 = vld [vmem:[%s4 + $0x1c8] sm:$0xf]
        %v1274 = vld [vmem:[%s4 + $0x1cc] sm:$0xf]
        %v1275 = vld [vmem:[%s4 + $0x1d0] sm:$0xf]
        %v1276 = vld [vmem:[%s4 + $0x1d4] sm:$0xf]
        %v1277 = vld [vmem:[%s4 + $0x1d8] sm:$0xf]
        %v1278 = vld [vmem:[%s4 + $0x1dc] sm:$0xf]
        %v1279 = vld [vmem:[%s4 + $0x1e0] sm:$0xf]
        %v1280 = vld [vmem:[%s4 + $0x1e4] sm:$0xf]
        %v1281 = vld [vmem:[%s4 + $0x1e8] sm:$0xf]
        %v1282 = vld [vmem:[%s4 + $0x1ec] sm:$0xf]
        %v1283 = vld [vmem:[%s4 + $0x1f0] sm:$0xf]
        %v1284 = vld [vmem:[%s4 + $0x1f4] sm:$0xf]
        %v1285 = vld [vmem:[%s4 + $0x1f8] sm:$0xf]
        %v1286 = vld [vmem:[%s4 + $0x1fc] sm:$0xf]
        %v1287 = vld [vmem:[%s4 + $0x200] sm:$0xf]
        %v1288 = vld [vmem:[%s4 + $0x204] sm:$0xf]
        %v1289 = vld [vmem:[%s4 + $0x208] sm:$0xf]
        %v1290 = vld [vmem:[%s4 + $0x20c] sm:$0xf]
        %v1291 = vld [vmem:[%s4 + $0x210] sm:$0xf]
        %v1292 = vld [vmem:[%s4 + $0x214] sm:$0xf]
        %v1293 = vld [vmem:[%s4 + $0x218] sm:$0xf]
        %v1294 = vld [vmem:[%s4 + $0x21c] sm:$0xf]
        %v1295 = vld [vmem:[%s4 + $0x220] sm:$0xf]
        %v1296 = vld [vmem:[%s4 + $0x224] sm:$0xf]
        %v1297 = vld [vmem:[%s4 + $0x228] sm:$0xf]
        %v1298 = vld [vmem:[%s4 + $0x22c] sm:$0xf]
        %v1299 = vld [vmem:[%s4 + $0x230] sm:$0xf]
        %v1300 = vld [vmem:[%s4 + $0x234] sm:$0xf]
        %v1301 = vld [vmem:[%s4 + $0x238] sm:$0xf]
        %v1302 = vld [vmem:[%s4 + $0x23c] sm:$0xf]
        %v1303 = vld [vmem:[%s4 + $0x240] sm:$0xf]
        %v1304 = vld [vmem:[%s4 + $0x244] sm:$0xf]
        %v1305 = vld [vmem:[%s4 + $0x248] sm:$0xf]
        %v1306 = vld [vmem:[%s4 + $0x24c] sm:$0xf]
        %v1307 = vld [vmem:[%s4 + $0x250] sm:$0xf]
        %v1308 = vld [vmem:[%s4 + $0x254] sm:$0xf]
        %v1309 = vld [vmem:[%s4 + $0x258] sm:$0xf]
        %v1310 = vld [vmem:[%s4 + $0x25c] sm:$0xf]
        %v1311 = vld [vmem:[%s4 + $0x260] sm:$0xf]
        %v1312 = vld [vmem:[%s4 + $0x264] sm:$0xf]
        %v1313 = vld [vmem:[%s4 + $0x268] sm:$0xf]
        %v1314 = vld [vmem:[%s4 + $0x26c] sm:$0xf]
        %v1315 = vld [vmem:[%s4 + $0x270] sm:$0xf]
        %v1316 = vld [vmem:[%s4 + $0x274] sm:$0xf]
        %v1317 = vld [vmem:[%s4 + $0x278] sm:$0xf]
        %v1318 = vld [vmem:[%s4 + $0x27c] sm:$0xf]
        %v1319 = vld [vmem:[%s4 + $0x280] sm:$0xf]
        %v1320 = vld [vmem:[%s4 + $0x284] sm:$0xf]
        %v1321 = vld [vmem:[%s4 + $0x288] sm:$0xf]
        %v1322 = vld [vmem:[%s4 + $0x28c] sm:$0xf]
        %v1323 = vld [vmem:[%s4 + $0x290] sm:$0xf]
        %v1324 = vld [vmem:[%s4 + $0x294] sm:$0xf]
        %v1325 = vld [vmem:[%s4 + $0x298] sm:$0xf]
        %v1326 = vld [vmem:[%s4 + $0x29c] sm:$0xf]
        %v1327 = vld [vmem:[%s4 + $0x2a0] sm:$0xf]
        %v1328 = vld [vmem:[%s4 + $0x2a4] sm:$0xf]
        %v1329 = vld [vmem:[%s4 + $0x2a8] sm:$0xf]
        %v1330 = vld [vmem:[%s4 + $0x2ac] sm:$0xf]
        %v1331 = vld [vmem:[%s4 + $0x2b0] sm:$0xf]
        %v1332 = vld [vmem:[%s4 + $0x2b4] sm:$0xf]
        %v1333 = vld [vmem:[%s4 + $0x2b8] sm:$0xf]
        %v1334 = vld [vmem:[%s4 + $0x2bc] sm:$0xf]
        %v1335 = vld [vmem:[%s4 + $0x2c0] sm:$0xf]
        %v1336 = vld [vmem:[%s4 + $0x2c4] sm:$0xf]
        %v1337 = vld [vmem:[%s4 + $0x2c8] sm:$0xf]
        %v1338 = vld [vmem:[%s4 + $0x2cc] sm:$0xf]
        %v1339 = vld [vmem:[%s4 + $0x2d0] sm:$0xf]
        %v1340 = vld [vmem:[%s4 + $0x2d4] sm:$0xf]
        %v1341 = vld [vmem:[%s4 + $0x2d8] sm:$0xf]
        %v1342 = vld [vmem:[%s4 + $0x2dc] sm:$0xf]
        %v1343 = vld [vmem:[%s4 + $0x2e0] sm:$0xf]
        %v1344 = vld [vmem:[%s4 + $0x2e4] sm:$0xf]
        %v1345 = vld [vmem:[%s4 + $0x2e8] sm:$0xf]
        %v1346 = vld [vmem:[%s4 + $0x2ec] sm:$0xf]
        %v1347 = vld [vmem:[%s4 + $0x2f0] sm:$0xf]
        %v1348 = vld [vmem:[%s4 + $0x2f4] sm:$0xf]
        %v1349 = vld [vmem:[%s4 + $0x2f8] sm:$0xf]
        %v1350 = vld [vmem:[%s4 + $0x2fc] sm:$0xf]
        %v1351 = vld [vmem:[%s4 + $0x300] sm:$0xf]
        %v1352 = vld [vmem:[%s4 + $0x304] sm:$0xf]
        %v1353 = vld [vmem:[%s4 + $0x308] sm:$0xf]
        %v1354 = vld [vmem:[%s4 + $0x30c] sm:$0xf]
        %v1355 = vld [vmem:[%s4 + $0x310] sm:$0xf]
        %v1356 = vld [vmem:[%s4 + $0x314] sm:$0xf]
        %v1357 = vld [vmem:[%s4 + $0x318] sm:$0xf]
        %v1358 = vld [vmem:[%s4 + $0x31c] sm:$0xf]
        %v1359 = vld [vmem:[%s4 + $0x320] sm:$0xf]
        %v1360 = vld [vmem:[%s4 + $0x324] sm:$0xf]
        %v1361 = vld [vmem:[%s4 + $0x328] sm:$0xf]
        %v1362 = vld [vmem:[%s4 + $0x32c] sm:$0xf]
        %v1363 = vld [vmem:[%s4 + $0x330] sm:$0xf]
        %v1364 = vld [vmem:[%s4 + $0x334] sm:$0xf]
        %v1365 = vld [vmem:[%s4 + $0x338] sm:$0xf]
        %v1366 = vld [vmem:[%s4 + $0x33c] sm:$0xf]
        %v1367 = vld [vmem:[%s4 + $0x340] sm:$0xf]
        %v1368 = vld [vmem:[%s4 + $0x344] sm:$0xf]
        %v1369 = vld [vmem:[%s4 + $0x348] sm:$0xf]
        %v1370 = vld [vmem:[%s4 + $0x34c] sm:$0xf]
        %v1371 = vld [vmem:[%s4 + $0x350] sm:$0xf]
        %v1372 = vld [vmem:[%s4 + $0x354] sm:$0xf]
        %v1373 = vld [vmem:[%s4 + $0x358] sm:$0xf]
        %v1374 = vld [vmem:[%s4 + $0x35c] sm:$0xf]
        %v1375 = vld [vmem:[%s4 + $0x360] sm:$0xf]
        %v1376 = vld [vmem:[%s4 + $0x364] sm:$0xf]
        %v1377 = vld [vmem:[%s4 + $0x368] sm:$0xf]
        %v1378 = vld [vmem:[%s4 + $0x36c] sm:$0xf]
        %v1379 = vld [vmem:[%s4 + $0x370] sm:$0xf]
        %v1380 = vld [vmem:[%s4 + $0x374] sm:$0xf]
        %v1381 = vld [vmem:[%s4 + $0x378] sm:$0xf]
        %v1382 = vld [vmem:[%s4 + $0x37c] sm:$0xf]
        %v1383 = vld [vmem:[%s4 + $0x380] sm:$0xf]
        %v1384 = vld [vmem:[%s4 + $0x384] sm:$0xf]
        %v1385 = vld [vmem:[%s4 + $0x388] sm:$0xf]
        %v1386 = vld [vmem:[%s4 + $0x38c] sm:$0xf]
        %v1387 = vld [vmem:[%s4 + $0x390] sm:$0xf]
        %v1388 = vld [vmem:[%s4 + $0x394] sm:$0xf]
        %v1389 = vld [vmem:[%s4 + $0x398] sm:$0xf]
        %v1390 = vld [vmem:[%s4 + $0x39c] sm:$0xf]
        %v1391 = vld [vmem:[%s4 + $0x3a0] sm:$0xf]
        %v1392 = vld [vmem:[%s4 + $0x3a4] sm:$0xf]
        %v1393 = vld [vmem:[%s4 + $0x3a8] sm:$0xf]
        %v1394 = vld [vmem:[%s4 + $0x3ac] sm:$0xf]
        %v1395 = vld [vmem:[%s4 + $0x3b0] sm:$0xf]
        %v1396 = vld [vmem:[%s4 + $0x3b4] sm:$0xf]
        %v1397 = vld [vmem:[%s4 + $0x3b8] sm:$0xf]
        %v1398 = vld [vmem:[%s4 + $0x3bc] sm:$0xf]
        %v1399 = vld [vmem:[%s4 + $0x3c0] sm:$0xf]
        %v1400 = vld [vmem:[%s4 + $0x3c4] sm:$0xf]
        %v1401 = vld [vmem:[%s4 + $0x3c8] sm:$0xf]
        %v1402 = vld [vmem:[%s4 + $0x3cc] sm:$0xf]
        %v1403 = vld [vmem:[%s4 + $0x3d0] sm:$0xf]
        %v1404 = vld [vmem:[%s4 + $0x3d4] sm:$0xf]
        %v1405 = vld [vmem:[%s4 + $0x3d8] sm:$0xf]
        %v1406 = vld [vmem:[%s4 + $0x3dc] sm:$0xf]
        %v1407 = vld [vmem:[%s4 + $0x3e0] sm:$0xf]
        %v1408 = vld [vmem:[%s4 + $0x3e4] sm:$0xf]
        %v1409 = vld [vmem:[%s4 + $0x3e8] sm:$0xf]
        %v1410 = vld [vmem:[%s4 + $0x3ec] sm:$0xf]
        %v1411 = vld [vmem:[%s4 + $0x3f0] sm:$0xf]
        %v1412 = vld [vmem:[%s4 + $0x3f4] sm:$0xf]
        %v1413 = vld [vmem:[%s4 + $0x3f8] sm:$0xf]
        %v1414 = vld [vmem:[%s4 + $0x3fc] sm:$0xf]
        %v1671 = vunpack.c.l.b16 %v1159
        %v1672 = vunpack.c.l.b16 %v1160
        %v1673 = vunpack.c.l.b16 %v1161
        %v1674 = vunpack.c.l.b16 %v1162
        %v1675 = vunpack.c.l.b16 %v1163
        %v1676 = vunpack.c.l.b16 %v1164
        %v1677 = vunpack.c.l.b16 %v1165
        %v1678 = vunpack.c.l.b16 %v1166
        %v1679 = vunpack.c.l.b16 %v1167
        %v1680 = vunpack.c.l.b16 %v1168
        %v1681 = vunpack.c.l.b16 %v1169
        %v1682 = vunpack.c.l.b16 %v1170
        %v1683 = vunpack.c.l.b16 %v1171
        %v1684 = vunpack.c.l.b16 %v1172
        %v1685 = vunpack.c.l.b16 %v1173
        %v1686 = vunpack.c.l.b16 %v1174
        %v1687 = vunpack.c.l.b16 %v1175
        %v1688 = vunpack.c.l.b16 %v1176
        %v1689 = vunpack.c.l.b16 %v1177
        %v1690 = vunpack.c.l.b16 %v1178
        %v1691 = vunpack.c.l.b16 %v1179
        %v1692 = vunpack.c.l.b16 %v1180
        %v1693 = vunpack.c.l.b16 %v1181
        %v1694 = vunpack.c.l.b16 %v1182
        %v1695 = vunpack.c.l.b16 %v1183
        %v1696 = vunpack.c.l.b16 %v1184
        %v1697 = vunpack.c.l.b16 %v1185
        %v1698 = vunpack.c.l.b16 %v1186
        %v1699 = vunpack.c.l.b16 %v1187
        %v1700 = vunpack.c.l.b16 %v1188
        %v1701 = vunpack.c.l.b16 %v1189
        %v1702 = vunpack.c.l.b16 %v1190
        %v1703 = vunpack.c.l.b16 %v1191
        %v1704 = vunpack.c.l.b16 %v1192
        %v1705 = vunpack.c.l.b16 %v1193
        %v1706 = vunpack.c.l.b16 %v1194
        %v1707 = vunpack.c.l.b16 %v1195
        %v1708 = vunpack.c.l.b16 %v1196
        %v1709 = vunpack.c.l.b16 %v1197
        %v1710 = vunpack.c.l.b16 %v1198
        %v1711 = vunpack.c.l.b16 %v1199
        %v1712 = vunpack.c.l.b16 %v1200
        %v1713 = vunpack.c.l.b16 %v1201
        %v1714 = vunpack.c.l.b16 %v1202
        %v1715 = vunpack.c.l.b16 %v1203
        %v1716 = vunpack.c.l.b16 %v1204
        %v1717 = vunpack.c.l.b16 %v1205
        %v1718 = vunpack.c.l.b16 %v1206
        %v1719 = vunpack.c.l.b16 %v1207
        %v1720 = vunpack.c.l.b16 %v1208
        %v1721 = vunpack.c.l.b16 %v1209
        %v1722 = vunpack.c.l.b16 %v1210
        %v1723 = vunpack.c.l.b16 %v1211
        %v1724 = vunpack.c.l.b16 %v1212
        %v1725 = vunpack.c.l.b16 %v1213
        %v1726 = vunpack.c.l.b16 %v1214
        %v1727 = vunpack.c.l.b16 %v1215
        %v1728 = vunpack.c.l.b16 %v1216
        %v1729 = vunpack.c.l.b16 %v1217
        %v1730 = vunpack.c.l.b16 %v1218
        %v1731 = vunpack.c.l.b16 %v1219
        %v1732 = vunpack.c.l.b16 %v1220
        %v1733 = vunpack.c.l.b16 %v1221
        %v1734 = vunpack.c.l.b16 %v1222
        %v1735 = vunpack.c.l.b16 %v1223
        %v1736 = vunpack.c.l.b16 %v1224
        %v1737 = vunpack.c.l.b16 %v1225
        %v1738 = vunpack.c.l.b16 %v1226
        %v1739 = vunpack.c.l.b16 %v1227
        %v1740 = vunpack.c.l.b16 %v1228
        %v1741 = vunpack.c.l.b16 %v1229
        %v1742 = vunpack.c.l.b16 %v1230
        %v1743 = vunpack.c.l.b16 %v1231
        %v1744 = vunpack.c.l.b16 %v1232
        %v1745 = vunpack.c.l.b16 %v1233
        %v1746 = vunpack.c.l.b16 %v1234
        %v1747 = vunpack.c.l.b16 %v1235
        %v1748 = vunpack.c.l.b16 %v1236
        %v1749 = vunpack.c.l.b16 %v1237
        %v1750 = vunpack.c.l.b16 %v1238
        %v1751 = vunpack.c.l.b16 %v1239
        %v1752 = vunpack.c.l.b16 %v1240
        %v1753 = vunpack.c.l.b16 %v1241
        %v1754 = vunpack.c.l.b16 %v1242
        %v1755 = vunpack.c.l.b16 %v1243
        %v1756 = vunpack.c.l.b16 %v1244
        %v1757 = vunpack.c.l.b16 %v1245
        %v1758 = vunpack.c.l.b16 %v1246
        %v1759 = vunpack.c.l.b16 %v1247
        %v1760 = vunpack.c.l.b16 %v1248
        %v1761 = vunpack.c.l.b16 %v1249
        %v1762 = vunpack.c.l.b16 %v1250
        %v1763 = vunpack.c.l.b16 %v1251
        %v1764 = vunpack.c.l.b16 %v1252
        %v1765 = vunpack.c.l.b16 %v1253
        %v1766 = vunpack.c.l.b16 %v1254
        %v1767 = vunpack.c.l.b16 %v1255
        %v1768 = vunpack.c.l.b16 %v1256
        %v1769 = vunpack.c.l.b16 %v1257
        %v1770 = vunpack.c.l.b16 %v1258
        %v1771 = vunpack.c.l.b16 %v1259
        %v1772 = vunpack.c.l.b16 %v1260
        %v1773 = vunpack.c.l.b16 %v1261
        %v1774 = vunpack.c.l.b16 %v1262
        %v1775 = vunpack.c.l.b16 %v1263
        %v1776 = vunpack.c.l.b16 %v1264
        %v1777 = vunpack.c.l.b16 %v1265
        %v1778 = vunpack.c.l.b16 %v1266
        %v1779 = vunpack.c.l.b16 %v1267
        %v1780 = vunpack.c.l.b16 %v1268
        %v1781 = vunpack.c.l.b16 %v1269
        %v1782 = vunpack.c.l.b16 %v1270
        %v1783 = vunpack.c.l.b16 %v1271
        %v1784 = vunpack.c.l.b16 %v1272
        %v1785 = vunpack.c.l.b16 %v1273
        %v1786 = vunpack.c.l.b16 %v1274
        %v1787 = vunpack.c.l.b16 %v1275
        %v1788 = vunpack.c.l.b16 %v1276
        %v1789 = vunpack.c.l.b16 %v1277
        %v1790 = vunpack.c.l.b16 %v1278
        %v1791 = vunpack.c.l.b16 %v1279
        %v1792 = vunpack.c.l.b16 %v1280
        %v1793 = vunpack.c.l.b16 %v1281
        %v1794 = vunpack.c.l.b16 %v1282
        %v1795 = vunpack.c.l.b16 %v1283
        %v1796 = vunpack.c.l.b16 %v1284
        %v1797 = vunpack.c.l.b16 %v1285
        %v1798 = vunpack.c.l.b16 %v1286
        %v1799 = vunpack.c.l.b16 %v1287
        %v1800 = vunpack.c.l.b16 %v1288
        %v1801 = vunpack.c.l.b16 %v1289
        %v1802 = vunpack.c.l.b16 %v1290
        %v1803 = vunpack.c.l.b16 %v1291
        %v1804 = vunpack.c.l.b16 %v1292
        %v1805 = vunpack.c.l.b16 %v1293
        %v1806 = vunpack.c.l.b16 %v1294
        %v1807 = vunpack.c.l.b16 %v1295
        %v1808 = vunpack.c.l.b16 %v1296
        %v1809 = vunpack.c.l.b16 %v1297
        %v1810 = vunpack.c.l.b16 %v1298
        %v1811 = vunpack.c.l.b16 %v1299
        %v1812 = vunpack.c.l.b16 %v1300
        %v1813 = vunpack.c.l.b16 %v1301
        %v1814 = vunpack.c.l.b16 %v1302
        %v1815 = vunpack.c.l.b16 %v1303
        %v1816 = vunpack.c.l.b16 %v1304
        %v1817 = vunpack.c.l.b16 %v1305
        %v1818 = vunpack.c.l.b16 %v1306
        %v1819 = vunpack.c.l.b16 %v1307
        %v1820 = vunpack.c.l.b16 %v1308
        %v1821 = vunpack.c.l.b16 %v1309
        %v1822 = vunpack.c.l.b16 %v1310
        %v1823 = vunpack.c.l.b16 %v1311
        %v1824 = vunpack.c.l.b16 %v1312
        %v1825 = vunpack.c.l.b16 %v1313
        %v1826 = vunpack.c.l.b16 %v1314
        %v1827 = vunpack.c.l.b16 %v1315
        %v1828 = vunpack.c.l.b16 %v1316
        %v1829 = vunpack.c.l.b16 %v1317
        %v1830 = vunpack.c.l.b16 %v1318
        %v1831 = vunpack.c.l.b16 %v1319
        %v1832 = vunpack.c.l.b16 %v1320
        %v1833 = vunpack.c.l.b16 %v1321
        %v1834 = vunpack.c.l.b16 %v1322
        %v1835 = vunpack.c.l.b16 %v1323
        %v1836 = vunpack.c.l.b16 %v1324
        %v1837 = vunpack.c.l.b16 %v1325
        %v1838 = vunpack.c.l.b16 %v1326
        %v1839 = vunpack.c.l.b16 %v1327
        %v1840 = vunpack.c.l.b16 %v1328
        %v1841 = vunpack.c.l.b16 %v1329
        %v1842 = vunpack.c.l.b16 %v1330
        %v1843 = vunpack.c.l.b16 %v1331
        %v1844 = vunpack.c.l.b16 %v1332
        %v1845 = vunpack.c.l.b16 %v1333
        %v1846 = vunpack.c.l.b16 %v1334
        %v1847 = vunpack.c.l.b16 %v1335
        %v1848 = vunpack.c.l.b16 %v1336
        %v1849 = vunpack.c.l.b16 %v1337
        %v1850 = vunpack.c.l.b16 %v1338
        %v1851 = vunpack.c.l.b16 %v1339
        %v1852 = vunpack.c.l.b16 %v1340
        %v1853 = vunpack.c.l.b16 %v1341
        %v1854 = vunpack.c.l.b16 %v1342
        %v1855 = vunpack.c.l.b16 %v1343
        %v1856 = vunpack.c.l.b16 %v1344
        %v1857 = vunpack.c.l.b16 %v1345
        %v1858 = vunpack.c.l.b16 %v1346
        %v1859 = vunpack.c.l.b16 %v1347
        %v1860 = vunpack.c.l.b16 %v1348
        %v1861 = vunpack.c.l.b16 %v1349
        %v1862 = vunpack.c.l.b16 %v1350
        %v1863 = vunpack.c.l.b16 %v1351
        %v1864 = vunpack.c.l.b16 %v1352
        %v1865 = vunpack.c.l.b16 %v1353
        %v1866 = vunpack.c.l.b16 %v1354
        %v1867 = vunpack.c.l.b16 %v1355
        %v1868 = vunpack.c.l.b16 %v1356
        %v1869 = vunpack.c.l.b16 %v1357
        %v1870 = vunpack.c.l.b16 %v1358
        %v1871 = vunpack.c.l.b16 %v1359
        %v1872 = vunpack.c.l.b16 %v1360
        %v1873 = vunpack.c.l.b16 %v1361
        %v1874 = vunpack.c.l.b16 %v1362
        %v1875 = vunpack.c.l.b16 %v1363
        %v1876 = vunpack.c.l.b16 %v1364
        %v1877 = vunpack.c.l.b16 %v1365
        %v1878 = vunpack.c.l.b16 %v1366
        %v1879 = vunpack.c.l.b16 %v1367
        %v1880 = vunpack.c.l.b16 %v1368
        %v1881 = vunpack.c.l.b16 %v1369
        %v1882 = vunpack.c.l.b16 %v1370
        %v1883 = vunpack.c.l.b16 %v1371
        %v1884 = vunpack.c.l.b16 %v1372
        %v1885 = vunpack.c.l.b16 %v1373
        %v1886 = vunpack.c.l.b16 %v1374
        %v1887 = vunpack.c.l.b16 %v1375
        %v1888 = vunpack.c.l.b16 %v1376
        %v1889 = vunpack.c.l.b16 %v1377
        %v1890 = vunpack.c.l.b16 %v1378
        %v1891 = vunpack.c.l.b16 %v1379
        %v1892 = vunpack.c.l.b16 %v1380
        %v1893 = vunpack.c.l.b16 %v1381
        %v1894 = vunpack.c.l.b16 %v1382
        %v1895 = vunpack.c.l.b16 %v1383
        %v1896 = vunpack.c.l.b16 %v1384
        %v1897 = vunpack.c.l.b16 %v1385
        %v1898 = vunpack.c.l.b16 %v1386
        %v1899 = vunpack.c.l.b16 %v1387
        %v1900 = vunpack.c.l.b16 %v1388
        %v1901 = vunpack.c.l.b16 %v1389
        %v1902 = vunpack.c.l.b16 %v1390
        %v1903 = vunpack.c.l.b16 %v1391
        %v1904 = vunpack.c.l.b16 %v1392
        %v1905 = vunpack.c.l.b16 %v1393
        %v1906 = vunpack.c.l.b16 %v1394
        %v1907 = vunpack.c.l.b16 %v1395
        %v1908 = vunpack.c.l.b16 %v1396
        %v1909 = vunpack.c.l.b16 %v1397
        %v1910 = vunpack.c.l.b16 %v1398
        %v1911 = vunpack.c.l.b16 %v1399
        %v1912 = vunpack.c.l.b16 %v1400
        %v1913 = vunpack.c.l.b16 %v1401
        %v1914 = vunpack.c.l.b16 %v1402
        %v1915 = vunpack.c.l.b16 %v1403
        %v1916 = vunpack.c.l.b16 %v1404
        %v1917 = vunpack.c.l.b16 %v1405
        %v1918 = vunpack.c.l.b16 %v1406
        %v1919 = vunpack.c.l.b16 %v1407
        %v1920 = vunpack.c.l.b16 %v1408
        %v1921 = vunpack.c.l.b16 %v1409
        %v1922 = vunpack.c.l.b16 %v1410
        %v1923 = vunpack.c.l.b16 %v1411
        %v1924 = vunpack.c.l.b16 %v1412
        %v1925 = vunpack.c.l.b16 %v1413
        %v1926 = vunpack.c.l.b16 %v1414
        %v1927 = vpack.c.b16 %v1672, %v1671
        %v1928 = vpack.c.b16 %v1674, %v1673
        %v1929 = vpack.c.b16 %v1676, %v1675
        %v1930 = vpack.c.b16 %v1678, %v1677
        %v1931 = vpack.c.b16 %v1680, %v1679
        %v1932 = vpack.c.b16 %v1682, %v1681
        %v1933 = vpack.c.b16 %v1684, %v1683
        %v1934 = vpack.c.b16 %v1686, %v1685
        %v1935 = vpack.c.b16 %v1688, %v1687
        %v1936 = vpack.c.b16 %v1690, %v1689
        %v1937 = vpack.c.b16 %v1692, %v1691
        %v1938 = vpack.c.b16 %v1694, %v1693
        %v1939 = vpack.c.b16 %v1696, %v1695
        %v1940 = vpack.c.b16 %v1698, %v1697
        %v1941 = vpack.c.b16 %v1700, %v1699
        %v1942 = vpack.c.b16 %v1702, %v1701
        %v1943 = vpack.c.b16 %v1704, %v1703
        %v1944 = vpack.c.b16 %v1706, %v1705
        %v1945 = vpack.c.b16 %v1708, %v1707
        %v1946 = vpack.c.b16 %v1710, %v1709
        %v1947 = vpack.c.b16 %v1712, %v1711
        %v1948 = vpack.c.b16 %v1714, %v1713
        %v1949 = vpack.c.b16 %v1716, %v1715
        %v1950 = vpack.c.b16 %v1718, %v1717
        %v1951 = vpack.c.b16 %v1720, %v1719
        %v1952 = vpack.c.b16 %v1722, %v1721
        %v1953 = vpack.c.b16 %v1724, %v1723
        %v1954 = vpack.c.b16 %v1726, %v1725
        %v1955 = vpack.c.b16 %v1728, %v1727
        %v1956 = vpack.c.b16 %v1730, %v1729
        %v1957 = vpack.c.b16 %v1732, %v1731
        %v1958 = vpack.c.b16 %v1734, %v1733
        %v1959 = vpack.c.b16 %v1736, %v1735
        %v1960 = vpack.c.b16 %v1738, %v1737
        %v1961 = vpack.c.b16 %v1740, %v1739
        %v1962 = vpack.c.b16 %v1742, %v1741
        %v1963 = vpack.c.b16 %v1744, %v1743
        %v1964 = vpack.c.b16 %v1746, %v1745
        %v1965 = vpack.c.b16 %v1748, %v1747
        %v1966 = vpack.c.b16 %v1750, %v1749
        %v1967 = vpack.c.b16 %v1752, %v1751
        %v1968 = vpack.c.b16 %v1754, %v1753
        %v1969 = vpack.c.b16 %v1756, %v1755
        %v1970 = vpack.c.b16 %v1758, %v1757
        %v1971 = vpack.c.b16 %v1760, %v1759
        %v1972 = vpack.c.b16 %v1762, %v1761
        %v1973 = vpack.c.b16 %v1764, %v1763
        %v1974 = vpack.c.b16 %v1766, %v1765
        %v1975 = vpack.c.b16 %v1768, %v1767
        %v1976 = vpack.c.b16 %v1770, %v1769
        %v1977 = vpack.c.b16 %v1772, %v1771
        %v1978 = vpack.c.b16 %v1774, %v1773
        %v1979 = vpack.c.b16 %v1776, %v1775
        %v1980 = vpack.c.b16 %v1778, %v1777
        %v1981 = vpack.c.b16 %v1780, %v1779
        %v1982 = vpack.c.b16 %v1782, %v1781
        %v1983 = vpack.c.b16 %v1784, %v1783
        %v1984 = vpack.c.b16 %v1786, %v1785
        %v1985 = vpack.c.b16 %v1788, %v1787
        %v1986 = vpack.c.b16 %v1790, %v1789
        %v1987 = vpack.c.b16 %v1792, %v1791
        %v1988 = vpack.c.b16 %v1794, %v1793
        %v1989 = vpack.c.b16 %v1796, %v1795
        %v1990 = vpack.c.b16 %v1798, %v1797
        %v1991 = vpack.c.b16 %v1800, %v1799
        %v1992 = vpack.c.b16 %v1802, %v1801
        %v1993 = vpack.c.b16 %v1804, %v1803
        %v1994 = vpack.c.b16 %v1806, %v1805
        %v1995 = vpack.c.b16 %v1808, %v1807
        %v1996 = vpack.c.b16 %v1810, %v1809
        %v1997 = vpack.c.b16 %v1812, %v1811
        %v1998 = vpack.c.b16 %v1814, %v1813
        %v1999 = vpack.c.b16 %v1816, %v1815
        %v2000 = vpack.c.b16 %v1818, %v1817
        %v2001 = vpack.c.b16 %v1820, %v1819
        %v2002 = vpack.c.b16 %v1822, %v1821
        %v2003 = vpack.c.b16 %v1824, %v1823
        %v2004 = vpack.c.b16 %v1826, %v1825
        %v2005 = vpack.c.b16 %v1828, %v1827
        %v2006 = vpack.c.b16 %v1830, %v1829
        %v2007 = vpack.c.b16 %v1832, %v1831
        %v2008 = vpack.c.b16 %v1834, %v1833
        %v2009 = vpack.c.b16 %v1836, %v1835
        %v2010 = vpack.c.b16 %v1838, %v1837
        %v2011 = vpack.c.b16 %v1840, %v1839
        %v2012 = vpack.c.b16 %v1842, %v1841
        %v2013 = vpack.c.b16 %v1844, %v1843
        %v2014 = vpack.c.b16 %v1846, %v1845
        %v2015 = vpack.c.b16 %v1848, %v1847
        %v2016 = vpack.c.b16 %v1850, %v1849
        %v2017 = vpack.c.b16 %v1852, %v1851
        %v2018 = vpack.c.b16 %v1854, %v1853
        %v2019 = vpack.c.b16 %v1856, %v1855
        %v2020 = vpack.c.b16 %v1858, %v1857
        %v2021 = vpack.c.b16 %v1860, %v1859
        %v2022 = vpack.c.b16 %v1862, %v1861
        %v2023 = vpack.c.b16 %v1864, %v1863
        %v2024 = vpack.c.b16 %v1866, %v1865
        %v2025 = vpack.c.b16 %v1868, %v1867
        %v2026 = vpack.c.b16 %v1870, %v1869
        %v2027 = vpack.c.b16 %v1872, %v1871
        %v2028 = vpack.c.b16 %v1874, %v1873
        %v2029 = vpack.c.b16 %v1876, %v1875
        %v2030 = vpack.c.b16 %v1878, %v1877
        %v2031 = vpack.c.b16 %v1880, %v1879
        %v2032 = vpack.c.b16 %v1882, %v1881
        %v2033 = vpack.c.b16 %v1884, %v1883
        %v2034 = vpack.c.b16 %v1886, %v1885
        %v2035 = vpack.c.b16 %v1888, %v1887
        %v2036 = vpack.c.b16 %v1890, %v1889
        %v2037 = vpack.c.b16 %v1892, %v1891
        %v2038 = vpack.c.b16 %v1894, %v1893
        %v2039 = vpack.c.b16 %v1896, %v1895
        %v2040 = vpack.c.b16 %v1898, %v1897
        %v2041 = vpack.c.b16 %v1900, %v1899
        %v2042 = vpack.c.b16 %v1902, %v1901
        %v2043 = vpack.c.b16 %v1904, %v1903
        %v2044 = vpack.c.b16 %v1906, %v1905
        %v2045 = vpack.c.b16 %v1908, %v1907
        %v2046 = vpack.c.b16 %v1910, %v1909
        %v2047 = vpack.c.b16 %v1912, %v1911
        %v2048 = vpack.c.b16 %v1914, %v1913
        %v2049 = vpack.c.b16 %v1916, %v1915
        %v2050 = vpack.c.b16 %v1918, %v1917
        %v2051 = vpack.c.b16 %v1920, %v1919
        %v2052 = vpack.c.b16 %v1922, %v1921
        %v2053 = vpack.c.b16 %v1924, %v1923
        %v2054 = vpack.c.b16 %v1926, %v1925
        %2183 = vmatpush.bf16.msra.mxu0 %v1934
        %2184 = vmatpush.bf16.msra.mxu0 %v1933
        %2185 = vmatpush.bf16.msra.mxu0 %v1932
        %2186 = vmatpush.bf16.msra.mxu0 %v1931
        %2187 = vmatpush.bf16.msra.mxu0 %v1930
        %2188 = vmatpush.bf16.msra.mxu0 %v1929
        %2189 = vmatpush.bf16.msra.mxu0 %v1928
        %2190 = vmatpush.bf16.msra.mxu0 %v1927
        %2191 = vmatmul.bf16.gmra.mxu0 %v1111
        %v2192 = vpop.f32.mrf.mxu0
        %v2193 = vadd.f32 0.0, %v2192
        %v2194 = vpop.f32.mrf.mxu0
        %v2195 = vadd.f32 0.0, %v2194
        %2196 = vmatmul.bf16.gmra.mxu0 %v1127
        %v2197 = vpop.f32.mrf.mxu0
        %v2198 = vadd.f32 0.0, %v2197
        %v2199 = vpop.f32.mrf.mxu0
        %v2200 = vadd.f32 0.0, %v2199
        %2201 = vmatmul.bf16.gmra.mxu0 %v1143
        %v2202 = vpop.f32.mrf.mxu0
        %v2203 = vadd.f32 0.0, %v2202
        %v2204 = vpop.f32.mrf.mxu0
        %2205 = vdwg.mxu0
        %2206 = vmatpush.bf16.msra.mxu0 %v1942
        %2207 = vmatpush.bf16.msra.mxu0 %v1941
        %2208 = vmatpush.bf16.msra.mxu0 %v1940
        %2209 = vmatpush.bf16.msra.mxu0 %v1939
        %2210 = vmatpush.bf16.msra.mxu0 %v1938
        %2211 = vmatpush.bf16.msra.mxu0 %v1937
        %2212 = vmatpush.bf16.msra.mxu0 %v1936
        %2213 = vmatpush.bf16.msra.mxu0 %v1935
        %2214 = vmatmul.bf16.gmra.mxu0 %v1112
        %v2215 = vpop.f32.mrf.mxu0
        %v2216 = vadd.f32 %v2193, %v2215
        %v2217 = vpop.f32.mrf.mxu0
        %v2218 = vadd.f32 %v2195, %v2217
        %2219 = vmatmul.bf16.gmra.mxu0 %v1128
        %v2220 = vpop.f32.mrf.mxu0
        %v2221 = vadd.f32 %v2198, %v2220
        %v2222 = vpop.f32.mrf.mxu0
        %v2223 = vadd.f32 %v2200, %v2222
        %2224 = vmatmul.bf16.gmra.mxu0 %v1144
        %v2225 = vpop.f32.mrf.mxu0
        %v2226 = vadd.f32 %v2203, %v2225
        %v2227 = vpop.f32.mrf.mxu0
        %2228 = vdwg.mxu0
        %2229 = vmatpush.bf16.msra.mxu0 %v1950
        %2230 = vmatpush.bf16.msra.mxu0 %v1949
        %2231 = vmatpush.bf16.msra.mxu0 %v1948
        %2232 = vmatpush.bf16.msra.mxu0 %v1947
        %2233 = vmatpush.bf16.msra.mxu0 %v1946
        %2234 = vmatpush.bf16.msra.mxu0 %v1945
        %2235 = vmatpush.bf16.msra.mxu0 %v1944
        %2236 = vmatpush.bf16.msra.mxu0 %v1943
        %2237 = vmatmul.bf16.gmra.mxu0 %v1113
        %v2238 = vpop.f32.mrf.mxu0
        %v2239 = vadd.f32 %v2216, %v2238
        %v2240 = vpop.f32.mrf.mxu0
        %v2241 = vadd.f32 %v2218, %v2240
        %2242 = vmatmul.bf16.gmra.mxu0 %v1129
        %v2243 = vpop.f32.mrf.mxu0
        %v2244 = vadd.f32 %v2221, %v2243
        %v2245 = vpop.f32.mrf.mxu0
        %v2246 = vadd.f32 %v2223, %v2245
        %2247 = vmatmul.bf16.gmra.mxu0 %v1145
        %v2248 = vpop.f32.mrf.mxu0
        %v2249 = vadd.f32 %v2226, %v2248
        %v2250 = vpop.f32.mrf.mxu0
        %2251 = vdwg.mxu0
        %2252 = vmatpush.bf16.msra.mxu0 %v1958
        %2253 = vmatpush.bf16.msra.mxu0 %v1957
        %2254 = vmatpush.bf16.msra.mxu0 %v1956
        %2255 = vmatpush.bf16.msra.mxu0 %v1955
        %2256 = vmatpush.bf16.msra.mxu0 %v1954
        %2257 = vmatpush.bf16.msra.mxu0 %v1953
        %2258 = vmatpush.bf16.msra.mxu0 %v1952
        %2259 = vmatpush.bf16.msra.mxu0 %v1951
        %2260 = vmatmul.bf16.gmra.mxu0 %v1114
        %v2261 = vpop.f32.mrf.mxu0
        %v2262 = vadd.f32 %v2239, %v2261
        %v2263 = vpop.f32.mrf.mxu0
        %v2264 = vadd.f32 %v2241, %v2263
        %2265 = vmatmul.bf16.gmra.mxu0 %v1130
        %v2266 = vpop.f32.mrf.mxu0
        %v2267 = vadd.f32 %v2244, %v2266
        %v2268 = vpop.f32.mrf.mxu0
        %v2269 = vadd.f32 %v2246, %v2268
        %2270 = vmatmul.bf16.gmra.mxu0 %v1146
        %v2271 = vpop.f32.mrf.mxu0
        %v2272 = vadd.f32 %v2249, %v2271
        %v2273 = vpop.f32.mrf.mxu0
        %2274 = vdwg.mxu0
        %2275 = vmatpush.bf16.msra.mxu0 %v1966
        %2276 = vmatpush.bf16.msra.mxu0 %v1965
        %2277 = vmatpush.bf16.msra.mxu0 %v1964
        %2278 = vmatpush.bf16.msra.mxu0 %v1963
        %2279 = vmatpush.bf16.msra.mxu0 %v1962
        %2280 = vmatpush.bf16.msra.mxu0 %v1961
        %2281 = vmatpush.bf16.msra.mxu0 %v1960
        %2282 = vmatpush.bf16.msra.mxu0 %v1959
        %2283 = vmatmul.bf16.gmra.mxu0 %v1115
        %v2284 = vpop.f32.mrf.mxu0
        %v2285 = vadd.f32 %v2262, %v2284
        %v2286 = vpop.f32.mrf.mxu0
        %v2287 = vadd.f32 %v2264, %v2286
        %2288 = vmatmul.bf16.gmra.mxu0 %v1131
        %v2289 = vpop.f32.mrf.mxu0
        %v2290 = vadd.f32 %v2267, %v2289
        %v2291 = vpop.f32.mrf.mxu0
        %v2292 = vadd.f32 %v2269, %v2291
        %2293 = vmatmul.bf16.gmra.mxu0 %v1147
        %v2294 = vpop.f32.mrf.mxu0
        %v2295 = vadd.f32 %v2272, %v2294
        %v2296 = vpop.f32.mrf.mxu0
        %2297 = vdwg.mxu0
        %2298 = vmatpush.bf16.msra.mxu0 %v1974
        %2299 = vmatpush.bf16.msra.mxu0 %v1973
        %2300 = vmatpush.bf16.msra.mxu0 %v1972
        %2301 = vmatpush.bf16.msra.mxu0 %v1971
        %2302 = vmatpush.bf16.msra.mxu0 %v1970
        %2303 = vmatpush.bf16.msra.mxu0 %v1969
        %2304 = vmatpush.bf16.msra.mxu0 %v1968
        %2305 = vmatpush.bf16.msra.mxu0 %v1967
        %2306 = vmatmul.bf16.gmra.mxu0 %v1116
        %v2307 = vpop.f32.mrf.mxu0
        %v2308 = vadd.f32 %v2285, %v2307
        %v2309 = vpop.f32.mrf.mxu0
        %v2310 = vadd.f32 %v2287, %v2309
        %2311 = vmatmul.bf16.gmra.mxu0 %v1132
        %v2312 = vpop.f32.mrf.mxu0
        %v2313 = vadd.f32 %v2290, %v2312
        %v2314 = vpop.f32.mrf.mxu0
        %v2315 = vadd.f32 %v2292, %v2314
        %2316 = vmatmul.bf16.gmra.mxu0 %v1148
        %v2317 = vpop.f32.mrf.mxu0
        %v2318 = vadd.f32 %v2295, %v2317
        %v2319 = vpop.f32.mrf.mxu0
        %2320 = vdwg.mxu0
        %2321 = vmatpush.bf16.msra.mxu0 %v1982
        %2322 = vmatpush.bf16.msra.mxu0 %v1981
        %2323 = vmatpush.bf16.msra.mxu0 %v1980
        %2324 = vmatpush.bf16.msra.mxu0 %v1979
        %2325 = vmatpush.bf16.msra.mxu0 %v1978
        %2326 = vmatpush.bf16.msra.mxu0 %v1977
        %2327 = vmatpush.bf16.msra.mxu0 %v1976
        %2328 = vmatpush.bf16.msra.mxu0 %v1975
        %2329 = vmatmul.bf16.gmra.mxu0 %v1117
        %v2330 = vpop.f32.mrf.mxu0
        %v2331 = vadd.f32 %v2308, %v2330
        %v2332 = vpop.f32.mrf.mxu0
        %v2333 = vadd.f32 %v2310, %v2332
        %2334 = vmatmul.bf16.gmra.mxu0 %v1133
        %v2335 = vpop.f32.mrf.mxu0
        %v2336 = vadd.f32 %v2313, %v2335
        %v2337 = vpop.f32.mrf.mxu0
        %v2338 = vadd.f32 %v2315, %v2337
        %2339 = vmatmul.bf16.gmra.mxu0 %v1149
        %v2340 = vpop.f32.mrf.mxu0
        %v2341 = vadd.f32 %v2318, %v2340
        %v2342 = vpop.f32.mrf.mxu0
        %2343 = vdwg.mxu0
        %2344 = vmatpush.bf16.msra.mxu0 %v1990
        %2345 = vmatpush.bf16.msra.mxu0 %v1989
        %2346 = vmatpush.bf16.msra.mxu0 %v1988
        %2347 = vmatpush.bf16.msra.mxu0 %v1987
        %2348 = vmatpush.bf16.msra.mxu0 %v1986
        %2349 = vmatpush.bf16.msra.mxu0 %v1985
        %2350 = vmatpush.bf16.msra.mxu0 %v1984
        %2351 = vmatpush.bf16.msra.mxu0 %v1983
        %2352 = vmatmul.bf16.gmra.mxu0 %v1118
        %v2353 = vpop.f32.mrf.mxu0
        %v2354 = vadd.f32 %v2331, %v2353
        %v2355 = vpop.f32.mrf.mxu0
        %v2356 = vadd.f32 %v2333, %v2355
        %2357 = vmatmul.bf16.gmra.mxu0 %v1134
        %v2358 = vpop.f32.mrf.mxu0
        %v2359 = vadd.f32 %v2336, %v2358
        %v2360 = vpop.f32.mrf.mxu0
        %v2361 = vadd.f32 %v2338, %v2360
        %2362 = vmatmul.bf16.gmra.mxu0 %v1150
        %v2363 = vpop.f32.mrf.mxu0
        %v2364 = vadd.f32 %v2341, %v2363
        %v2365 = vpop.f32.mrf.mxu0
        %2366 = vdwg.mxu0
        %2367 = vmatpush.bf16.msra.mxu0 %v1998
        %2368 = vmatpush.bf16.msra.mxu0 %v1997
        %2369 = vmatpush.bf16.msra.mxu0 %v1996
        %2370 = vmatpush.bf16.msra.mxu0 %v1995
        %2371 = vmatpush.bf16.msra.mxu0 %v1994
        %2372 = vmatpush.bf16.msra.mxu0 %v1993
        %2373 = vmatpush.bf16.msra.mxu0 %v1992
        %2374 = vmatpush.bf16.msra.mxu0 %v1991
        %2375 = vmatmul.bf16.gmra.mxu0 %v1119
        %v2376 = vpop.f32.mrf.mxu0
        %v2377 = vadd.f32 %v2354, %v2376
        %v2378 = vpop.f32.mrf.mxu0
        %v2379 = vadd.f32 %v2356, %v2378
        %2380 = vmatmul.bf16.gmra.mxu0 %v1135
        %v2381 = vpop.f32.mrf.mxu0
        %v2382 = vadd.f32 %v2359, %v2381
        %v2383 = vpop.f32.mrf.mxu0
        %v2384 = vadd.f32 %v2361, %v2383
        %2385 = vmatmul.bf16.gmra.mxu0 %v1151
        %v2386 = vpop.f32.mrf.mxu0
        %v2387 = vadd.f32 %v2364, %v2386
        %v2388 = vpop.f32.mrf.mxu0
        %2389 = vdwg.mxu0
        %2390 = vmatpush.bf16.msra.mxu0 %v2006
        %2391 = vmatpush.bf16.msra.mxu0 %v2005
        %2392 = vmatpush.bf16.msra.mxu0 %v2004
        %2393 = vmatpush.bf16.msra.mxu0 %v2003
        %2394 = vmatpush.bf16.msra.mxu0 %v2002
        %2395 = vmatpush.bf16.msra.mxu0 %v2001
        %2396 = vmatpush.bf16.msra.mxu0 %v2000
        %2397 = vmatpush.bf16.msra.mxu0 %v1999
        %2398 = vmatmul.bf16.gmra.mxu0 %v1120
        %v2399 = vpop.f32.mrf.mxu0
        %v2400 = vadd.f32 %v2377, %v2399
        %v2401 = vpop.f32.mrf.mxu0
        %v2402 = vadd.f32 %v2379, %v2401
        %2403 = vmatmul.bf16.gmra.mxu0 %v1136
        %v2404 = vpop.f32.mrf.mxu0
        %v2405 = vadd.f32 %v2382, %v2404
        %v2406 = vpop.f32.mrf.mxu0
        %v2407 = vadd.f32 %v2384, %v2406
        %2408 = vmatmul.bf16.gmra.mxu0 %v1152
        %v2409 = vpop.f32.mrf.mxu0
        %v2410 = vadd.f32 %v2387, %v2409
        %v2411 = vpop.f32.mrf.mxu0
        %2412 = vdwg.mxu0
        %2413 = vmatpush.bf16.msra.mxu0 %v2014
        %2414 = vmatpush.bf16.msra.mxu0 %v2013
        %2415 = vmatpush.bf16.msra.mxu0 %v2012
        %2416 = vmatpush.bf16.msra.mxu0 %v2011
        %2417 = vmatpush.bf16.msra.mxu0 %v2010
        %2418 = vmatpush.bf16.msra.mxu0 %v2009
        %2419 = vmatpush.bf16.msra.mxu0 %v2008
        %2420 = vmatpush.bf16.msra.mxu0 %v2007
        %2421 = vmatmul.bf16.gmra.mxu0 %v1121
        %v2422 = vpop.f32.mrf.mxu0
        %v2423 = vadd.f32 %v2400, %v2422
        %v2424 = vpop.f32.mrf.mxu0
        %v2425 = vadd.f32 %v2402, %v2424
        %2426 = vmatmul.bf16.gmra.mxu0 %v1137
        %v2427 = vpop.f32.mrf.mxu0
        %v2428 = vadd.f32 %v2405, %v2427
        %v2429 = vpop.f32.mrf.mxu0
        %v2430 = vadd.f32 %v2407, %v2429
        %2431 = vmatmul.bf16.gmra.mxu0 %v1153
        %v2432 = vpop.f32.mrf.mxu0
        %v2433 = vadd.f32 %v2410, %v2432
        %v2434 = vpop.f32.mrf.mxu0
        %2435 = vdwg.mxu0
        %2436 = vmatpush.bf16.msra.mxu0 %v2022
        %2437 = vmatpush.bf16.msra.mxu0 %v2021
        %2438 = vmatpush.bf16.msra.mxu0 %v2020
        %2439 = vmatpush.bf16.msra.mxu0 %v2019
        %2440 = vmatpush.bf16.msra.mxu0 %v2018
        %2441 = vmatpush.bf16.msra.mxu0 %v2017
        %2442 = vmatpush.bf16.msra.mxu0 %v2016
        %2443 = vmatpush.bf16.msra.mxu0 %v2015
        %2444 = vmatmul.bf16.gmra.mxu0 %v1122
        %v2445 = vpop.f32.mrf.mxu0
        %v2446 = vadd.f32 %v2423, %v2445
        %v2447 = vpop.f32.mrf.mxu0
        %v2448 = vadd.f32 %v2425, %v2447
        %2449 = vmatmul.bf16.gmra.mxu0 %v1138
        %v2450 = vpop.f32.mrf.mxu0
        %v2451 = vadd.f32 %v2428, %v2450
        %v2452 = vpop.f32.mrf.mxu0
        %v2453 = vadd.f32 %v2430, %v2452
        %2454 = vmatmul.bf16.gmra.mxu0 %v1154
        %v2455 = vpop.f32.mrf.mxu0
        %v2456 = vadd.f32 %v2433, %v2455
        %v2457 = vpop.f32.mrf.mxu0
        %2458 = vdwg.mxu0
        %2459 = vmatpush.bf16.msra.mxu0 %v2030
        %2460 = vmatpush.bf16.msra.mxu0 %v2029
        %2461 = vmatpush.bf16.msra.mxu0 %v2028
        %2462 = vmatpush.bf16.msra.mxu0 %v2027
        %2463 = vmatpush.bf16.msra.mxu0 %v2026
        %2464 = vmatpush.bf16.msra.mxu0 %v2025
        %2465 = vmatpush.bf16.msra.mxu0 %v2024
        %2466 = vmatpush.bf16.msra.mxu0 %v2023
        %2467 = vmatmul.bf16.gmra.mxu0 %v1123
        %v2468 = vpop.f32.mrf.mxu0
        %v2469 = vadd.f32 %v2446, %v2468
        %v2470 = vpop.f32.mrf.mxu0
        %v2471 = vadd.f32 %v2448, %v2470
        %2472 = vmatmul.bf16.gmra.mxu0 %v1139
        %v2473 = vpop.f32.mrf.mxu0
        %v2474 = vadd.f32 %v2451, %v2473
        %v2475 = vpop.f32.mrf.mxu0
        %v2476 = vadd.f32 %v2453, %v2475
        %2477 = vmatmul.bf16.gmra.mxu0 %v1155
        %v2478 = vpop.f32.mrf.mxu0
        %v2479 = vadd.f32 %v2456, %v2478
        %v2480 = vpop.f32.mrf.mxu0
        %2481 = vdwg.mxu0
        %2482 = vmatpush.bf16.msra.mxu0 %v2038
        %2483 = vmatpush.bf16.msra.mxu0 %v2037
        %2484 = vmatpush.bf16.msra.mxu0 %v2036
        %2485 = vmatpush.bf16.msra.mxu0 %v2035
        %2486 = vmatpush.bf16.msra.mxu0 %v2034
        %2487 = vmatpush.bf16.msra.mxu0 %v2033
        %2488 = vmatpush.bf16.msra.mxu0 %v2032
        %2489 = vmatpush.bf16.msra.mxu0 %v2031
        %2490 = vmatmul.bf16.gmra.mxu0 %v1124
        %v2491 = vpop.f32.mrf.mxu0
        %v2492 = vadd.f32 %v2469, %v2491
        %v2493 = vpop.f32.mrf.mxu0
        %v2494 = vadd.f32 %v2471, %v2493
        %2495 = vmatmul.bf16.gmra.mxu0 %v1140
        %v2496 = vpop.f32.mrf.mxu0
        %v2497 = vadd.f32 %v2474, %v2496
        %v2498 = vpop.f32.mrf.mxu0
        %v2499 = vadd.f32 %v2476, %v2498
        %2500 = vmatmul.bf16.gmra.mxu0 %v1156
        %v2501 = vpop.f32.mrf.mxu0
        %v2502 = vadd.f32 %v2479, %v2501
        %v2503 = vpop.f32.mrf.mxu0
        %2504 = vdwg.mxu0
        %2505 = vmatpush.bf16.msra.mxu0 %v2046
        %2506 = vmatpush.bf16.msra.mxu0 %v2045
        %2507 = vmatpush.bf16.msra.mxu0 %v2044
        %2508 = vmatpush.bf16.msra.mxu0 %v2043
        %2509 = vmatpush.bf16.msra.mxu0 %v2042
        %2510 = vmatpush.bf16.msra.mxu0 %v2041
        %2511 = vmatpush.bf16.msra.mxu0 %v2040
        %2512 = vmatpush.bf16.msra.mxu0 %v2039
        %2513 = vmatmul.bf16.gmra.mxu0 %v1125
        %v2514 = vpop.f32.mrf.mxu0
        %v2515 = vadd.f32 %v2492, %v2514
        %v2516 = vpop.f32.mrf.mxu0
        %v2517 = vadd.f32 %v2494, %v2516
        %2518 = vmatmul.bf16.gmra.mxu0 %v1141
        %v2519 = vpop.f32.mrf.mxu0
        %v2520 = vadd.f32 %v2497, %v2519
        %v2521 = vpop.f32.mrf.mxu0
        %v2522 = vadd.f32 %v2499, %v2521
        %2523 = vmatmul.bf16.gmra.mxu0 %v1157
        %v2524 = vpop.f32.mrf.mxu0
        %v2525 = vadd.f32 %v2502, %v2524
        %v2526 = vpop.f32.mrf.mxu0
        %2527 = vdwg.mxu0
        %2528 = vmatpush.bf16.msra.mxu0 %v2054
        %2529 = vmatpush.bf16.msra.mxu0 %v2053
        %2530 = vmatpush.bf16.msra.mxu0 %v2052
        %2531 = vmatpush.bf16.msra.mxu0 %v2051
        %2532 = vmatpush.bf16.msra.mxu0 %v2050
        %2533 = vmatpush.bf16.msra.mxu0 %v2049
        %2534 = vmatpush.bf16.msra.mxu0 %v2048
        %2535 = vmatpush.bf16.msra.mxu0 %v2047
        %2536 = vmatmul.bf16.gmra.mxu0 %v1126
        %v2537 = vpop.f32.mrf.mxu0
        %v2538 = vadd.f32 %v2515, %v2537
        %v2539 = vpop.f32.mrf.mxu0
        %v2540 = vadd.f32 %v2517, %v2539
        %2541 = vmatmul.bf16.gmra.mxu0 %v1142
        %v2542 = vpop.f32.mrf.mxu0
        %v2543 = vadd.f32 %v2520, %v2542
        %v2544 = vpop.f32.mrf.mxu0
        %v2545 = vadd.f32 %v2522, %v2544
        %2546 = vmatmul.bf16.gmra.mxu0 %v1158
        %v2547 = vpop.f32.mrf.mxu0
        %v2548 = vadd.f32 %v2525, %v2547
        %v2549 = vpop.f32.mrf.mxu0
        %2550 = vdwg.mxu0
        %v2551 = vmul.f32 %v2538, %v2538
        %v2552 = vmul.f32 %v2540, %v2540
        %v2553 = vmul.f32 %v2543, %v2543
        %v2554 = vmul.f32 %v2545, %v2545
        %v2555 = vmul.f32 %v2548, %v2548
        %v2556 = vld [vmem:[%s5] sm:$0xf]
        %v2557 = vld [vmem:[%s5 + $0x4] sm:$0xf]
        %v2558 = vld [vmem:[%s5 + $0x8] sm:$0xf]
        %v2559 = vld [vmem:[%s5 + $0xc] sm:$0xf]
        %v2560 = vld [vmem:[%s5 + $0x10] sm:$0xf]
        %v2561 = vpack.c.bf16 %v2552, %v2551
        %v2562 = vpack.c.bf16 %v2554, %v2553
        %v2563 = vpack.c.bf16 %v2555, %v2555
        %v2569 = vunpack.c.l.b16 %v2556
        %v2570 = vunpack.c.l.b16 %v2557
        %v2571 = vunpack.c.l.b16 %v2558
        %v2572 = vunpack.c.l.b16 %v2559
        %v2573 = vunpack.c.l.b16 %v2560
        %v2574 = vpack.c.b16 %v2570, %v2569
        %v2575 = vpack.c.b16 %v2572, %v2571
        %v2576 = vpack.c.b16 %v2573, %v2573
        %vm2577 = vcmask 326656
        %v2579 = vsel %vm2577, %v2574, 0
        %v2582 = vsel %vm2577, %v2575, 0
        %v2585 = vsel %vm2577, %v2576, 0
        %v2588 = vsel %vm496, %v2563, 0
        %2590 = vmatpush.bf16.msra.mxu0 0
        %2591 = vmatpush.bf16.msra.mxu0 0
        %2592 = vmatpush.bf16.msra.mxu0 0
        %2593 = vmatpush.bf16.msra.mxu0 0
        %2594 = vmatpush.bf16.msra.mxu0 0
        %2595 = vmatpush.bf16.msra.mxu0 %v2588
        %2596 = vmatpush.bf16.msra.mxu0 %v2562
        %2597 = vmatpush.bf16.msra.mxu0 %v2561
        %2598 = vmatmul.bf16.gmra.mxu0 %v2579
        %v2599 = vpop.f32.mrf.mxu0
        %v2600 = vadd.f32 0.0, %v2599
        %v2601 = vpop.f32.mrf.mxu0
        %v2602 = vadd.f32 0.0, %v2601
        %2603 = vmatmul.bf16.gmra.mxu0 %v2582
        %v2604 = vpop.f32.mrf.mxu0
        %v2605 = vadd.f32 0.0, %v2604
        %v2606 = vpop.f32.mrf.mxu0
        %v2607 = vadd.f32 0.0, %v2606
        %2608 = vmatmul.bf16.gmra.mxu0 %v2585
        %v2609 = vpop.f32.mrf.mxu0
        %v2610 = vadd.f32 0.0, %v2609
        %v2611 = vpop.f32.mrf.mxu0
        %2612 = vdwg.mxu0
        %v2613 = vadd.f32 %v2600, 1.0
        %v2614 = vadd.f32 %v2602, 1.0
        %v2615 = vadd.f32 %v2605, 1.0
        %v2616 = vadd.f32 %v2607, 1.0
        %v2617 = vadd.f32 %v2610, 1.0
        %v2618 = vrcp.pop %v2613
        %v2619 = vmul.f32 %v2613, %v2618
        %v2620 = vsub.f32 1.0, %v2619
        %v2621 = vmul.f32 %v2618, %v2620
        %v2622 = vadd.f32 %v2618, %v2621
        %vm2623 = vweird.f32 %v2613
        %vm2624 = vweird.f32 %v2618
        %vm2625 = vmor %vm2623, %vm2624
        %v2626 = vsel %vm2625, %v2618, %v2622
        %v2627 = vand.u32 2147483647, %v2613
        %vm2628 = vcmp.eq.f32.partialorder %v2627, 8.507059e+37
        %v2629 = vand.u32 %v2613, 2147483648
        %v2630 = vor.u32 1.1754944e-38, %v2629
        %v2631 = vsel %vm2628, %v2630, %v2626
        %v2632 = vmul.f32 %v2600, %v2631
        %v2633 = vrcp.pop %v2614
        %v2634 = vmul.f32 %v2614, %v2633
        %v2635 = vsub.f32 1.0, %v2634
        %v2636 = vmul.f32 %v2633, %v2635
        %v2637 = vadd.f32 %v2633, %v2636
        %vm2638 = vweird.f32 %v2614
        %vm2639 = vweird.f32 %v2633
        %vm2640 = vmor %vm2638, %vm2639
        %v2641 = vsel %vm2640, %v2633, %v2637
        %v2642 = vand.u32 2147483647, %v2614
        %vm2643 = vcmp.eq.f32.partialorder %v2642, 8.507059e+37
        %v2644 = vand.u32 %v2614, 2147483648
        %v2645 = vor.u32 1.1754944e-38, %v2644
        %v2646 = vsel %vm2643, %v2645, %v2641
        %v2647 = vmul.f32 %v2602, %v2646
        %v2648 = vrcp.pop %v2615
        %v2649 = vmul.f32 %v2615, %v2648
        %v2650 = vsub.f32 1.0, %v2649
        %v2651 = vmul.f32 %v2648, %v2650
        %v2652 = vadd.f32 %v2648, %v2651
        %vm2653 = vweird.f32 %v2615
        %vm2654 = vweird.f32 %v2648
        %vm2655 = vmor %vm2653, %vm2654
        %v2656 = vsel %vm2655, %v2648, %v2652
        %v2657 = vand.u32 2147483647, %v2615
        %vm2658 = vcmp.eq.f32.partialorder %v2657, 8.507059e+37
        %v2659 = vand.u32 %v2615, 2147483648
        %v2660 = vor.u32 1.1754944e-38, %v2659
        %v2661 = vsel %vm2658, %v2660, %v2656
        %v2662 = vmul.f32 %v2605, %v2661
        %v2663 = vrcp.pop %v2616
        %v2664 = vmul.f32 %v2616, %v2663
        %v2665 = vsub.f32 1.0, %v2664
        %v2666 = vmul.f32 %v2663, %v2665
        %v2667 = vadd.f32 %v2663, %v2666
        %vm2668 = vweird.f32 %v2616
        %vm2669 = vweird.f32 %v2663
        %vm2670 = vmor %vm2668, %vm2669
        %v2671 = vsel %vm2670, %v2663, %v2667
        %v2672 = vand.u32 2147483647, %v2616
        %vm2673 = vcmp.eq.f32.partialorder %v2672, 8.507059e+37
        %v2674 = vand.u32 %v2616, 2147483648
        %v2675 = vor.u32 1.1754944e-38, %v2674
        %v2676 = vsel %vm2673, %v2675, %v2671
        %v2677 = vmul.f32 %v2607, %v2676
        %v2678 = vrcp.pop %v2617
        %v2679 = vmul.f32 %v2617, %v2678
        %v2680 = vsub.f32 1.0, %v2679
        %v2681 = vmul.f32 %v2678, %v2680
        %v2682 = vadd.f32 %v2678, %v2681
        %vm2683 = vweird.f32 %v2617
        %vm2684 = vweird.f32 %v2678
        %vm2685 = vmor %vm2683, %vm2684
        %v2686 = vsel %vm2685, %v2678, %v2682
        %v2687 = vand.u32 2147483647, %v2617
        %vm2688 = vcmp.eq.f32.partialorder %v2687, 8.507059e+37
        %v2689 = vand.u32 %v2617, 2147483648
        %v2690 = vor.u32 1.1754944e-38, %v2689
        %v2691 = vsel %vm2688, %v2690, %v2686
        %v2692 = vmul.f32 %v2610, %v2691
        %v2693 = vmul.f32 %v2632, %v2538
        %v2694 = vmul.f32 %v2647, %v2540
        %v2695 = vmul.f32 %v2662, %v2543
        %v2696 = vmul.f32 %v2677, %v2545
        %v2697 = vmul.f32 %v2692, %v2548
        %v2698 = vadd.f32 %v2600, 1e-08
        %v2699 = vadd.f32 %v2602, 1e-08
        %v2700 = vadd.f32 %v2605, 1e-08
        %v2701 = vadd.f32 %v2607, 1e-08
        %v2702 = vadd.f32 %v2610, 1e-08
        %v2703 = vrsqrt.pop %v2698
        %v2704 = vmul.f32 %v2703, %v2698
        %v2705 = vmul.f32 %v2704, %v2703
        %v2706 = vmul.f32 0.5, %v2705
        %v2707 = vsub.f32 1.5, %v2706
        %v2708 = vmul.f32 %v2703, %v2707
        %vm2709 = vweird.f32 %v2698
        %vm2710 = vweird.f32 %v2703
        %vm2711 = vmor %vm2709, %vm2710
        %v2712 = vsel %vm2711, %v2703, %v2708
        %v2713 = vrsqrt.pop %v2699
        %v2714 = vmul.f32 %v2713, %v2699
        %v2715 = vmul.f32 %v2714, %v2713
        %v2716 = vmul.f32 0.5, %v2715
        %v2717 = vsub.f32 1.5, %v2716
        %v2718 = vmul.f32 %v2713, %v2717
        %vm2719 = vweird.f32 %v2699
        %vm2720 = vweird.f32 %v2713
        %vm2721 = vmor %vm2719, %vm2720
        %v2722 = vsel %vm2721, %v2713, %v2718
        %v2723 = vrsqrt.pop %v2700
        %v2724 = vmul.f32 %v2723, %v2700
        %v2725 = vmul.f32 %v2724, %v2723
        %v2726 = vmul.f32 0.5, %v2725
        %v2727 = vsub.f32 1.5, %v2726
        %v2728 = vmul.f32 %v2723, %v2727
        %vm2729 = vweird.f32 %v2700
        %vm2730 = vweird.f32 %v2723
        %vm2731 = vmor %vm2729, %vm2730
        %v2732 = vsel %vm2731, %v2723, %v2728
        %v2733 = vrsqrt.pop %v2701
        %v2734 = vmul.f32 %v2733, %v2701
        %v2735 = vmul.f32 %v2734, %v2733
        %v2736 = vmul.f32 0.5, %v2735
        %v2737 = vsub.f32 1.5, %v2736
        %v2738 = vmul.f32 %v2733, %v2737
        %vm2739 = vweird.f32 %v2701
        %vm2740 = vweird.f32 %v2733
        %vm2741 = vmor %vm2739, %vm2740
        %v2742 = vsel %vm2741, %v2733, %v2738
        %v2743 = vrsqrt.pop %v2702
        %v2744 = vmul.f32 %v2743, %v2702
        %v2745 = vmul.f32 %v2744, %v2743
        %v2746 = vmul.f32 0.5, %v2745
        %v2747 = vsub.f32 1.5, %v2746
        %v2748 = vmul.f32 %v2743, %v2747
        %vm2749 = vweird.f32 %v2702
        %vm2750 = vweird.f32 %v2743
        %vm2751 = vmor %vm2749, %vm2750
        %v2752 = vsel %vm2751, %v2743, %v2748
        %v2753 = vmul.f32 %v2693, %v2712
        %v2754 = vmul.f32 %v2694, %v2722
        %v2755 = vmul.f32 %v2695, %v2732
        %v2756 = vmul.f32 %v2696, %v2742
        %v2757 = vmul.f32 %v2697, %v2752
        %v2758 = vsel %vm1026, %v2538, %v2753
        %v2759 = vsel %vm1027, %v2540, %v2754
        %v2760 = vsel %vm1028, %v2543, %v2755
        %v2761 = vsel %vm1029, %v2545, %v2756
        %v2762 = vsel %vm1030, %v2548, %v2757
        %v2763 = vld [vmem:[%s6] sm:$0xf]
        %v2764 = vld [vmem:[%s6 + $0x4] sm:$0xf]
        %v2765 = vld [vmem:[%s6 + $0x8] sm:$0xf]
        %v2766 = vld [vmem:[%s6 + $0xc] sm:$0xf]
        %v2767 = vpack.c.bf16 %v2759, %v2758
        %v2768 = vpack.c.bf16 %v2761, %v2760
        %v2769 = vpack.c.bf16 %v2762, %v2762
        %v2770 = vld [vmem:[%s7] sm:$0xff]
        %v2771 = vld [vmem:[%s7 + $0x8] sm:$0xff]
        %v2772 = vld [vmem:[%s7 + $0x10] sm:$0xff]
        %v2773 = vld [vmem:[%s7 + $0x18] sm:$0xff]
        %2775 = vset.pattern.permute.xlu0 0
        %2776 = vperm.xlu0 %2775, %v2770
        %v2777 = vpop.permute.xlu0 %2776
        %2780 = vset.pattern.permute.xlu0 0
        %2781 = vperm.xlu0 %2780, %v2771
        %v2782 = vpop.permute.xlu0 %2781
        %2785 = vset.pattern.permute.xlu0 0
        %2786 = vperm.xlu0 %2785, %v2772
        %v2787 = vpop.permute.xlu0 %2786
        %2790 = vset.pattern.permute.xlu0 0
        %2791 = vperm.xlu0 %2790, %v2773
        %v2792 = vpop.permute.xlu0 %2791
        %v2798 = vunpack.c.l.b16 %v2763
        %v2799 = vunpack.c.l.b16 %v2764
        %v2800 = vunpack.c.l.b16 %v2765
        %v2801 = vunpack.c.l.b16 %v2766
        %v2802 = vpack.c.b16 %v2799, %v2798
        %v2803 = vpack.c.b16 %v2801, %v2800
        %v2805 = vsel %vm2577, %v2802, 0
        %v2808 = vsel %vm2577, %v2803, 0
        %v2811 = vsel %vm496, %v2769, 0
        %2813 = vmatpush.bf16.msra.mxu0 0
        %2814 = vmatpush.bf16.msra.mxu0 0
        %2815 = vmatpush.bf16.msra.mxu0 0
        %2816 = vmatpush.bf16.msra.mxu0 0
        %2817 = vmatpush.bf16.msra.mxu0 0
        %2818 = vmatpush.bf16.msra.mxu0 %v2811
        %2819 = vmatpush.bf16.msra.mxu0 %v2768
        %2820 = vmatpush.bf16.msra.mxu0 %v2767
        %2821 = vmatmul.bf16.gmra.mxu0 %v2805
        %v2822 = vpop.f32.mrf.mxu0
        %v2823 = vadd.f32 %v2777, %v2822
        %v2824 = vpop.f32.mrf.mxu0
        %v2825 = vadd.f32 %v2782, %v2824
        %2826 = vmatmul.bf16.gmra.mxu0 %v2808
        %v2827 = vpop.f32.mrf.mxu0
        %v2828 = vadd.f32 %v2787, %v2827
        %v2829 = vpop.f32.mrf.mxu0
        %v2830 = vadd.f32 %v2792, %v2829
        %2831 = vdwg.mxu0
        %v2832 = vmax.f32 %v2823, 0.0
        %v2833 = vmax.f32 %v2825, 0.0
        %v2834 = vmax.f32 %v2828, 0.0
        %v2835 = vmax.f32 %v2830, 0.0
        %vm2836 = vcmask 64512
        %2837 = vst.msk [vmem:[%s356] sm:$0xff] %vm2836, %v2832
        %2838 = vst.msk [vmem:[%s356 + $0x8] sm:$0xff] %vm2836, %v2833
        %2839 = vst.msk [vmem:[%s356 + $0x10] sm:$0xff] %vm2836, %v2834
        %2840 = vst.msk [vmem:[%s356 + $0x18] sm:$0xff] %vm2836, %v2835
        %p2841 = scmp.lt.s32.totalorder %s19, 1
        %s2842 = scalar_select %p2841, %s19, 1
        %s2843 = smul.addr %s2842, 4
        %s2844 = smul.addr %s2843, 8
        %s2845 = scalar_lea.vmem %s8, %s2844
        // Predicated region
        $region76: #{tfcncap_buttle_lstm_forward.2} parent=70 // pred_check
          %p2846 = pneg %p210
        $region77: #{tfcncap_buttle_lstm_forward.2} parent=70 // pred_check_branch
          %2848 = sbr.rel (%p2846) target = $region79
        $region78: #{tfcncap_buttle_lstm_forward.2} parent=70 // pred_region
          _
        $region79: #{tfcncap_buttle_lstm_forward.2} parent=70 // pred_fallthru
          _
      $region71: #{tfcncap_buttle_lstm_forward.2} parent=5 // pred_fallthru
        _
      %p2849 = scmp.le.s32.totalorder 2, %s14
      // Predicated region
      $region80: #{tfcncap_buttle_lstm_forward.2} parent=5 // pred_check
        %p2850 = pneg %p2849
      $region81: #{tfcncap_buttle_lstm_forward.2} parent=5 // pred_check_branch
        %2852 = sbr.rel (%p2850) target = $region83
      $region82: #{tfcncap_buttle_lstm_forward.2} parent=5 // pred_region
        %s2853 = ssub.s32 %s14, 2
        // Predicated region
        $region84: #{tfcncap_buttle_lstm_forward.2} parent=82 // pred_check
          %p2854 = pneg %p216
        $region85: #{tfcncap_buttle_lstm_forward.2} parent=82 // pred_check_branch
          %2856 = sbr.rel (%p2854) target = $region87
        $region86: #{tfcncap_buttle_lstm_forward.2} parent=82 // pred_region
          %p2857 = scmp.lt.s32.totalorder %s20, 1
          %s2858 = scalar_select %p2857, %s20, 1
          %s2859 = smul.addr %s2858, 4
          %s2860 = smul.addr %s2859, 8
          %s2861 = scalar_lea.vmem %s8, %s2860
        $region87: #{tfcncap_buttle_lstm_forward.2} parent=82 // pred_fallthru
          _
      $region83: #{tfcncap_buttle_lstm_forward.2} parent=5 // pred_fallthru
        _
    $region6: #{tfcncap_buttle_lstm_forward.2} parent=1 // loop_footer
      %s18 = sadd.s32 1, %s14
    $region7: #{tfcncap_buttle_lstm_forward.2} parent=1 // loop_footer_branch
      %13 = sbr.rel target = $region3
    $region8: #{tfcncap_buttle_lstm_forward.2} parent=1 // loop_exit
      _

</llo_original>
